<compile_context>
chip_gen: v7x
topology: tpu7x:2x2x1
jax: 0.10.0
libtpu: 0.0.40
codegen_flags: <defaults>
</compile_context>

<pallas_src>
import functools

import jax
import jax.numpy as jnp
from jax.experimental import pallas as pl
from jax.experimental.pallas import tpu as pltpu


_VMEM = pl.BlockSpec(memory_space=pltpu.MemorySpace.VMEM)


# ------------------------- Conv3d as lane-dense matmul ----------------------

def _conv_mm_kernel(w_ref, p_ref, b_ref, o_ref):
    y = jnp.dot(w_ref[...], p_ref[...], preferred_element_type=jnp.float32)
    o_ref[...] = jnp.maximum(y + b_ref[...], 0.0)


def conv_matmul_relu(wm, patches, bias):
    """relu(wm(Co,K) @ patches(K,S) + bias(Co,1)) -> (Co, S), lane-dense."""
    co, k = wm.shape
    s = patches.shape[1]
    return pl.pallas_call(
        _conv_mm_kernel,
        out_shape=jax.ShapeDtypeStruct((co, s), jnp.float32),
        in_specs=[_VMEM, _VMEM, _VMEM],
        out_specs=_VMEM,
        cost_estimate=pl.CostEstimate(
            flops=2 * co * k * s + 2 * co * s,
            transcendentals=0,
            bytes_accessed=4 * (co * k + k * s + co + co * s)),
    )(wm, patches, bias)


def _im2col_3d(x, pad, k):
    """x:(C,D,H,W) -> patches (C*kd*kh*kw, Do*Ho*Wo).
    Row order matches the PyTorch weight flatten (Ci, kd, kh, kw); column order
    is (do, ho, wo), i.e. the PyTorch spatial flatten order."""
    pd, ph, pw = pad
    kd, kh, kw = k
    xp = jnp.pad(x, ((0, 0), (pd, pd), (ph, ph), (pw, pw)))
    c, dp, hp, wp = xp.shape
    do, ho, wo = dp - kd + 1, hp - kh + 1, wp - kw + 1
    rows = []
    for a in range(kd):
        for b in range(kh):
            for cc in range(kw):
                rows.append(xp[:, a:a + do, b:b + ho, cc:cc + wo].reshape(c, -1))
    p = jnp.stack(rows, axis=1).reshape(c * kd * kh * kw, do * ho * wo)
    return p, (do, ho, wo)


def conv3d_relu(x, wm, bias, pad, k):
    patches, dims = _im2col_3d(x, pad, k)
    return conv_matmul_relu(wm, patches, bias), dims


# --------------- fused post-sensing kernel (one pallas_call) ----------------

def _tail_kernel(sens_ref, cqi_ref,
                 ls_w_ref, ls_b_ref,
                 shift_ref, mwx_ref, mwc_ref, mcb_ref,
                 m1_w_ref, m1_b_ref, m2_w_ref, m2_b_ref,
                 wih_ref, whh_ref, blstm_ref,
                 head_w_ref, head_b_ref,
                 h0_ref, c0_ref,
                 critic_ref, actor_ref, hout_ref, cout_ref,
                 *, num_windows, action_space):
    f32 = jnp.float32

    # linear_sensing_v0: (nw, 360) @ (360, nrb) + b
    x_sens = jnp.dot(sens_ref[...], ls_w_ref[...],
                     preferred_element_type=f32) + ls_b_ref[...]       # (nw, nrb)
    cqi = cqi_ref[...]

    # main_module_v0 Conv2d(k=(3,2), pad=(1,0)) over channel planes stacked as
    # (x_sens, cqi); the h-shift (with zero padding) is a matmul by a constant
    # shift matrix, the Ci contraction is a (Co,Ci)@(Ci,nrb) matmul.
    u = None
    for dh in range(3):
        s_m = shift_ref[dh]                                            # (nrb, nrb)
        xs = jnp.dot(x_sens, s_m, preferred_element_type=f32)
        cs = jnp.dot(cqi, s_m, preferred_element_type=f32)
        term = (jnp.dot(mwx_ref[dh], xs, preferred_element_type=f32)
                + jnp.dot(mwc_ref[dh], cs, preferred_element_type=f32))
        u = term if u is None else u + term
    u = jnp.maximum(u + mcb_ref[...], 0.0)                             # (nw, nrb)

    # Flatten -> Linear(nrb, H/2) -> ReLU -> Linear(H/2, H)
    z = jnp.maximum(
        jnp.dot(u, m1_w_ref[...], preferred_element_type=f32) + m1_b_ref[...], 0.0)
    xseq = jnp.dot(z, m2_w_ref[...], preferred_element_type=f32) + m2_b_ref[...]

    # LSTM: 1 layer, batch=1, seq = num_windows; PyTorch gate order i, f, g, o.
    # Per-gate weights (leading-dim indexed) => no sub-128-lane gate slicing.
    wih = [wih_ref[g] for g in range(4)]
    whh = [whh_ref[g] for g in range(4)]
    bg = [blstm_ref[g] for g in range(4)]
    h = h0_ref[...]
    c = c0_ref[...]
    for t in range(num_windows):
        x_t = xseq[t:t + 1, :]
        pre = [jnp.dot(x_t, wih[g], preferred_element_type=f32)
               + jnp.dot(h, whh[g], preferred_element_type=f32) + bg[g]
               for g in range(4)]
        i_g = jax.nn.sigmoid(pre[0])
        f_g = jax.nn.sigmoid(pre[1])
        g_g = jnp.tanh(pre[2])
        o_g = jax.nn.sigmoid(pre[3])
        c = f_g * c + i_g * g_g
        h = o_g * jnp.tanh(c)

    # critic & actor heads fused into one matmul on h_T (== x[:, -1, :]).
    heads = jnp.dot(h, head_w_ref[...], preferred_element_type=f32) + head_b_ref[...]
    critic_ref[...] = heads[:, 0:1]
    actor_ref[...] = heads[:, 1:1 + action_space]
    hout_ref[...] = h
    cout_ref[...] = c


def fused_tail(sens_flat, cqi, h0, c0, kp, *, hidden, num_windows, nrb,
               action_space):
    args = (sens_flat, cqi,
            kp["ls_w"], kp["ls_b"],
            kp["shift"], kp["mwx"], kp["mwc"], kp["mc_b"],
            kp["m1_w"], kp["m1_b"], kp["m2_w"], kp["m2_b"],
            kp["wih"], kp["whh"], kp["b_lstm"],
            kp["head_w"], kp["head_b"],
            h0, c0)
    out_shape = (jax.ShapeDtypeStruct((1, 1), jnp.float32),
                 jax.ShapeDtypeStruct((1, action_space), jnp.float32),
                 jax.ShapeDtypeStruct((1, hidden), jnp.float32),
                 jax.ShapeDtypeStruct((1, hidden), jnp.float32))
    flops = 2 * (num_windows * 360 * nrb
                 + 6 * num_windows * nrb * nrb
                 + num_windows * nrb * (hidden // 2)
                 + num_windows * (hidden // 2) * hidden
                 + num_windows * 8 * hidden * hidden
                 + hidden * (1 + action_space))
    return pl.pallas_call(
        functools.partial(_tail_kernel, num_windows=num_windows,
                          action_space=action_space),
        out_shape=out_shape,
        in_specs=[_VMEM] * len(args),
        out_specs=(_VMEM, _VMEM, _VMEM, _VMEM),
        cost_estimate=pl.CostEstimate(
            flops=flops,
            transcendentals=10 * num_windows * hidden,
            bytes_accessed=4 * sum(a.size for a in args)),
    )(*args)


# ------------------------------- parameters ---------------------------------

def _normalized_columns(key, shape, std):
    w = jax.random.normal(key, shape, dtype=jnp.float32)
    return w * std / jnp.sqrt(jnp.sum(w * w, axis=0, keepdims=True))


def init_params(key, num_windows, nrb, hidden_size, action_space):
    """PyTorch-like parameter layouts (conv weights (Co,Ci,k...), linears (in,out))."""
    ks = jax.random.split(key, 20)

    def w(k, shape, scale=0.1):
        return scale * jax.random.normal(k, shape, dtype=jnp.float32)

    p = {}
    # sensing_module_v0: 4x Conv3d(num_windows -> num_windows)
    p["c1_w"] = w(ks[0], (num_windows, num_windows, 2, 2, 2)); p["c1_b"] = w(ks[1], (num_windows,))
    p["c2_w"] = w(ks[2], (num_windows, num_windows, 2, 2, 2)); p["c2_b"] = w(ks[3], (num_windows,))
    p["c3_w"] = w(ks[4], (num_windows, num_windows, 3, 3, 3)); p["c3_b"] = w(ks[5], (num_windows,))
    p["c4_w"] = w(ks[6], (num_windows, num_windows, 3, 3, 3)); p["c4_b"] = w(ks[7], (num_windows,))
    # linear_sensing_v0: Linear(2*15*12, nrb), stored (in, out)
    p["ls_w"] = w(ks[8], (2 * 15 * 12, nrb)); p["ls_b"] = w(ks[9], (nrb,))
    # main_module_v0
    p["mc_w"] = w(ks[10], (num_windows, num_windows, 3, 2)); p["mc_b"] = w(ks[11], (num_windows,))
    p["m1_w"] = w(ks[12], (nrb, hidden_size // 2)); p["m1_b"] = w(ks[13], (hidden_size // 2,))
    p["m2_w"] = w(ks[14], (hidden_size // 2, hidden_size)); p["m2_b"] = w(ks[15], (hidden_size,))
    # LSTM (num_lstm_layers = 1), stored transposed (in, 4H), gate order i,f,g,o.
    p["w_ih"] = w(ks[16], (hidden_size, 4 * hidden_size))
    p["w_hh"] = w(ks[17], (hidden_size, 4 * hidden_size))
    # combined bias == b_ih + b_hh; both are zeroed in the module's __init__.
    p["b_lstm"] = jnp.zeros((1, 4 * hidden_size), jnp.float32)
    # heads (normalized_columns_initializer, zero bias)
    p["critic_w"] = _normalized_columns(ks[18], (hidden_size, 1), 1.0)
    p["critic_b"] = jnp.zeros((1,), jnp.float32)
    p["actor_w"] = _normalized_columns(ks[19], (hidden_size, action_space), 0.01)
    p["actor_b"] = jnp.zeros((action_space,), jnp.float32)
    return p


def pack_params(p, num_windows, nrb, hidden_size):
    """One-time repack of PyTorch-layout params into kernel-friendly layouts."""
    kp = {}
    for i in (1, 2, 3, 4):
        cw = p[f"c{i}_w"]
        co = cw.shape[0]
        kp[f"c{i}_wm"] = cw.reshape(co, -1)                 # (Co, Ci*kd*kh*kw)
        kp[f"c{i}_b"] = p[f"c{i}_b"].reshape(co, 1)
    kp["ls_w"] = p["ls_w"]
    kp["ls_b"] = p["ls_b"].reshape(1, nrb)

    mcw = p["mc_w"]                                          # (co, ci, 3, 2)
    kp["mwx"] = jnp.transpose(mcw[:, :, :, 0], (2, 0, 1))    # (3, co, ci), W-tap 0 (x_sens)
    kp["mwc"] = jnp.transpose(mcw[:, :, :, 1], (2, 0, 1))    # (3, co, ci), W-tap 1 (cqi)
    kp["mc_b"] = p["mc_b"].reshape(num_windows, 1)
    # shift matrices S_dh[j, h] = 1 iff j == h + dh - 1 (zero-padded h-shift)
    j = jnp.arange(nrb)[:, None]
    hcol = jnp.arange(nrb)[None, :]
    kp["shift"] = jnp.stack(
        [(j == hcol + dh - 1).astype(jnp.float32) for dh in range(3)], axis=0)

    kp["m1_w"] = p["m1_w"]; kp["m1_b"] = p["m1_b"].reshape(1, -1)
    kp["m2_w"] = p["m2_w"]; kp["m2_b"] = p["m2_b"].reshape(1, -1)

    H = hidden_size
    kp["wih"] = jnp.transpose(p["w_ih"].reshape(H, 4, H), (1, 0, 2))   # (4, H, H)
    kp["whh"] = jnp.transpose(p["w_hh"].reshape(H, 4, H), (1, 0, 2))   # (4, H, H)
    kp["b_lstm"] = p["b_lstm"].reshape(4, 1, H)                        # (4, 1, H)

    # fused heads: [critic | actor]
    kp["head_w"] = jnp.concatenate([p["critic_w"], p["actor_w"]], axis=1)
    kp["head_b"] = jnp.concatenate([p["critic_b"], p["actor_b"]]).reshape(1, -1)
    return kp


# --------------------------------- forward ----------------------------------

def make_forward(num_windows, nrb, hidden_size, action_space):
    @jax.jit
    def forward(kp, cqi, sensing, hx, cx):
        # sensing: (1, num_windows, 2, 13, 10) -> unbatched (C, D, H, W)
        x = sensing[0].astype(jnp.float32)
        y, d = conv3d_relu(x, kp["c1_wm"], kp["c1_b"], (1, 1, 1), (2, 2, 2))  # (nw, 462)
        x = y.reshape(num_windows, *d)                                        # (nw, 3,14,11)
        y, d = conv3d_relu(x, kp["c2_wm"], kp["c2_b"], (1, 1, 1), (2, 2, 2))  # (nw, 720)
        x = y.reshape(num_windows, *d)                                        # (nw, 4,15,12)
        y, d = conv3d_relu(x, kp["c3_wm"], kp["c3_b"], (1, 1, 1), (3, 3, 3))  # (nw, 720)
        x = y.reshape(num_windows, *d)                                        # (nw, 4,15,12)
        y4, _ = conv3d_relu(x, kp["c4_wm"], kp["c4_b"], (0, 1, 1), (3, 3, 3)) # (nw, 360)
        # y4 is already in the PyTorch .view(-1, 2*15*12) layout -> feeds the
        # fused kernel with zero layout churn.

        critic, actor, h_t, c_t = fused_tail(
            y4, cqi.astype(jnp.float32), hx[0], cx[0], kp,
            hidden=hidden_size, num_windows=num_windows, nrb=nrb,
            action_space=action_space)
        return critic, actor, (h_t[None], c_t[None])
    return forward


# ---------------------------------- driver ----------------------------------

if __name__ == "__main__":
    num_windows, nrb, hidden_size, action_space = 4, 5, 32, 6

    key = jax.random.PRNGKey(0)
    k_p, k_c, k_s, k_h, k_cx = jax.random.split(key, 5)

    params = init_params(k_p, num_windows, nrb, hidden_size, action_space)
    kparams = pack_params(params, num_windows, nrb, hidden_size)

    cqi = jax.random.normal(k_c, (num_windows, nrb), dtype=jnp.float32)
    sensing = jax.random.normal(k_s, (1, num_windows, 2, 13, 10), dtype=jnp.float32)
    hx = jax.random.normal(k_h, (1, 1, hidden_size), dtype=jnp.float32)
    cx = jax.random.normal(k_cx, (1, 1, hidden_size), dtype=jnp.float32)

    forward = make_forward(num_windows, nrb, hidden_size, action_space)
    critic, actor, (h_out, c_out) = forward(kparams, cqi, sensing, hx, cx)
    jax.block_until_ready((critic, actor, h_out, c_out))

    assert critic.shape == (1, 1)
    assert actor.shape == (1, action_space)
    assert h_out.shape == (1, 1, hidden_size)
    assert c_out.shape == (1, 1, hidden_size)
    print("KERNEL_OK")
</pallas_src>

<mosaic_0001>
module attributes {stable_mosaic.version = 11 : i64} {
  func.func @_conv_mm_kernel(%arg0: memref<4x32xf32, #tpu.memory_space<vmem>>, %arg1: memref<32x462xf32, #tpu.memory_space<vmem>>, %arg2: memref<4x1xf32, #tpu.memory_space<vmem>>, %arg3: memref<4x462xf32, #tpu.memory_space<vmem>>) attributes {dimension_semantics = [], scalar_prefetch = 0 : i64, scratch_operands = 0 : i64, tpu.core_type = #tpu.core_type<tc>} {
    %c0 = arith.constant 0 : index
    %c0_0 = arith.constant 0 : index
    %0 = vector.load %arg0[%c0, %c0_0] : memref<4x32xf32, #tpu.memory_space<vmem>>, vector<4x32xf32>
    %c0_1 = arith.constant 0 : index
    %c0_2 = arith.constant 0 : index
    %1 = vector.load %arg1[%c0_1, %c0_2] : memref<32x462xf32, #tpu.memory_space<vmem>>, vector<32x462xf32>
    %cst = arith.constant dense<0.000000e+00> : vector<4x462xf32>
    %2 = tpu.matmul %0, %1, %cst {dimension_numbers = #tpu.dot_dimension_numbers<[1], [0], [0], [1], [0, 0, 1, 1], [], []>} : vector<4x32xf32>, vector<32x462xf32>, vector<4x462xf32> -> vector<4x462xf32>
    %c0_3 = arith.constant 0 : index
    %c0_4 = arith.constant 0 : index
    %3 = vector.load %arg2[%c0_3, %c0_4] : memref<4x1xf32, #tpu.memory_space<vmem>>, vector<4x1xf32>
    %4 = vector.broadcast %3 : vector<4x1xf32> to vector<4x462xf32>
    %5 = arith.addf %2, %4 : vector<4x462xf32>
    %cst_5 = arith.constant 0.000000e+00 : f32
    %6 = vector.broadcast %cst_5 : f32 to vector<4x462xf32>
    %7 = arith.maximumf %5, %6 : vector<4x462xf32>
    %c0_6 = arith.constant 0 : index
    %c0_7 = arith.constant 0 : index
    %8 = vector.load %arg3[%c0_6, %c0_7] : memref<4x462xf32, #tpu.memory_space<vmem>>, vector<4x462xf32>
    tpu.vector_store %arg3[%c0_6, %c0_7], %7 {strides = array<i32>} : memref<4x462xf32, #tpu.memory_space<vmem>>, vector<4x462xf32>,
    return
  }
}

module attributes {stable_mosaic.version = 11 : i64} {
  func.func @_conv_mm_kernel(%arg0: memref<4x32xf32, #tpu.memory_space<vmem>>, %arg1: memref<32x720xf32, #tpu.memory_space<vmem>>, %arg2: memref<4x1xf32, #tpu.memory_space<vmem>>, %arg3: memref<4x720xf32, #tpu.memory_space<vmem>>) attributes {dimension_semantics = [], scalar_prefetch = 0 : i64, scratch_operands = 0 : i64, tpu.core_type = #tpu.core_type<tc>} {
    %c0 = arith.constant 0 : index
    %c0_0 = arith.constant 0 : index
    %0 = vector.load %arg0[%c0, %c0_0] : memref<4x32xf32, #tpu.memory_space<vmem>>, vector<4x32xf32>
    %c0_1 = arith.constant 0 : index
    %c0_2 = arith.constant 0 : index
    %1 = vector.load %arg1[%c0_1, %c0_2] : memref<32x720xf32, #tpu.memory_space<vmem>>, vector<32x720xf32>
    %cst = arith.constant dense<0.000000e+00> : vector<4x720xf32>
    %2 = tpu.matmul %0, %1, %cst {dimension_numbers = #tpu.dot_dimension_numbers<[1], [0], [0], [1], [0, 0, 1, 1], [], []>} : vector<4x32xf32>, vector<32x720xf32>, vector<4x720xf32> -> vector<4x720xf32>
    %c0_3 = arith.constant 0 : index
    %c0_4 = arith.constant 0 : index
    %3 = vector.load %arg2[%c0_3, %c0_4] : memref<4x1xf32, #tpu.memory_space<vmem>>, vector<4x1xf32>
    %4 = vector.broadcast %3 : vector<4x1xf32> to vector<4x720xf32>
    %5 = arith.addf %2, %4 : vector<4x720xf32>
    %cst_5 = arith.constant 0.000000e+00 : f32
    %6 = vector.broadcast %cst_5 : f32 to vector<4x720xf32>
    %7 = arith.maximumf %5, %6 : vector<4x720xf32>
    %c0_6 = arith.constant 0 : index
    %c0_7 = arith.constant 0 : index
    %8 = vector.load %arg3[%c0_6, %c0_7] : memref<4x720xf32, #tpu.memory_space<vmem>>, vector<4x720xf32>
    tpu.vector_store %arg3[%c0_6, %c0_7], %7 {strides = array<i32>} : memref<4x720xf32, #tpu.memory_space<vmem>>, vector<4x720xf32>,
    return
  }
}

module attributes {stable_mosaic.version = 11 : i64} {
  func.func @_conv_mm_kernel(%arg0: memref<4x108xf32, #tpu.memory_space<vmem>>, %arg1: memref<108x720xf32, #tpu.memory_space<vmem>>, %arg2: memref<4x1xf32, #tpu.memory_space<vmem>>, %arg3: memref<4x720xf32, #tpu.memory_space<vmem>>) attributes {dimension_semantics = [], scalar_prefetch = 0 : i64, scratch_operands = 0 : i64, tpu.core_type = #tpu.core_type<tc>} {
    %c0 = arith.constant 0 : index
    %c0_0 = arith.constant 0 : index
    %0 = vector.load %arg0[%c0, %c0_0] : memref<4x108xf32, #tpu.memory_space<vmem>>, vector<4x108xf32>
    %c0_1 = arith.constant 0 : index
    %c0_2 = arith.constant 0 : index
    %1 = vector.load %arg1[%c0_1, %c0_2] : memref<108x720xf32, #tpu.memory_space<vmem>>, vector<108x720xf32>
    %cst = arith.constant dense<0.000000e+00> : vector<4x720xf32>
    %2 = tpu.matmul %0, %1, %cst {dimension_numbers = #tpu.dot_dimension_numbers<[1], [0], [0], [1], [0, 0, 1, 1], [], []>} : vector<4x108xf32>, vector<108x720xf32>, vector<4x720xf32> -> vector<4x720xf32>
    %c0_3 = arith.constant 0 : index
    %c0_4 = arith.constant 0 : index
    %3 = vector.load %arg2[%c0_3, %c0_4] : memref<4x1xf32, #tpu.memory_space<vmem>>, vector<4x1xf32>
    %4 = vector.broadcast %3 : vector<4x1xf32> to vector<4x720xf32>
    %5 = arith.addf %2, %4 : vector<4x720xf32>
    %cst_5 = arith.constant 0.000000e+00 : f32
    %6 = vector.broadcast %cst_5 : f32 to vector<4x720xf32>
    %7 = arith.maximumf %5, %6 : vector<4x720xf32>
    %c0_6 = arith.constant 0 : index
    %c0_7 = arith.constant 0 : index
    %8 = vector.load %arg3[%c0_6, %c0_7] : memref<4x720xf32, #tpu.memory_space<vmem>>, vector<4x720xf32>
    tpu.vector_store %arg3[%c0_6, %c0_7], %7 {strides = array<i32>} : memref<4x720xf32, #tpu.memory_space<vmem>>, vector<4x720xf32>,
    return
  }
}

module attributes {stable_mosaic.version = 11 : i64} {
  func.func @_conv_mm_kernel(%arg0: memref<4x108xf32, #tpu.memory_space<vmem>>, %arg1: memref<108x360xf32, #tpu.memory_space<vmem>>, %arg2: memref<4x1xf32, #tpu.memory_space<vmem>>, %arg3: memref<4x360xf32, #tpu.memory_space<vmem>>) attributes {dimension_semantics = [], scalar_prefetch = 0 : i64, scratch_operands = 0 : i64, tpu.core_type = #tpu.core_type<tc>} {
    %c0 = arith.constant 0 : index
    %c0_0 = arith.constant 0 : index
    %0 = vector.load %arg0[%c0, %c0_0] : memref<4x108xf32, #tpu.memory_space<vmem>>, vector<4x108xf32>
    %c0_1 = arith.constant 0 : index
    %c0_2 = arith.constant 0 : index
    %1 = vector.load %arg1[%c0_1, %c0_2] : memref<108x360xf32, #tpu.memory_space<vmem>>, vector<108x360xf32>
    %cst = arith.constant dense<0.000000e+00> : vector<4x360xf32>
    %2 = tpu.matmul %0, %1, %cst {dimension_numbers = #tpu.dot_dimension_numbers<[1], [0], [0], [1], [0, 0, 1, 1], [], []>} : vector<4x108xf32>, vector<108x360xf32>, vector<4x360xf32> -> vector<4x360xf32>
    %c0_3 = arith.constant 0 : index
    %c0_4 = arith.constant 0 : index
    %3 = vector.load %arg2[%c0_3, %c0_4] : memref<4x1xf32, #tpu.memory_space<vmem>>, vector<4x1xf32>
    %4 = vector.broadcast %3 : vector<4x1xf32> to vector<4x360xf32>
    %5 = arith.addf %2, %4 : vector<4x360xf32>
    %cst_5 = arith.constant 0.000000e+00 : f32
    %6 = vector.broadcast %cst_5 : f32 to vector<4x360xf32>
    %7 = arith.maximumf %5, %6 : vector<4x360xf32>
    %c0_6 = arith.constant 0 : index
    %c0_7 = arith.constant 0 : index
    %8 = vector.load %arg3[%c0_6, %c0_7] : memref<4x360xf32, #tpu.memory_space<vmem>>, vector<4x360xf32>
    tpu.vector_store %arg3[%c0_6, %c0_7], %7 {strides = array<i32>} : memref<4x360xf32, #tpu.memory_space<vmem>>, vector<4x360xf32>,
    return
  }
}

module attributes {stable_mosaic.version = 11 : i64} {
  func.func @_tail_kernel(%arg0: memref<4x360xf32, #tpu.memory_space<vmem>>, %arg1: memref<4x5xf32, #tpu.memory_space<vmem>>, %arg2: memref<360x5xf32, #tpu.memory_space<vmem>>, %arg3: memref<1x5xf32, #tpu.memory_space<vmem>>, %arg4: memref<3x5x5xf32, #tpu.memory_space<vmem>>, %arg5: memref<3x4x4xf32, #tpu.memory_space<vmem>>, %arg6: memref<3x4x4xf32, #tpu.memory_space<vmem>>, %arg7: memref<4x1xf32, #tpu.memory_space<vmem>>, %arg8: memref<5x16xf32, #tpu.memory_space<vmem>>, %arg9: memref<1x16xf32, #tpu.memory_space<vmem>>, %arg10: memref<16x32xf32, #tpu.memory_space<vmem>>, %arg11: memref<1x32xf32, #tpu.memory_space<vmem>>, %arg12: memref<4x32x32xf32, #tpu.memory_space<vmem>>, %arg13: memref<4x32x32xf32, #tpu.memory_space<vmem>>, %arg14: memref<4x1x32xf32, #tpu.memory_space<vmem>>, %arg15: memref<32x7xf32, #tpu.memory_space<vmem>>, %arg16: memref<1x7xf32, #tpu.memory_space<vmem>>, %arg17: memref<1x32xf32, #tpu.memory_space<vmem>>, %arg18: memref<1x32xf32, #tpu.memory_space<vmem>>, %arg19: memref<1x1xf32, #tpu.memory_space<vmem>>, %arg20: memref<1x6xf32, #tpu.memory_space<vmem>>, %arg21: memref<1x32xf32, #tpu.memory_space<vmem>>, %arg22: memref<1x32xf32, #tpu.memory_space<vmem>>) attributes {dimension_semantics = [], scalar_prefetch = 0 : i64, scratch_operands = 0 : i64, tpu.core_type = #tpu.core_type<tc>} {
    %c0 = arith.constant 0 : index
    %c0_0 = arith.constant 0 : index
    %0 = vector.load %arg0[%c0, %c0_0] : memref<4x360xf32, #tpu.memory_space<vmem>>, vector<4x360xf32>
    %c0_1 = arith.constant 0 : index
    %c0_2 = arith.constant 0 : index
    %1 = vector.load %arg2[%c0_1, %c0_2] : memref<360x5xf32, #tpu.memory_space<vmem>>, vector<360x5xf32>
    %cst = arith.constant dense<0.000000e+00> : vector<4x5xf32>
    %2 = tpu.matmul %0, %1, %cst {dimension_numbers = #tpu.dot_dimension_numbers<[1], [0], [0], [1], [0, 0, 1, 1], [], []>} : vector<4x360xf32>, vector<360x5xf32>, vector<4x5xf32> -> vector<4x5xf32>
    %c0_3 = arith.constant 0 : index
    %c0_4 = arith.constant 0 : index
    %3 = vector.load %arg3[%c0_3, %c0_4] : memref<1x5xf32, #tpu.memory_space<vmem>>, vector<1x5xf32>
    %4 = vector.broadcast %3 : vector<1x5xf32> to vector<4x5xf32>
    %5 = arith.addf %2, %4 : vector<4x5xf32>
    %c0_5 = arith.constant 0 : index
    %c0_6 = arith.constant 0 : index
    %6 = vector.load %arg1[%c0_5, %c0_6] : memref<4x5xf32, #tpu.memory_space<vmem>>, vector<4x5xf32>
    %c0_7 = arith.constant 0 : index
    %c0_8 = arith.constant 0 : index
    %c0_9 = arith.constant 0 : index
    %7 = vector.load %arg4[%c0_7, %c0_8, %c0_9] : memref<3x5x5xf32, #tpu.memory_space<vmem>>, vector<1x5x5xf32>
    %8 = vector.shape_cast %7 : vector<1x5x5xf32> to vector<5x5xf32>
    %cst_10 = arith.constant dense<0.000000e+00> : vector<4x5xf32>
    %9 = tpu.matmul %5, %8, %cst_10 {dimension_numbers = #tpu.dot_dimension_numbers<[1], [0], [0], [1], [0, 0, 1, 1], [], []>} : vector<4x5xf32>, vector<5x5xf32>, vector<4x5xf32> -> vector<4x5xf32>
    %cst_11 = arith.constant dense<0.000000e+00> : vector<4x5xf32>
    %10 = tpu.matmul %6, %8, %cst_11 {dimension_numbers = #tpu.dot_dimension_numbers<[1], [0], [0], [1], [0, 0, 1, 1], [], []>} : vector<4x5xf32>, vector<5x5xf32>, vector<4x5xf32> -> vector<4x5xf32>
    %c0_12 = arith.constant 0 : index
    %c0_13 = arith.constant 0 : index
    %c0_14 = arith.constant 0 : index
    %11 = vector.load %arg5[%c0_12, %c0_13, %c0_14] : memref<3x4x4xf32, #tpu.memory_space<vmem>>, vector<1x4x4xf32>
    %12 = vector.shape_cast %11 : vector<1x4x4xf32> to vector<4x4xf32>
    %cst_15 = arith.constant dense<0.000000e+00> : vector<4x5xf32>
    %13 = tpu.matmul %12, %9, %cst_15 {dimension_numbers = #tpu.dot_dimension_numbers<[1], [0], [0], [1], [0, 0, 1, 1], [], []>} : vector<4x4xf32>, vector<4x5xf32>, vector<4x5xf32> -> vector<4x5xf32>
    %c0_16 = arith.constant 0 : index
    %c0_17 = arith.constant 0 : index
    %c0_18 = arith.constant 0 : index
    %14 = vector.load %arg6[%c0_16, %c0_17, %c0_18] : memref<3x4x4xf32, #tpu.memory_space<vmem>>, vector<1x4x4xf32>
    %15 = vector.shape_cast %14 : vector<1x4x4xf32> to vector<4x4xf32>
    %cst_19 = arith.constant dense<0.000000e+00> : vector<4x5xf32>
    %16 = tpu.matmul %15, %10, %cst_19 {dimension_numbers = #tpu.dot_dimension_numbers<[1], [0], [0], [1], [0, 0, 1, 1], [], []>} : vector<4x4xf32>, vector<4x5xf32>, vector<4x5xf32> -> vector<4x5xf32>
    %17 = arith.addf %13, %16 : vector<4x5xf32>
    %c1 = arith.constant 1 : index
    %c0_20 = arith.constant 0 : index
    %c0_21 = arith.constant 0 : index
    %18 = vector.load %arg4[%c1, %c0_20, %c0_21] : memref<3x5x5xf32, #tpu.memory_space<vmem>>, vector<1x5x5xf32>
    %19 = vector.shape_cast %18 : vector<1x5x5xf32> to vector<5x5xf32>
    %cst_22 = arith.constant dense<0.000000e+00> : vector<4x5xf32>
    %20 = tpu.matmul %5, %19, %cst_22 {dimension_numbers = #tpu.dot_dimension_numbers<[1], [0], [0], [1], [0, 0, 1, 1], [], []>} : vector<4x5xf32>, vector<5x5xf32>, vector<4x5xf32> -> vector<4x5xf32>
    %cst_23 = arith.constant dense<0.000000e+00> : vector<4x5xf32>
    %21 = tpu.matmul %6, %19, %cst_23 {dimension_numbers = #tpu.dot_dimension_numbers<[1], [0], [0], [1], [0, 0, 1, 1], [], []>} : vector<4x5xf32>, vector<5x5xf32>, vector<4x5xf32> -> vector<4x5xf32>
    %c1_24 = arith.constant 1 : index
    %c0_25 = arith.constant 0 : index
    %c0_26 = arith.constant 0 : index
    %22 = vector.load %arg5[%c1_24, %c0_25, %c0_26] : memref<3x4x4xf32, #tpu.memory_space<vmem>>, vector<1x4x4xf32>
    %23 = vector.shape_cast %22 : vector<1x4x4xf32> to vector<4x4xf32>
    %cst_27 = arith.constant dense<0.000000e+00> : vector<4x5xf32>
    %24 = tpu.matmul %23, %20, %cst_27 {dimension_numbers = #tpu.dot_dimension_numbers<[1], [0], [0], [1], [0, 0, 1, 1], [], []>} : vector<4x4xf32>, vector<4x5xf32>, vector<4x5xf32> -> vector<4x5xf32>
    %c1_28 = arith.constant 1 : index
    %c0_29 = arith.constant 0 : index
    %c0_30 = arith.constant 0 : index
    %25 = vector.load %arg6[%c1_28, %c0_29, %c0_30] : memref<3x4x4xf32, #tpu.memory_space<vmem>>, vector<1x4x4xf32>
    %26 = vector.shape_cast %25 : vector<1x4x4xf32> to vector<4x4xf32>
    %cst_31 = arith.constant dense<0.000000e+00> : vector<4x5xf32>
    %27 = tpu.matmul %26, %21, %cst_31 {dimension_numbers = #tpu.dot_dimension_numbers<[1], [0], [0], [1], [0, 0, 1, 1], [], []>} : vector<4x4xf32>, vector<4x5xf32>, vector<4x5xf32> -> vector<4x5xf32>
    %28 = arith.addf %24, %27 : vector<4x5xf32>
    %29 = arith.addf %17, %28 : vector<4x5xf32>
    %c2 = arith.constant 2 : index
    %c0_32 = arith.constant 0 : index
    %c0_33 = arith.constant 0 : index
    %30 = vector.load %arg4[%c2, %c0_32, %c0_33] : memref<3x5x5xf32, #tpu.memory_space<vmem>>, vector<1x5x5xf32>
    %31 = vector.shape_cast %30 : vector<1x5x5xf32> to vector<5x5xf32>
    %cst_34 = arith.constant dense<0.000000e+00> : vector<4x5xf32>
    %32 = tpu.matmul %5, %31, %cst_34 {dimension_numbers = #tpu.dot_dimension_numbers<[1], [0], [0], [1], [0, 0, 1, 1], [], []>} : vector<4x5xf32>, vector<5x5xf32>, vector<4x5xf32> -> vector<4x5xf32>
    %cst_35 = arith.constant dense<0.000000e+00> : vector<4x5xf32>
    %33 = tpu.matmul %6, %31, %cst_35 {dimension_numbers = #tpu.dot_dimension_numbers<[1], [0], [0], [1], [0, 0, 1, 1], [], []>} : vector<4x5xf32>, vector<5x5xf32>, vector<4x5xf32> -> vector<4x5xf32>
    %c2_36 = arith.constant 2 : index
    %c0_37 = arith.constant 0 : index
    %c0_38 = arith.constant 0 : index
    %34 = vector.load %arg5[%c2_36, %c0_37, %c0_38] : memref<3x4x4xf32, #tpu.memory_space<vmem>>, vector<1x4x4xf32>
    %35 = vector.shape_cast %34 : vector<1x4x4xf32> to vector<4x4xf32>
    %cst_39 = arith.constant dense<0.000000e+00> : vector<4x5xf32>
    %36 = tpu.matmul %35, %32, %cst_39 {dimension_numbers = #tpu.dot_dimension_numbers<[1], [0], [0], [1], [0, 0, 1, 1], [], []>} : vector<4x4xf32>, vector<4x5xf32>, vector<4x5xf32> -> vector<4x5xf32>
    %c2_40 = arith.constant 2 : index
    %c0_41 = arith.constant 0 : index
    %c0_42 = arith.constant 0 : index
    %37 = vector.load %arg6[%c2_40, %c0_41, %c0_42] : memref<3x4x4xf32, #tpu.memory_space<vmem>>, vector<1x4x4xf32>
    %38 = vector.shape_cast %37 : vector<1x4x4xf32> to vector<4x4xf32>
    %cst_43 = arith.constant dense<0.000000e+00> : vector<4x5xf32>
    %39 = tpu.matmul %38, %33, %cst_43 {dimension_numbers = #tpu.dot_dimension_numbers<[1], [0], [0], [1], [0, 0, 1, 1], [], []>} : vector<4x4xf32>, vector<4x5xf32>, vector<4x5xf32> -> vector<4x5xf32>
    %40 = arith.addf %36, %39 : vector<4x5xf32>
    %41 = arith.addf %29, %40 : vector<4x5xf32>
    %c0_44 = arith.constant 0 : index
    %c0_45 = arith.constant 0 : index
    %42 = vector.load %arg7[%c0_44, %c0_45] : memref<4x1xf32, #tpu.memory_space<vmem>>, vector<4x1xf32>
    %43 = vector.broadcast %42 : vector<4x1xf32> to vector<4x5xf32>
    %44 = arith.addf %41, %43 : vector<4x5xf32>
    %cst_46 = arith.constant 0.000000e+00 : f32
    %45 = vector.broadcast %cst_46 : f32 to vector<4x5xf32>
    %46 = arith.maximumf %44, %45 : vector<4x5xf32>
    %c0_47 = arith.constant 0 : index
    %c0_48 = arith.constant 0 : index
    %47 = vector.load %arg8[%c0_47, %c0_48] : memref<5x16xf32, #tpu.memory_space<vmem>>, vector<5x16xf32>
    %cst_49 = arith.constant dense<0.000000e+00> : vector<4x16xf32>
    %48 = tpu.matmul %46, %47, %cst_49 {dimension_numbers = #tpu.dot_dimension_numbers<[1], [0], [0], [1], [0, 0, 1, 1], [], []>} : vector<4x5xf32>, vector<5x16xf32>, vector<4x16xf32> -> vector<4x16xf32>
    %c0_50 = arith.constant 0 : index
    %c0_51 = arith.constant 0 : index
    %49 = vector.load %arg9[%c0_50, %c0_51] : memref<1x16xf32, #tpu.memory_space<vmem>>, vector<1x16xf32>
    %50 = vector.broadcast %49 : vector<1x16xf32> to vector<4x16xf32>
    %51 = arith.addf %48, %50 : vector<4x16xf32>
    %cst_52 = arith.constant 0.000000e+00 : f32
    %52 = vector.broadcast %cst_52 : f32 to vector<4x16xf32>
    %53 = arith.maximumf %51, %52 : vector<4x16xf32>
    %c0_53 = arith.constant 0 : index
    %c0_54 = arith.constant 0 : index
    %54 = vector.load %arg10[%c0_53, %c0_54] : memref<16x32xf32, #tpu.memory_space<vmem>>, vector<16x32xf32>
    %cst_55 = arith.constant dense<0.000000e+00> : vector<4x32xf32>
    %55 = tpu.matmul %53, %54, %cst_55 {dimension_numbers = #tpu.dot_dimension_numbers<[1], [0], [0], [1], [0, 0, 1, 1], [], []>} : vector<4x16xf32>, vector<16x32xf32>, vector<4x32xf32> -> vector<4x32xf32>
    %c0_56 = arith.constant 0 : index
    %c0_57 = arith.constant 0 : index
    %56 = vector.load %arg11[%c0_56, %c0_57] : memref<1x32xf32, #tpu.memory_space<vmem>>, vector<1x32xf32>
    %57 = vector.broadcast %56 : vector<1x32xf32> to vector<4x32xf32>
    %58 = arith.addf %55, %57 : vector<4x32xf32>
    %c0_58 = arith.constant 0 : index
    %c0_59 = arith.constant 0 : index
    %c0_60 = arith.constant 0 : index
    %59 = vector.load %arg12[%c0_58, %c0_59, %c0_60] : memref<4x32x32xf32, #tpu.memory_space<vmem>>, vector<1x32x32xf32>
    %60 = vector.shape_cast %59 : vector<1x32x32xf32> to vector<32x32xf32>
    %c1_61 = arith.constant 1 : index
    %c0_62 = arith.constant 0 : index
    %c0_63 = arith.constant 0 : index
    %61 = vector.load %arg12[%c1_61, %c0_62, %c0_63] : memref<4x32x32xf32, #tpu.memory_space<vmem>>, vector<1x32x32xf32>
    %62 = vector.shape_cast %61 : vector<1x32x32xf32> to vector<32x32xf32>
    %c2_64 = arith.constant 2 : index
    %c0_65 = arith.constant 0 : index
    %c0_66 = arith.constant 0 : index
    %63 = vector.load %arg12[%c2_64, %c0_65, %c0_66] : memref<4x32x32xf32, #tpu.memory_space<vmem>>, vector<1x32x32xf32>
    %64 = vector.shape_cast %63 : vector<1x32x32xf32> to vector<32x32xf32>
    %c3 = arith.constant 3 : index
    %c0_67 = arith.constant 0 : index
    %c0_68 = arith.constant 0 : index
    %65 = vector.load %arg12[%c3, %c0_67, %c0_68] : memref<4x32x32xf32, #tpu.memory_space<vmem>>, vector<1x32x32xf32>
    %66 = vector.shape_cast %65 : vector<1x32x32xf32> to vector<32x32xf32>
    %c0_69 = arith.constant 0 : index
    %c0_70 = arith.constant 0 : index
    %c0_71 = arith.constant 0 : index
    %67 = vector.load %arg13[%c0_69, %c0_70, %c0_71] : memref<4x32x32xf32, #tpu.memory_space<vmem>>, vector<1x32x32xf32>
    %68 = vector.shape_cast %67 : vector<1x32x32xf32> to vector<32x32xf32>
    %c1_72 = arith.constant 1 : index
    %c0_73 = arith.constant 0 : index
    %c0_74 = arith.constant 0 : index
    %69 = vector.load %arg13[%c1_72, %c0_73, %c0_74] : memref<4x32x32xf32, #tpu.memory_space<vmem>>, vector<1x32x32xf32>
    %70 = vector.shape_cast %69 : vector<1x32x32xf32> to vector<32x32xf32>
    %c2_75 = arith.constant 2 : index
    %c0_76 = arith.constant 0 : index
    %c0_77 = arith.constant 0 : index
    %71 = vector.load %arg13[%c2_75, %c0_76, %c0_77] : memref<4x32x32xf32, #tpu.memory_space<vmem>>, vector<1x32x32xf32>
    %72 = vector.shape_cast %71 : vector<1x32x32xf32> to vector<32x32xf32>
    %c3_78 = arith.constant 3 : index
    %c0_79 = arith.constant 0 : index
    %c0_80 = arith.constant 0 : index
    %73 = vector.load %arg13[%c3_78, %c0_79, %c0_80] : memref<4x32x32xf32, #tpu.memory_space<vmem>>, vector<1x32x32xf32>
    %74 = vector.shape_cast %73 : vector<1x32x32xf32> to vector<32x32xf32>
    %c0_81 = arith.constant 0 : index
    %c0_82 = arith.constant 0 : index
    %c0_83 = arith.constant 0 : index
    %75 = vector.load %arg14[%c0_81, %c0_82, %c0_83] : memref<4x1x32xf32, #tpu.memory_space<vmem>>, vector<1x1x32xf32>
    %76 = vector.shape_cast %75 : vector<1x1x32xf32> to vector<1x32xf32>
    %c1_84 = arith.constant 1 : index
    %c0_85 = arith.constant 0 : index
    %c0_86 = arith.constant 0 : index
    %77 = vector.load %arg14[%c1_84, %c0_85, %c0_86] : memref<4x1x32xf32, #tpu.memory_space<vmem>>, vector<1x1x32xf32>
    %78 = vector.shape_cast %77 : vector<1x1x32xf32> to vector<1x32xf32>
    %c2_87 = arith.constant 2 : index
    %c0_88 = arith.constant 0 : index
    %c0_89 = arith.constant 0 : index
    %79 = vector.load %arg14[%c2_87, %c0_88, %c0_89] : memref<4x1x32xf32, #tpu.memory_space<vmem>>, vector<1x1x32xf32>
    %80 = vector.shape_cast %79 : vector<1x1x32xf32> to vector<1x32xf32>
    %c3_90 = arith.constant 3 : index
    %c0_91 = arith.constant 0 : index
    %c0_92 = arith.constant 0 : index
    %81 = vector.load %arg14[%c3_90, %c0_91, %c0_92] : memref<4x1x32xf32, #tpu.memory_space<vmem>>, vector<1x1x32xf32>
    %82 = vector.shape_cast %81 : vector<1x1x32xf32> to vector<1x32xf32>
    %c0_93 = arith.constant 0 : index
    %c0_94 = arith.constant 0 : index
    %83 = vector.load %arg17[%c0_93, %c0_94] : memref<1x32xf32, #tpu.memory_space<vmem>>, vector<1x32xf32>
    %c0_95 = arith.constant 0 : index
    %c0_96 = arith.constant 0 : index
    %84 = vector.load %arg18[%c0_95, %c0_96] : memref<1x32xf32, #tpu.memory_space<vmem>>, vector<1x32xf32>
    %85 = vector.extract_strided_slice %58 {offsets = [0, 0], sizes = [1, 32], strides = [1, 1]} : vector<4x32xf32> to vector<1x32xf32>
    %cst_97 = arith.constant dense<0.000000e+00> : vector<1x32xf32>
    %86 = tpu.matmul %85, %60, %cst_97 {dimension_numbers = #tpu.dot_dimension_numbers<[1], [0], [0], [1], [0, 0, 1, 1], [], []>} : vector<1x32xf32>, vector<32x32xf32>, vector<1x32xf32> -> vector<1x32xf32>
    %cst_98 = arith.constant dense<0.000000e+00> : vector<1x32xf32>
    %87 = tpu.matmul %83, %68, %cst_98 {dimension_numbers = #tpu.dot_dimension_numbers<[1], [0], [0], [1], [0, 0, 1, 1], [], []>} : vector<1x32xf32>, vector<32x32xf32>, vector<1x32xf32> -> vector<1x32xf32>
    %88 = arith.addf %86, %87 : vector<1x32xf32>
    %89 = arith.addf %88, %76 : vector<1x32xf32>
    %cst_99 = arith.constant dense<0.000000e+00> : vector<1x32xf32>
    %90 = tpu.matmul %85, %62, %cst_99 {dimension_numbers = #tpu.dot_dimension_numbers<[1], [0], [0], [1], [0, 0, 1, 1], [], []>} : vector<1x32xf32>, vector<32x32xf32>, vector<1x32xf32> -> vector<1x32xf32>
    %cst_100 = arith.constant dense<0.000000e+00> : vector<1x32xf32>
    %91 = tpu.matmul %83, %70, %cst_100 {dimension_numbers = #tpu.dot_dimension_numbers<[1], [0], [0], [1], [0, 0, 1, 1], [], []>} : vector<1x32xf32>, vector<32x32xf32>, vector<1x32xf32> -> vector<1x32xf32>
    %92 = arith.addf %90, %91 : vector<1x32xf32>
    %93 = arith.addf %92, %78 : vector<1x32xf32>
    %cst_101 = arith.constant dense<0.000000e+00> : vector<1x32xf32>
    %94 = tpu.matmul %85, %64, %cst_101 {dimension_numbers = #tpu.dot_dimension_numbers<[1], [0], [0], [1], [0, 0, 1, 1], [], []>} : vector<1x32xf32>, vector<32x32xf32>, vector<1x32xf32> -> vector<1x32xf32>
    %cst_102 = arith.constant dense<0.000000e+00> : vector<1x32xf32>
    %95 = tpu.matmul %83, %72, %cst_102 {dimension_numbers = #tpu.dot_dimension_numbers<[1], [0], [0], [1], [0, 0, 1, 1], [], []>} : vector<1x32xf32>, vector<32x32xf32>, vector<1x32xf32> -> vector<1x32xf32>
    %96 = arith.addf %94, %95 : vector<1x32xf32>
    %97 = arith.addf %96, %80 : vector<1x32xf32>
    %cst_103 = arith.constant dense<0.000000e+00> : vector<1x32xf32>
    %98 = tpu.matmul %85, %66, %cst_103 {dimension_numbers = #tpu.dot_dimension_numbers<[1], [0], [0], [1], [0, 0, 1, 1], [], []>} : vector<1x32xf32>, vector<32x32xf32>, vector<1x32xf32> -> vector<1x32xf32>
    %cst_104 = arith.constant dense<0.000000e+00> : vector<1x32xf32>
    %99 = tpu.matmul %83, %74, %cst_104 {dimension_numbers = #tpu.dot_dimension_numbers<[1], [0], [0], [1], [0, 0, 1, 1], [], []>} : vector<1x32xf32>, vector<32x32xf32>, vector<1x32xf32> -> vector<1x32xf32>
    %100 = arith.addf %98, %99 : vector<1x32xf32>
    %101 = arith.addf %100, %82 : vector<1x32xf32>
    %102 = arith.negf %89 : vector<1x32xf32>
    %103 = math.exp %102 : vector<1x32xf32>
    %cst_105 = arith.constant 1.000000e+00 : f32
    %104 = vector.broadcast %cst_105 : f32 to vector<1x32xf32>
    %105 = arith.addf %104, %103 : vector<1x32xf32>
    %106 = arith.divf %104, %105 : vector<1x32xf32>
    %107 = arith.negf %93 : vector<1x32xf32>
    %108 = math.exp %107 : vector<1x32xf32>
    %cst_106 = arith.constant 1.000000e+00 : f32
    %109 = vector.broadcast %cst_106 : f32 to vector<1x32xf32>
    %110 = arith.addf %109, %108 : vector<1x32xf32>
    %111 = arith.divf %109, %110 : vector<1x32xf32>
    %112 = math.tanh %97 : vector<1x32xf32>
    %113 = arith.negf %101 : vector<1x32xf32>
    %114 = math.exp %113 : vector<1x32xf32>
    %cst_107 = arith.constant 1.000000e+00 : f32
    %115 = vector.broadcast %cst_107 : f32 to vector<1x32xf32>
    %116 = arith.addf %115, %114 : vector<1x32xf32>
    %117 = arith.divf %115, %116 : vector<1x32xf32>
    %118 = arith.mulf %111, %84 : vector<1x32xf32>
    %119 = arith.mulf %106, %112 : vector<1x32xf32>
    %120 = arith.addf %118, %119 : vector<1x32xf32>
    %121 = math.tanh %120 : vector<1x32xf32>
    %122 = arith.mulf %117, %121 : vector<1x32xf32>
    %123 = vector.extract_strided_slice %58 {offsets = [1, 0], sizes = [1, 32], strides = [1, 1]} : vector<4x32xf32> to vector<1x32xf32>
    %cst_108 = arith.constant dense<0.000000e+00> : vector<1x32xf32>
    %124 = tpu.matmul %123, %60, %cst_108 {dimension_numbers = #tpu.dot_dimension_numbers<[1], [0], [0], [1], [0, 0, 1, 1], [], []>} : vector<1x32xf32>, vector<32x32xf32>, vector<1x32xf32> -> vector<1x32xf32>
    %cst_109 = arith.constant dense<0.000000e+00> : vector<1x32xf32>
    %125 = tpu.matmul %122, %68, %cst_109 {dimension_numbers = #tpu.dot_dimension_numbers<[1], [0], [0], [1], [0, 0, 1, 1], [], []>} : vector<1x32xf32>, vector<32x32xf32>, vector<1x32xf32> -> vector<1x32xf32>
    %126 = arith.addf %124, %125 : vector<1x32xf32>
    %127 = arith.addf %126, %76 : vector<1x32xf32>
    %cst_110 = arith.constant dense<0.000000e+00> : vector<1x32xf32>
    %128 = tpu.matmul %123, %62, %cst_110 {dimension_numbers = #tpu.dot_dimension_numbers<[1], [0], [0], [1], [0, 0, 1, 1], [], []>} : vector<1x32xf32>, vector<32x32xf32>, vector<1x32xf32> -> vector<1x32xf32>
    %cst_111 = arith.constant dense<0.000000e+00> : vector<1x32xf32>
    %129 = tpu.matmul %122, %70, %cst_111 {dimension_numbers = #tpu.dot_dimension_numbers<[1], [0], [0], [1], [0, 0, 1, 1], [], []>} : vector<1x32xf32>, vector<32x32xf32>, vector<1x32xf32> -> vector<1x32xf32>
    %130 = arith.addf %128, %129 : vector<1x32xf32>
    %131 = arith.addf %130, %78 : vector<1x32xf32>
    %cst_112 = arith.constant dense<0.000000e+00> : vector<1x32xf32>
    %132 = tpu.matmul %123, %64, %cst_112 {dimension_numbers = #tpu.dot_dimension_numbers<[1], [0], [0], [1], [0, 0, 1, 1], [], []>} : vector<1x32xf32>, vector<32x32xf32>, vector<1x32xf32> -> vector<1x32xf32>
    %cst_113 = arith.constant dense<0.000000e+00> : vector<1x32xf32>
    %133 = tpu.matmul %122, %72, %cst_113 {dimension_numbers = #tpu.dot_dimension_numbers<[1], [0], [0], [1], [0, 0, 1, 1], [], []>} : vector<1x32xf32>, vector<32x32xf32>, vector<1x32xf32> -> vector<1x32xf32>
    %134 = arith.addf %132, %133 : vector<1x32xf32>
    %135 = arith.addf %134, %80 : vector<1x32xf32>
    %cst_114 = arith.constant dense<0.000000e+00> : vector<1x32xf32>
    %136 = tpu.matmul %123, %66, %cst_114 {dimension_numbers = #tpu.dot_dimension_numbers<[1], [0], [0], [1], [0, 0, 1, 1], [], []>} : vector<1x32xf32>, vector<32x32xf32>, vector<1x32xf32> -> vector<1x32xf32>
    %cst_115 = arith.constant dense<0.000000e+00> : vector<1x32xf32>
    %137 = tpu.matmul %122, %74, %cst_115 {dimension_numbers = #tpu.dot_dimension_numbers<[1], [0], [0], [1], [0, 0, 1, 1], [], []>} : vector<1x32xf32>, vector<32x32xf32>, vector<1x32xf32> -> vector<1x32xf32>
    %138 = arith.addf %136, %137 : vector<1x32xf32>
    %139 = arith.addf %138, %82 : vector<1x32xf32>
    %140 = arith.negf %127 : vector<1x32xf32>
    %141 = math.exp %140 : vector<1x32xf32>
    %cst_116 = arith.constant 1.000000e+00 : f32
    %142 = vector.broadcast %cst_116 : f32 to vector<1x32xf32>
    %143 = arith.addf %142, %141 : vector<1x32xf32>
    %144 = arith.divf %142, %143 : vector<1x32xf32>
    %145 = arith.negf %131 : vector<1x32xf32>
    %146 = math.exp %145 : vector<1x32xf32>
    %cst_117 = arith.constant 1.000000e+00 : f32
    %147 = vector.broadcast %cst_117 : f32 to vector<1x32xf32>
    %148 = arith.addf %147, %146 : vector<1x32xf32>
    %149 = arith.divf %147, %148 : vector<1x32xf32>
    %150 = math.tanh %135 : vector<1x32xf32>
    %151 = arith.negf %139 : vector<1x32xf32>
    %152 = math.exp %151 : vector<1x32xf32>
    %cst_118 = arith.constant 1.000000e+00 : f32
    %153 = vector.broadcast %cst_118 : f32 to vector<1x32xf32>
    %154 = arith.addf %153, %152 : vector<1x32xf32>
    %155 = arith.divf %153, %154 : vector<1x32xf32>
    %156 = arith.mulf %149, %120 : vector<1x32xf32>
    %157 = arith.mulf %144, %150 : vector<1x32xf32>
    %158 = arith.addf %156, %157 : vector<1x32xf32>
    %159 = math.tanh %158 : vector<1x32xf32>
    %160 = arith.mulf %155, %159 : vector<1x32xf32>
    %161 = vector.extract_strided_slice %58 {offsets = [2, 0], sizes = [1, 32], strides = [1, 1]} : vector<4x32xf32> to vector<1x32xf32>
    %cst_119 = arith.constant dense<0.000000e+00> : vector<1x32xf32>
    %162 = tpu.matmul %161, %60, %cst_119 {dimension_numbers = #tpu.dot_dimension_numbers<[1], [0], [0], [1], [0, 0, 1, 1], [], []>} : vector<1x32xf32>, vector<32x32xf32>, vector<1x32xf32> -> vector<1x32xf32>
    %cst_120 = arith.constant dense<0.000000e+00> : vector<1x32xf32>
    %163 = tpu.matmul %160, %68, %cst_120 {dimension_numbers = #tpu.dot_dimension_numbers<[1], [0], [0], [1], [0, 0, 1, 1], [], []>} : vector<1x32xf32>, vector<32x32xf32>, vector<1x32xf32> -> vector<1x32xf32>
    %164 = arith.addf %162, %163 : vector<1x32xf32>
    %165 = arith.addf %164, %76 : vector<1x32xf32>
    %cst_121 = arith.constant dense<0.000000e+00> : vector<1x32xf32>
    %166 = tpu.matmul %161, %62, %cst_121 {dimension_numbers = #tpu.dot_dimension_numbers<[1], [0], [0], [1], [0, 0, 1, 1], [], []>} : vector<1x32xf32>, vector<32x32xf32>, vector<1x32xf32> -> vector<1x32xf32>
    %cst_122 = arith.constant dense<0.000000e+00> : vector<1x32xf32>
    %167 = tpu.matmul %160, %70, %cst_122 {dimension_numbers = #tpu.dot_dimension_numbers<[1], [0], [0], [1], [0, 0, 1, 1], [], []>} : vector<1x32xf32>, vector<32x32xf32>, vector<1x32xf32> -> vector<1x32xf32>
    %168 = arith.addf %166, %167 : vector<1x32xf32>
    %169 = arith.addf %168, %78 : vector<1x32xf32>
    %cst_123 = arith.constant dense<0.000000e+00> : vector<1x32xf32>
    %170 = tpu.matmul %161, %64, %cst_123 {dimension_numbers = #tpu.dot_dimension_numbers<[1], [0], [0], [1], [0, 0, 1, 1], [], []>} : vector<1x32xf32>, vector<32x32xf32>, vector<1x32xf32> -> vector<1x32xf32>
    %cst_124 = arith.constant dense<0.000000e+00> : vector<1x32xf32>
    %171 = tpu.matmul %160, %72, %cst_124 {dimension_numbers = #tpu.dot_dimension_numbers<[1], [0], [0], [1], [0, 0, 1, 1], [], []>} : vector<1x32xf32>, vector<32x32xf32>, vector<1x32xf32> -> vector<1x32xf32>
    %172 = arith.addf %170, %171 : vector<1x32xf32>
    %173 = arith.addf %172, %80 : vector<1x32xf32>
    %cst_125 = arith.constant dense<0.000000e+00> : vector<1x32xf32>
    %174 = tpu.matmul %161, %66, %cst_125 {dimension_numbers = #tpu.dot_dimension_numbers<[1], [0], [0], [1], [0, 0, 1, 1], [], []>} : vector<1x32xf32>, vector<32x32xf32>, vector<1x32xf32> -> vector<1x32xf32>
    %cst_126 = arith.constant dense<0.000000e+00> : vector<1x32xf32>
    %175 = tpu.matmul %160, %74, %cst_126 {dimension_numbers = #tpu.dot_dimension_numbers<[1], [0], [0], [1], [0, 0, 1, 1], [], []>} : vector<1x32xf32>, vector<32x32xf32>, vector<1x32xf32> -> vector<1x32xf32>
    %176 = arith.addf %174, %175 : vector<1x32xf32>
    %177 = arith.addf %176, %82 : vector<1x32xf32>
    %178 = arith.negf %165 : vector<1x32xf32>
    %179 = math.exp %178 : vector<1x32xf32>
    %cst_127 = arith.constant 1.000000e+00 : f32
    %180 = vector.broadcast %cst_127 : f32 to vector<1x32xf32>
    %181 = arith.addf %180, %179 : vector<1x32xf32>
    %182 = arith.divf %180, %181 : vector<1x32xf32>
    %183 = arith.negf %169 : vector<1x32xf32>
    %184 = math.exp %183 : vector<1x32xf32>
    %cst_128 = arith.constant 1.000000e+00 : f32
    %185 = vector.broadcast %cst_128 : f32 to vector<1x32xf32>
    %186 = arith.addf %185, %184 : vector<1x32xf32>
    %187 = arith.divf %185, %186 : vector<1x32xf32>
    %188 = math.tanh %173 : vector<1x32xf32>
    %189 = arith.negf %177 : vector<1x32xf32>
    %190 = math.exp %189 : vector<1x32xf32>
    %cst_129 = arith.constant 1.000000e+00 : f32
    %191 = vector.broadcast %cst_129 : f32 to vector<1x32xf32>
    %192 = arith.addf %191, %190 : vector<1x32xf32>
    %193 = arith.divf %191, %192 : vector<1x32xf32>
    %194 = arith.mulf %187, %158 : vector<1x32xf32>
    %195 = arith.mulf %182, %188 : vector<1x32xf32>
    %196 = arith.addf %194, %195 : vector<1x32xf32>
    %197 = math.tanh %196 : vector<1x32xf32>
    %198 = arith.mulf %193, %197 : vector<1x32xf32>
    %199 = vector.extract_strided_slice %58 {offsets = [3, 0], sizes = [1, 32], strides = [1, 1]} : vector<4x32xf32> to vector<1x32xf32>
    %cst_130 = arith.constant dense<0.000000e+00> : vector<1x32xf32>
    %200 = tpu.matmul %199, %60, %cst_130 {dimension_numbers = #tpu.dot_dimension_numbers<[1], [0], [0], [1], [0, 0, 1, 1], [], []>} : vector<1x32xf32>, vector<32x32xf32>, vector<1x32xf32> -> vector<1x32xf32>
    %cst_131 = arith.constant dense<0.000000e+00> : vector<1x32xf32>
    %201 = tpu.matmul %198, %68, %cst_131 {dimension_numbers = #tpu.dot_dimension_numbers<[1], [0], [0], [1], [0, 0, 1, 1], [], []>} : vector<1x32xf32>, vector<32x32xf32>, vector<1x32xf32> -> vector<1x32xf32>
    %202 = arith.addf %200, %201 : vector<1x32xf32>
    %203 = arith.addf %202, %76 : vector<1x32xf32>
    %cst_132 = arith.constant dense<0.000000e+00> : vector<1x32xf32>
    %204 = tpu.matmul %199, %62, %cst_132 {dimension_numbers = #tpu.dot_dimension_numbers<[1], [0], [0], [1], [0, 0, 1, 1], [], []>} : vector<1x32xf32>, vector<32x32xf32>, vector<1x32xf32> -> vector<1x32xf32>
    %cst_133 = arith.constant dense<0.000000e+00> : vector<1x32xf32>
    %205 = tpu.matmul %198, %70, %cst_133 {dimension_numbers = #tpu.dot_dimension_numbers<[1], [0], [0], [1], [0, 0, 1, 1], [], []>} : vector<1x32xf32>, vector<32x32xf32>, vector<1x32xf32> -> vector<1x32xf32>
    %206 = arith.addf %204, %205 : vector<1x32xf32>
    %207 = arith.addf %206, %78 : vector<1x32xf32>
    %cst_134 = arith.constant dense<0.000000e+00> : vector<1x32xf32>
    %208 = tpu.matmul %199, %64, %cst_134 {dimension_numbers = #tpu.dot_dimension_numbers<[1], [0], [0], [1], [0, 0, 1, 1], [], []>} : vector<1x32xf32>, vector<32x32xf32>, vector<1x32xf32> -> vector<1x32xf32>
    %cst_135 = arith.constant dense<0.000000e+00> : vector<1x32xf32>
    %209 = tpu.matmul %198, %72, %cst_135 {dimension_numbers = #tpu.dot_dimension_numbers<[1], [0], [0], [1], [0, 0, 1, 1], [], []>} : vector<1x32xf32>, vector<32x32xf32>, vector<1x32xf32> -> vector<1x32xf32>
    %210 = arith.addf %208, %209 : vector<1x32xf32>
    %211 = arith.addf %210, %80 : vector<1x32xf32>
    %cst_136 = arith.constant dense<0.000000e+00> : vector<1x32xf32>
    %212 = tpu.matmul %199, %66, %cst_136 {dimension_numbers = #tpu.dot_dimension_numbers<[1], [0], [0], [1], [0, 0, 1, 1], [], []>} : vector<1x32xf32>, vector<32x32xf32>, vector<1x32xf32> -> vector<1x32xf32>
    %cst_137 = arith.constant dense<0.000000e+00> : vector<1x32xf32>
    %213 = tpu.matmul %198, %74, %cst_137 {dimension_numbers = #tpu.dot_dimension_numbers<[1], [0], [0], [1], [0, 0, 1, 1], [], []>} : vector<1x32xf32>, vector<32x32xf32>, vector<1x32xf32> -> vector<1x32xf32>
    %214 = arith.addf %212, %213 : vector<1x32xf32>
    %215 = arith.addf %214, %82 : vector<1x32xf32>
    %216 = arith.negf %203 : vector<1x32xf32>
    %217 = math.exp %216 : vector<1x32xf32>
    %cst_138 = arith.constant 1.000000e+00 : f32
    %218 = vector.broadcast %cst_138 : f32 to vector<1x32xf32>
    %219 = arith.addf %218, %217 : vector<1x32xf32>
    %220 = arith.divf %218, %219 : vector<1x32xf32>
    %221 = arith.negf %207 : vector<1x32xf32>
    %222 = math.exp %221 : vector<1x32xf32>
    %cst_139 = arith.constant 1.000000e+00 : f32
    %223 = vector.broadcast %cst_139 : f32 to vector<1x32xf32>
    %224 = arith.addf %223, %222 : vector<1x32xf32>
    %225 = arith.divf %223, %224 : vector<1x32xf32>
    %226 = math.tanh %211 : vector<1x32xf32>
    %227 = arith.negf %215 : vector<1x32xf32>
    %228 = math.exp %227 : vector<1x32xf32>
    %cst_140 = arith.constant 1.000000e+00 : f32
    %229 = vector.broadcast %cst_140 : f32 to vector<1x32xf32>
    %230 = arith.addf %229, %228 : vector<1x32xf32>
    %231 = arith.divf %229, %230 : vector<1x32xf32>
    %232 = arith.mulf %225, %196 : vector<1x32xf32>
    %233 = arith.mulf %220, %226 : vector<1x32xf32>
    %234 = arith.addf %232, %233 : vector<1x32xf32>
    %235 = math.tanh %234 : vector<1x32xf32>
    %236 = arith.mulf %231, %235 : vector<1x32xf32>
    %c0_141 = arith.constant 0 : index
    %c0_142 = arith.constant 0 : index
    %237 = vector.load %arg15[%c0_141, %c0_142] : memref<32x7xf32, #tpu.memory_space<vmem>>, vector<32x7xf32>
    %cst_143 = arith.constant dense<0.000000e+00> : vector<1x7xf32>
    %238 = tpu.matmul %236, %237, %cst_143 {dimension_numbers = #tpu.dot_dimension_numbers<[1], [0], [0], [1], [0, 0, 1, 1], [], []>} : vector<1x32xf32>, vector<32x7xf32>, vector<1x7xf32> -> vector<1x7xf32>
    %c0_144 = arith.constant 0 : index
    %c0_145 = arith.constant 0 : index
    %239 = vector.load %arg16[%c0_144, %c0_145] : memref<1x7xf32, #tpu.memory_space<vmem>>, vector<1x7xf32>
    %240 = arith.addf %238, %239 : vector<1x7xf32>
    %241 = vector.extract_strided_slice %240 {offsets = [0, 0], sizes = [1, 1], strides = [1, 1]} : vector<1x7xf32> to vector<1x1xf32>
    %c0_146 = arith.constant 0 : index
    %c0_147 = arith.constant 0 : index
    %242 = vector.load %arg19[%c0_146, %c0_147] : memref<1x1xf32, #tpu.memory_space<vmem>>, vector<1x1xf32>
    tpu.vector_store %arg19[%c0_146, %c0_147], %241 {strides = array<i32>} : memref<1x1xf32, #tpu.memory_space<vmem>>, vector<1x1xf32>,
    %243 = vector.extract_strided_slice %240 {offsets = [0, 1], sizes = [1, 6], strides = [1, 1]} : vector<1x7xf32> to vector<1x6xf32>
    %c0_148 = arith.constant 0 : index
    %c0_149 = arith.constant 0 : index
    %244 = vector.load %arg20[%c0_148, %c0_149] : memref<1x6xf32, #tpu.memory_space<vmem>>, vector<1x6xf32>
    tpu.vector_store %arg20[%c0_148, %c0_149], %243 {strides = array<i32>} : memref<1x6xf32, #tpu.memory_space<vmem>>, vector<1x6xf32>,
    %c0_150 = arith.constant 0 : index
    %c0_151 = arith.constant 0 : index
    %245 = vector.load %arg21[%c0_150, %c0_151] : memref<1x32xf32, #tpu.memory_space<vmem>>, vector<1x32xf32>
    tpu.vector_store %arg21[%c0_150, %c0_151], %236 {strides = array<i32>} : memref<1x32xf32, #tpu.memory_space<vmem>>, vector<1x32xf32>,
    %c0_152 = arith.constant 0 : index
    %c0_153 = arith.constant 0 : index
    %246 = vector.load %arg22[%c0_152, %c0_153] : memref<1x32xf32, #tpu.memory_space<vmem>>, vector<1x32xf32>
    tpu.vector_store %arg22[%c0_152, %c0_153], %234 {strides = array<i32>} : memref<1x32xf32, #tpu.memory_space<vmem>>, vector<1x32xf32>,
    return
  }
}

</mosaic_0001>

<llo_original>
// kernel: forward.5
$region0: #{forward.5}
  #allocation0 [shape = 'u32[]', space=smem, size = 0x4, offset = 0x4, fixed_abs, tag = 'smem constant byte address 0x4 - core index']
  #allocation1 [shape = 'u32[144,128]{1,0:T(1,128)}', space=vmem, size = 0x12000, scoped, tag = 'internal scratch']
  %s0 = inlined_call_operand.vmem [shape: f32[4,32], index: 0, kind: input, shape index: {}]
  %s1 = inlined_call_operand.vmem [shape: f32[32,462], index: 1, kind: input, shape index: {}]
  %s2 = inlined_call_operand.vmem [shape: f32[4,1], index: 2, kind: input, shape index: {}]
  %s3 = inlined_call_operand.vmem [shape: f32[4,462], index: 3, kind: output, shape index: {}]
  %s4 = sld [smem:[#allocation0]]
  $region22: #{forward.5} parent=0
    _
  %s6 = ssub.s32 1, %s4
  %s7 = scalar_select 0, %s6, %s4
  // Predicated region
  $region2: #{forward.5} parent=0 // pred_check
    _
  $region3: #{forward.5} parent=0 // pred_check_branch
    %9 = sbr.rel (0) target = $region5
  $region4: #{forward.5} parent=0 // pred_region
    _
  $region5: #{forward.5} parent=0 // pred_fallthru
    _
  // Predicated region
  $region6: #{forward.5} parent=0 // pred_check
    _
  $region7: #{forward.5} parent=0 // pred_check_branch
    %11 = sbr.rel (0) target = $region9
  $region8: #{forward.5} parent=0 // pred_region
    _
  $region9: #{forward.5} parent=0 // pred_fallthru
    _
  // Predicated region
  $region10: #{forward.5} parent=0 // pred_check
    _
  $region11: #{forward.5} parent=0 // pred_check_branch
    %13 = sbr.rel (0) target = $region13
  $region12: #{forward.5} parent=0 // pred_region
    _
  $region13: #{forward.5} parent=0 // pred_fallthru
    _
  %v14 = vld [vmem:[%s0] sm:$0xf]
  %v15 = vld [vmem:[%s1] sm:$0xff]
  %v16 = vld [vmem:[%s1 + $0x8] sm:$0xff]
  %v17 = vld [vmem:[%s1 + $0x10] sm:$0xff]
  %v18 = vld [vmem:[%s1 + $0x18] sm:$0xff]
  %v19 = vld [vmem:[%s1 + $0x20] sm:$0xff]
  %v20 = vld [vmem:[%s1 + $0x28] sm:$0xff]
  %v21 = vld [vmem:[%s1 + $0x30] sm:$0xff]
  %v22 = vld [vmem:[%s1 + $0x38] sm:$0xff]
  %v23 = vld [vmem:[%s1 + $0x40] sm:$0xff]
  %v24 = vld [vmem:[%s1 + $0x48] sm:$0xff]
  %v25 = vld [vmem:[%s1 + $0x50] sm:$0xff]
  %v26 = vld [vmem:[%s1 + $0x58] sm:$0xff]
  %v27 = vld [vmem:[%s1 + $0x60] sm:$0xff]
  %v28 = vld [vmem:[%s1 + $0x68] sm:$0xff]
  %v29 = vld [vmem:[%s1 + $0x70] sm:$0xff]
  %v30 = vld [vmem:[%s1 + $0x78] sm:$0xff]
  %v31 = vld [vmem:[%s2] sm:$0xf]
  %33 = vset.pattern.permute.xlu0 0
  %34 = vperm.xlu0 %33, %v31
  %v35 = vpop.permute.xlu0 %34
  %vm37 = vcmask 261120
  %v39 = vsel %vm37, %v14, 0
  %41 = vmatprep.subr.mxu0 %v16
  %42 = vmatpush1.msra.mxu0 %v15
  %43 = vmatprep.subr.mxu0 %v20
  %44 = vmatpush1.msra.mxu0 %v19
  %45 = vmatprep.subr.mxu0 %v24
  %46 = vmatpush1.msra.mxu0 %v23
  %47 = vmatprep.subr.mxu0 %v28
  %48 = vmatpush1.msra.mxu0 %v27
  %49 = vmatprep.subr.mxu0 0.0
  %50 = vmatpush1.msra.mxu0 0.0
  %51 = vmatprep.subr.mxu0 0.0
  %52 = vmatpush1.msra.mxu0 0.0
  %53 = vmatprep.subr.mxu0 0.0
  %54 = vmatpush1.msra.mxu0 0.0
  %55 = vmatprep.subr.mxu0 0.0
  %56 = vmatpush1.msra.mxu0 0.0
  %57 = vmatprep.subr.mxu0 0.0
  %58 = vmatpush1.msra.mxu0 0.0
  %59 = vmatprep.subr.mxu0 0.0
  %60 = vmatpush1.msra.mxu0 0.0
  %61 = vmatprep.subr.mxu0 0.0
  %62 = vmatpush1.msra.mxu0 0.0
  %63 = vmatprep.subr.mxu0 0.0
  %64 = vmatpush1.msra.mxu0 0.0
  %65 = vmatprep.subr.mxu0 0.0
  %66 = vmatpush1.msra.mxu0 0.0
  %67 = vmatprep.subr.mxu0 0.0
  %68 = vmatpush1.msra.mxu0 0.0
  %69 = vmatprep.subr.mxu0 0.0
  %70 = vmatpush1.msra.mxu0 0.0
  %71 = vmatprep.subr.mxu0 0.0
  %72 = vmatpush1.msra.mxu0 0.0
  %73 = vmatprep.subr.mxu0 0.0
  %74 = vmatpush1.msra.mxu0 0.0
  %75 = vmatprep.subr.mxu0 0.0
  %76 = vmatpush1.msra.mxu0 0.0
  %77 = vmatprep.subr.mxu0 0.0
  %78 = vmatpush1.msra.mxu0 0.0
  %79 = vmatprep.subr.mxu0 0.0
  %80 = vmatpush1.msra.mxu0 0.0
  %81 = vmatprep.subr.mxu0 0.0
  %82 = vmatpush1.msra.mxu0 0.0
  %83 = vmatprep.subr.mxu0 0.0
  %84 = vmatpush1.msra.mxu0 0.0
  %85 = vmatprep.subr.mxu0 0.0
  %86 = vmatpush1.msra.mxu0 0.0
  %87 = vmatprep.subr.mxu0 0.0
  %88 = vmatpush1.msra.mxu0 0.0
  %89 = vmatprep.subr.mxu0 0.0
  %90 = vmatpush1.msra.mxu0 0.0
  %91 = vmatprep.subr.mxu0 0.0
  %92 = vmatpush1.msra.mxu0 0.0
  %93 = vmatprep.subr.mxu0 0.0
  %94 = vmatpush1.msra.mxu0 0.0
  %95 = vmatprep.subr.mxu0 0.0
  %96 = vmatpush1.msra.mxu0 0.0
  %97 = vmatprep.subr.mxu0 0.0
  %98 = vmatpush1.msra.mxu0 0.0
  %99 = vmatprep.subr.mxu0 0.0
  %100 = vmatpush1.msra.mxu0 0.0
  %101 = vmatprep.subr.mxu0 0.0
  %102 = vmatpush1.msra.mxu0 0.0
  %103 = vmatprep.subr.mxu0 0.0
  %104 = vmatpush1.msra.mxu0 0.0
  %105 = vmatprep.mubr.f32.mxu0 0.0
  %106 = vmatmul.mubr.f32.gmra.mrb[0].mxu0 %v39
  %v107 = vpop.f32.mrb[0].mxu0
  %v108 = vadd.f32 %v35, %v107
  %v109 = vpop.f32.mrb[0].mxu0
  %v110 = vadd.f32 %v35, %v109
  %111 = vdwg.mxu0
  %112 = vmatprep.subr.mxu0 %v18
  %113 = vmatpush1.msra.mxu0 %v17
  %114 = vmatprep.subr.mxu0 %v22
  %115 = vmatpush1.msra.mxu0 %v21
  %116 = vmatprep.subr.mxu0 %v26
  %117 = vmatpush1.msra.mxu0 %v25
  %118 = vmatprep.subr.mxu0 %v30
  %119 = vmatpush1.msra.mxu0 %v29
  %120 = vmatprep.subr.mxu0 0.0
  %121 = vmatpush1.msra.mxu0 0.0
  %122 = vmatprep.subr.mxu0 0.0
  %123 = vmatpush1.msra.mxu0 0.0
  %124 = vmatprep.subr.mxu0 0.0
  %125 = vmatpush1.msra.mxu0 0.0
  %126 = vmatprep.subr.mxu0 0.0
  %127 = vmatpush1.msra.mxu0 0.0
  %128 = vmatprep.subr.mxu0 0.0
  %129 = vmatpush1.msra.mxu0 0.0
  %130 = vmatprep.subr.mxu0 0.0
  %131 = vmatpush1.msra.mxu0 0.0
  %132 = vmatprep.subr.mxu0 0.0
  %133 = vmatpush1.msra.mxu0 0.0
  %134 = vmatprep.subr.mxu0 0.0
  %135 = vmatpush1.msra.mxu0 0.0
  %136 = vmatprep.subr.mxu0 0.0
  %137 = vmatpush1.msra.mxu0 0.0
  %138 = vmatprep.subr.mxu0 0.0
  %139 = vmatpush1.msra.mxu0 0.0
  %140 = vmatprep.subr.mxu0 0.0
  %141 = vmatpush1.msra.mxu0 0.0
  %142 = vmatprep.subr.mxu0 0.0
  %143 = vmatpush1.msra.mxu0 0.0
  %144 = vmatprep.subr.mxu0 0.0
  %145 = vmatpush1.msra.mxu0 0.0
  %146 = vmatprep.subr.mxu0 0.0
  %147 = vmatpush1.msra.mxu0 0.0
  %148 = vmatprep.subr.mxu0 0.0
  %149 = vmatpush1.msra.mxu0 0.0
  %150 = vmatprep.subr.mxu0 0.0
  %151 = vmatpush1.msra.mxu0 0.0
  %152 = vmatprep.subr.mxu0 0.0
  %153 = vmatpush1.msra.mxu0 0.0
  %154 = vmatprep.subr.mxu0 0.0
  %155 = vmatpush1.msra.mxu0 0.0
  %156 = vmatprep.subr.mxu0 0.0
  %157 = vmatpush1.msra.mxu0 0.0
  %158 = vmatprep.subr.mxu0 0.0
  %159 = vmatpush1.msra.mxu0 0.0
  %160 = vmatprep.subr.mxu0 0.0
  %161 = vmatpush1.msra.mxu0 0.0
  %162 = vmatprep.subr.mxu0 0.0
  %163 = vmatpush1.msra.mxu0 0.0
  %164 = vmatprep.subr.mxu0 0.0
  %165 = vmatpush1.msra.mxu0 0.0
  %166 = vmatprep.subr.mxu0 0.0
  %167 = vmatpush1.msra.mxu0 0.0
  %168 = vmatprep.subr.mxu0 0.0
  %169 = vmatpush1.msra.mxu0 0.0
  %170 = vmatprep.subr.mxu0 0.0
  %171 = vmatpush1.msra.mxu0 0.0
  %172 = vmatprep.subr.mxu0 0.0
  %173 = vmatpush1.msra.mxu0 0.0
  %174 = vmatprep.subr.mxu0 0.0
  %175 = vmatpush1.msra.mxu0 0.0
  %176 = vmatprep.mubr.f32.mxu0 0.0
  %177 = vmatmul.mubr.f32.gmra.mrb[0].mxu0 %v39
  %v178 = vpop.f32.mrb[0].mxu0
  %v179 = vadd.f32 %v35, %v178
  %v180 = vpop.f32.mrb[0].mxu0
  %v181 = vadd.f32 %v35, %v180
  %182 = vdwg.mxu0
  %v183 = vmax.f32 %v108, 0.0
  %v184 = vmax.f32 %v110, 0.0
  %v185 = vmax.f32 %v179, 0.0
  %v186 = vmax.f32 %v181, 0.0
  %v191 = vcombine.low %v183, %v184
  %v192 = vcombine.low %v185, %v186
  %195 = vst [vmem:[%s3] sm:$0xff] %v191
  %vm196 = vcmask 1043456
  %vm197 = vcmask 637956
  %vm198 = vmor %vm197, %vm196
  %199 = vst.msk [vmem:[%s3 + $0x8] sm:$0xff] %vm198, %v192
  // Predicated region
  $region14: #{forward.5} parent=0 // pred_check
    _
  $region15: #{forward.5} parent=0 // pred_check_branch
    %201 = sbr.rel (0) target = $region17
  $region16: #{forward.5} parent=0 // pred_region
    _
  $region17: #{forward.5} parent=0 // pred_fallthru
    _
  // Predicated region
  $region18: #{forward.5} parent=0 // pred_check
    _
  $region19: #{forward.5} parent=0 // pred_check_branch
    %203 = sbr.rel (0) target = $region21
  $region20: #{forward.5} parent=0 // pred_region
    _
  $region21: #{forward.5} parent=0 // pred_fallthru
    _

// kernel: forward.6
$region0: #{forward.6}
  #allocation0 [shape = 'u32[]', space=smem, size = 0x4, offset = 0x4, fixed_abs, tag = 'smem constant byte address 0x4 - core index']
  #allocation1 [shape = 'u32[144,128]{1,0:T(1,128)}', space=vmem, size = 0x12000, scoped, tag = 'internal scratch']
  %s0 = inlined_call_operand.vmem [shape: f32[4,32], index: 0, kind: input, shape index: {}]
  %s1 = inlined_call_operand.vmem [shape: f32[32,720], index: 1, kind: input, shape index: {}]
  %s2 = inlined_call_operand.vmem [shape: f32[4,1], index: 2, kind: input, shape index: {}]
  %s3 = inlined_call_operand.vmem [shape: f32[4,720], index: 3, kind: output, shape index: {}]
  %s4 = sld [smem:[#allocation0]]
  $region22: #{forward.6} parent=0
    _
  %s6 = ssub.s32 1, %s4
  %s7 = scalar_select 0, %s6, %s4
  // Predicated region
  $region2: #{forward.6} parent=0 // pred_check
    _
  $region3: #{forward.6} parent=0 // pred_check_branch
    %9 = sbr.rel (0) target = $region5
  $region4: #{forward.6} parent=0 // pred_region
    _
  $region5: #{forward.6} parent=0 // pred_fallthru
    _
  // Predicated region
  $region6: #{forward.6} parent=0 // pred_check
    _
  $region7: #{forward.6} parent=0 // pred_check_branch
    %11 = sbr.rel (0) target = $region9
  $region8: #{forward.6} parent=0 // pred_region
    _
  $region9: #{forward.6} parent=0 // pred_fallthru
    _
  // Predicated region
  $region10: #{forward.6} parent=0 // pred_check
    _
  $region11: #{forward.6} parent=0 // pred_check_branch
    %13 = sbr.rel (0) target = $region13
  $region12: #{forward.6} parent=0 // pred_region
    _
  $region13: #{forward.6} parent=0 // pred_fallthru
    _
  %v14 = vld [vmem:[%s0] sm:$0xf]
  %v15 = vld [vmem:[%s1] sm:$0xff]
  %v16 = vld [vmem:[%s1 + $0x8] sm:$0xff]
  %v17 = vld [vmem:[%s1 + $0x10] sm:$0xff]
  %v18 = vld [vmem:[%s1 + $0x18] sm:$0xff]
  %v19 = vld [vmem:[%s1 + $0x20] sm:$0xff]
  %v20 = vld [vmem:[%s1 + $0x28] sm:$0xff]
  %v21 = vld [vmem:[%s1 + $0x30] sm:$0xff]
  %v22 = vld [vmem:[%s1 + $0x38] sm:$0xff]
  %v23 = vld [vmem:[%s1 + $0x40] sm:$0xff]
  %v24 = vld [vmem:[%s1 + $0x48] sm:$0xff]
  %v25 = vld [vmem:[%s1 + $0x50] sm:$0xff]
  %v26 = vld [vmem:[%s1 + $0x58] sm:$0xff]
  %v27 = vld [vmem:[%s1 + $0x60] sm:$0xff]
  %v28 = vld [vmem:[%s1 + $0x68] sm:$0xff]
  %v29 = vld [vmem:[%s1 + $0x70] sm:$0xff]
  %v30 = vld [vmem:[%s1 + $0x78] sm:$0xff]
  %v31 = vld [vmem:[%s1 + $0x80] sm:$0xff]
  %v32 = vld [vmem:[%s1 + $0x88] sm:$0xff]
  %v33 = vld [vmem:[%s1 + $0x90] sm:$0xff]
  %v34 = vld [vmem:[%s1 + $0x98] sm:$0xff]
  %v35 = vld [vmem:[%s1 + $0xa0] sm:$0xff]
  %v36 = vld [vmem:[%s1 + $0xa8] sm:$0xff]
  %v37 = vld [vmem:[%s1 + $0xb0] sm:$0xff]
  %v38 = vld [vmem:[%s1 + $0xb8] sm:$0xff]
  %v39 = vld [vmem:[%s2] sm:$0xf]
  %41 = vset.pattern.permute.xlu0 0
  %42 = vperm.xlu0 %41, %v39
  %v43 = vpop.permute.xlu0 %42
  %vm45 = vcmask 261120
  %v47 = vsel %vm45, %v14, 0
  %49 = vmatprep.subr.mxu0 %v16
  %50 = vmatpush1.msra.mxu0 %v15
  %51 = vmatprep.subr.mxu0 %v22
  %52 = vmatpush1.msra.mxu0 %v21
  %53 = vmatprep.subr.mxu0 %v28
  %54 = vmatpush1.msra.mxu0 %v27
  %55 = vmatprep.subr.mxu0 %v34
  %56 = vmatpush1.msra.mxu0 %v33
  %57 = vmatprep.subr.mxu0 0.0
  %58 = vmatpush1.msra.mxu0 0.0
  %59 = vmatprep.subr.mxu0 0.0
  %60 = vmatpush1.msra.mxu0 0.0
  %61 = vmatprep.subr.mxu0 0.0
  %62 = vmatpush1.msra.mxu0 0.0
  %63 = vmatprep.subr.mxu0 0.0
  %64 = vmatpush1.msra.mxu0 0.0
  %65 = vmatprep.subr.mxu0 0.0
  %66 = vmatpush1.msra.mxu0 0.0
  %67 = vmatprep.subr.mxu0 0.0
  %68 = vmatpush1.msra.mxu0 0.0
  %69 = vmatprep.subr.mxu0 0.0
  %70 = vmatpush1.msra.mxu0 0.0
  %71 = vmatprep.subr.mxu0 0.0
  %72 = vmatpush1.msra.mxu0 0.0
  %73 = vmatprep.subr.mxu0 0.0
  %74 = vmatpush1.msra.mxu0 0.0
  %75 = vmatprep.subr.mxu0 0.0
  %76 = vmatpush1.msra.mxu0 0.0
  %77 = vmatprep.subr.mxu0 0.0
  %78 = vmatpush1.msra.mxu0 0.0
  %79 = vmatprep.subr.mxu0 0.0
  %80 = vmatpush1.msra.mxu0 0.0
  %81 = vmatprep.subr.mxu0 0.0
  %82 = vmatpush1.msra.mxu0 0.0
  %83 = vmatprep.subr.mxu0 0.0
  %84 = vmatpush1.msra.mxu0 0.0
  %85 = vmatprep.subr.mxu0 0.0
  %86 = vmatpush1.msra.mxu0 0.0
  %87 = vmatprep.subr.mxu0 0.0
  %88 = vmatpush1.msra.mxu0 0.0
  %89 = vmatprep.subr.mxu0 0.0
  %90 = vmatpush1.msra.mxu0 0.0
  %91 = vmatprep.subr.mxu0 0.0
  %92 = vmatpush1.msra.mxu0 0.0
  %93 = vmatprep.subr.mxu0 0.0
  %94 = vmatpush1.msra.mxu0 0.0
  %95 = vmatprep.subr.mxu0 0.0
  %96 = vmatpush1.msra.mxu0 0.0
  %97 = vmatprep.subr.mxu0 0.0
  %98 = vmatpush1.msra.mxu0 0.0
  %99 = vmatprep.subr.mxu0 0.0
  %100 = vmatpush1.msra.mxu0 0.0
  %101 = vmatprep.subr.mxu0 0.0
  %102 = vmatpush1.msra.mxu0 0.0
  %103 = vmatprep.subr.mxu0 0.0
  %104 = vmatpush1.msra.mxu0 0.0
  %105 = vmatprep.subr.mxu0 0.0
  %106 = vmatpush1.msra.mxu0 0.0
  %107 = vmatprep.subr.mxu0 0.0
  %108 = vmatpush1.msra.mxu0 0.0
  %109 = vmatprep.subr.mxu0 0.0
  %110 = vmatpush1.msra.mxu0 0.0
  %111 = vmatprep.subr.mxu0 0.0
  %112 = vmatpush1.msra.mxu0 0.0
  %113 = vmatprep.mubr.f32.mxu0 0.0
  %114 = vmatmul.mubr.f32.gmra.mrb[0].mxu0 %v47
  %v115 = vpop.f32.mrb[0].mxu0
  %v116 = vadd.f32 %v43, %v115
  %v117 = vpop.f32.mrb[0].mxu0
  %v118 = vadd.f32 %v43, %v117
  %119 = vdwg.mxu0
  %120 = vmatprep.subr.mxu0 %v18
  %121 = vmatpush1.msra.mxu0 %v17
  %122 = vmatprep.subr.mxu0 %v24
  %123 = vmatpush1.msra.mxu0 %v23
  %124 = vmatprep.subr.mxu0 %v30
  %125 = vmatpush1.msra.mxu0 %v29
  %126 = vmatprep.subr.mxu0 %v36
  %127 = vmatpush1.msra.mxu0 %v35
  %128 = vmatprep.subr.mxu0 0.0
  %129 = vmatpush1.msra.mxu0 0.0
  %130 = vmatprep.subr.mxu0 0.0
  %131 = vmatpush1.msra.mxu0 0.0
  %132 = vmatprep.subr.mxu0 0.0
  %133 = vmatpush1.msra.mxu0 0.0
  %134 = vmatprep.subr.mxu0 0.0
  %135 = vmatpush1.msra.mxu0 0.0
  %136 = vmatprep.subr.mxu0 0.0
  %137 = vmatpush1.msra.mxu0 0.0
  %138 = vmatprep.subr.mxu0 0.0
  %139 = vmatpush1.msra.mxu0 0.0
  %140 = vmatprep.subr.mxu0 0.0
  %141 = vmatpush1.msra.mxu0 0.0
  %142 = vmatprep.subr.mxu0 0.0
  %143 = vmatpush1.msra.mxu0 0.0
  %144 = vmatprep.subr.mxu0 0.0
  %145 = vmatpush1.msra.mxu0 0.0
  %146 = vmatprep.subr.mxu0 0.0
  %147 = vmatpush1.msra.mxu0 0.0
  %148 = vmatprep.subr.mxu0 0.0
  %149 = vmatpush1.msra.mxu0 0.0
  %150 = vmatprep.subr.mxu0 0.0
  %151 = vmatpush1.msra.mxu0 0.0
  %152 = vmatprep.subr.mxu0 0.0
  %153 = vmatpush1.msra.mxu0 0.0
  %154 = vmatprep.subr.mxu0 0.0
  %155 = vmatpush1.msra.mxu0 0.0
  %156 = vmatprep.subr.mxu0 0.0
  %157 = vmatpush1.msra.mxu0 0.0
  %158 = vmatprep.subr.mxu0 0.0
  %159 = vmatpush1.msra.mxu0 0.0
  %160 = vmatprep.subr.mxu0 0.0
  %161 = vmatpush1.msra.mxu0 0.0
  %162 = vmatprep.subr.mxu0 0.0
  %163 = vmatpush1.msra.mxu0 0.0
  %164 = vmatprep.subr.mxu0 0.0
  %165 = vmatpush1.msra.mxu0 0.0
  %166 = vmatprep.subr.mxu0 0.0
  %167 = vmatpush1.msra.mxu0 0.0
  %168 = vmatprep.subr.mxu0 0.0
  %169 = vmatpush1.msra.mxu0 0.0
  %170 = vmatprep.subr.mxu0 0.0
  %171 = vmatpush1.msra.mxu0 0.0
  %172 = vmatprep.subr.mxu0 0.0
  %173 = vmatpush1.msra.mxu0 0.0
  %174 = vmatprep.subr.mxu0 0.0
  %175 = vmatpush1.msra.mxu0 0.0
  %176 = vmatprep.subr.mxu0 0.0
  %177 = vmatpush1.msra.mxu0 0.0
  %178 = vmatprep.subr.mxu0 0.0
  %179 = vmatpush1.msra.mxu0 0.0
  %180 = vmatprep.subr.mxu0 0.0
  %181 = vmatpush1.msra.mxu0 0.0
  %182 = vmatprep.subr.mxu0 0.0
  %183 = vmatpush1.msra.mxu0 0.0
  %184 = vmatprep.mubr.f32.mxu0 0.0
  %185 = vmatmul.mubr.f32.gmra.mrb[0].mxu0 %v47
  %v186 = vpop.f32.mrb[0].mxu0
  %v187 = vadd.f32 %v43, %v186
  %v188 = vpop.f32.mrb[0].mxu0
  %v189 = vadd.f32 %v43, %v188
  %190 = vdwg.mxu0
  %191 = vmatprep.subr.mxu0 %v20
  %192 = vmatpush1.msra.mxu0 %v19
  %193 = vmatprep.subr.mxu0 %v26
  %194 = vmatpush1.msra.mxu0 %v25
  %195 = vmatprep.subr.mxu0 %v32
  %196 = vmatpush1.msra.mxu0 %v31
  %197 = vmatprep.subr.mxu0 %v38
  %198 = vmatpush1.msra.mxu0 %v37
  %199 = vmatprep.subr.mxu0 0.0
  %200 = vmatpush1.msra.mxu0 0.0
  %201 = vmatprep.subr.mxu0 0.0
  %202 = vmatpush1.msra.mxu0 0.0
  %203 = vmatprep.subr.mxu0 0.0
  %204 = vmatpush1.msra.mxu0 0.0
  %205 = vmatprep.subr.mxu0 0.0
  %206 = vmatpush1.msra.mxu0 0.0
  %207 = vmatprep.subr.mxu0 0.0
  %208 = vmatpush1.msra.mxu0 0.0
  %209 = vmatprep.subr.mxu0 0.0
  %210 = vmatpush1.msra.mxu0 0.0
  %211 = vmatprep.subr.mxu0 0.0
  %212 = vmatpush1.msra.mxu0 0.0
  %213 = vmatprep.subr.mxu0 0.0
  %214 = vmatpush1.msra.mxu0 0.0
  %215 = vmatprep.subr.mxu0 0.0
  %216 = vmatpush1.msra.mxu0 0.0
  %217 = vmatprep.subr.mxu0 0.0
  %218 = vmatpush1.msra.mxu0 0.0
  %219 = vmatprep.subr.mxu0 0.0
  %220 = vmatpush1.msra.mxu0 0.0
  %221 = vmatprep.subr.mxu0 0.0
  %222 = vmatpush1.msra.mxu0 0.0
  %223 = vmatprep.subr.mxu0 0.0
  %224 = vmatpush1.msra.mxu0 0.0
  %225 = vmatprep.subr.mxu0 0.0
  %226 = vmatpush1.msra.mxu0 0.0
  %227 = vmatprep.subr.mxu0 0.0
  %228 = vmatpush1.msra.mxu0 0.0
  %229 = vmatprep.subr.mxu0 0.0
  %230 = vmatpush1.msra.mxu0 0.0
  %231 = vmatprep.subr.mxu0 0.0
  %232 = vmatpush1.msra.mxu0 0.0
  %233 = vmatprep.subr.mxu0 0.0
  %234 = vmatpush1.msra.mxu0 0.0
  %235 = vmatprep.subr.mxu0 0.0
  %236 = vmatpush1.msra.mxu0 0.0
  %237 = vmatprep.subr.mxu0 0.0
  %238 = vmatpush1.msra.mxu0 0.0
  %239 = vmatprep.subr.mxu0 0.0
  %240 = vmatpush1.msra.mxu0 0.0
  %241 = vmatprep.subr.mxu0 0.0
  %242 = vmatpush1.msra.mxu0 0.0
  %243 = vmatprep.subr.mxu0 0.0
  %244 = vmatpush1.msra.mxu0 0.0
  %245 = vmatprep.subr.mxu0 0.0
  %246 = vmatpush1.msra.mxu0 0.0
  %247 = vmatprep.subr.mxu0 0.0
  %248 = vmatpush1.msra.mxu0 0.0
  %249 = vmatprep.subr.mxu0 0.0
  %250 = vmatpush1.msra.mxu0 0.0
  %251 = vmatprep.subr.mxu0 0.0
  %252 = vmatpush1.msra.mxu0 0.0
  %253 = vmatprep.subr.mxu0 0.0
  %254 = vmatpush1.msra.mxu0 0.0
  %255 = vmatprep.mubr.f32.mxu0 0.0
  %256 = vmatmul.mubr.f32.gmra.mrb[0].mxu0 %v47
  %v257 = vpop.f32.mrb[0].mxu0
  %v258 = vadd.f32 %v43, %v257
  %v259 = vpop.f32.mrb[0].mxu0
  %v260 = vadd.f32 %v43, %v259
  %261 = vdwg.mxu0
  %v262 = vmax.f32 %v116, 0.0
  %v263 = vmax.f32 %v118, 0.0
  %v264 = vmax.f32 %v187, 0.0
  %v265 = vmax.f32 %v189, 0.0
  %v266 = vmax.f32 %v258, 0.0
  %v267 = vmax.f32 %v260, 0.0
  %v274 = vcombine.low %v262, %v263
  %v275 = vcombine.low %v264, %v265
  %v276 = vcombine.low %v266, %v267
  %280 = vst [vmem:[%s3] sm:$0xff] %v274
  %281 = vst [vmem:[%s3 + $0x8] sm:$0xff] %v275
  %vm282 = vcmask 1043456
  %vm283 = vcmask 654340
  %vm284 = vmor %vm283, %vm282
  %285 = vst.msk [vmem:[%s3 + $0x10] sm:$0xff] %vm284, %v276
  // Predicated region
  $region14: #{forward.6} parent=0 // pred_check
    _
  $region15: #{forward.6} parent=0 // pred_check_branch
    %287 = sbr.rel (0) target = $region17
  $region16: #{forward.6} parent=0 // pred_region
    _
  $region17: #{forward.6} parent=0 // pred_fallthru
    _
  // Predicated region
  $region18: #{forward.6} parent=0 // pred_check
    _
  $region19: #{forward.6} parent=0 // pred_check_branch
    %289 = sbr.rel (0) target = $region21
  $region20: #{forward.6} parent=0 // pred_region
    _
  $region21: #{forward.6} parent=0 // pred_fallthru
    _

// kernel: forward.7
$region0: #{forward.7}
  #allocation0 [shape = 'u32[]', space=smem, size = 0x4, offset = 0x4, fixed_abs, tag = 'smem constant byte address 0x4 - core index']
  #allocation1 [shape = 'u32[144,128]{1,0:T(1,128)}', space=vmem, size = 0x12000, scoped, tag = 'internal scratch']
  %s0 = inlined_call_operand.vmem [shape: f32[4,108], index: 0, kind: input, shape index: {}]
  %s1 = inlined_call_operand.vmem [shape: f32[108,720], index: 1, kind: input, shape index: {}]
  %s2 = inlined_call_operand.vmem [shape: f32[4,1], index: 2, kind: input, shape index: {}]
  %s3 = inlined_call_operand.vmem [shape: f32[4,720], index: 3, kind: output, shape index: {}]
  %s4 = sld [smem:[#allocation0]]
  $region22: #{forward.7} parent=0
    _
  %s6 = ssub.s32 1, %s4
  %s7 = scalar_select 0, %s6, %s4
  // Predicated region
  $region2: #{forward.7} parent=0 // pred_check
    _
  $region3: #{forward.7} parent=0 // pred_check_branch
    %9 = sbr.rel (0) target = $region5
  $region4: #{forward.7} parent=0 // pred_region
    _
  $region5: #{forward.7} parent=0 // pred_fallthru
    _
  // Predicated region
  $region6: #{forward.7} parent=0 // pred_check
    _
  $region7: #{forward.7} parent=0 // pred_check_branch
    %11 = sbr.rel (0) target = $region9
  $region8: #{forward.7} parent=0 // pred_region
    _
  $region9: #{forward.7} parent=0 // pred_fallthru
    _
  // Predicated region
  $region10: #{forward.7} parent=0 // pred_check
    _
  $region11: #{forward.7} parent=0 // pred_check_branch
    %13 = sbr.rel (0) target = $region13
  $region12: #{forward.7} parent=0 // pred_region
    _
  $region13: #{forward.7} parent=0 // pred_fallthru
    _
  %v14 = vld [vmem:[%s0] sm:$0xf]
  %v15 = vld [vmem:[%s1] sm:$0xff]
  %v16 = vld [vmem:[%s1 + $0x8] sm:$0xff]
  %v17 = vld [vmem:[%s1 + $0x10] sm:$0xff]
  %v18 = vld [vmem:[%s1 + $0x18] sm:$0xff]
  %v19 = vld [vmem:[%s1 + $0x20] sm:$0xff]
  %v20 = vld [vmem:[%s1 + $0x28] sm:$0xff]
  %v21 = vld [vmem:[%s1 + $0x30] sm:$0xff]
  %v22 = vld [vmem:[%s1 + $0x38] sm:$0xff]
  %v23 = vld [vmem:[%s1 + $0x40] sm:$0xff]
  %v24 = vld [vmem:[%s1 + $0x48] sm:$0xff]
  %v25 = vld [vmem:[%s1 + $0x50] sm:$0xff]
  %v26 = vld [vmem:[%s1 + $0x58] sm:$0xff]
  %v27 = vld [vmem:[%s1 + $0x60] sm:$0xff]
  %v28 = vld [vmem:[%s1 + $0x68] sm:$0xff]
  %v29 = vld [vmem:[%s1 + $0x70] sm:$0xff]
  %v30 = vld [vmem:[%s1 + $0x78] sm:$0xff]
  %v31 = vld [vmem:[%s1 + $0x80] sm:$0xff]
  %v32 = vld [vmem:[%s1 + $0x88] sm:$0xff]
  %v33 = vld [vmem:[%s1 + $0x90] sm:$0xff]
  %v34 = vld [vmem:[%s1 + $0x98] sm:$0xff]
  %v35 = vld [vmem:[%s1 + $0xa0] sm:$0xff]
  %v36 = vld [vmem:[%s1 + $0xa8] sm:$0xff]
  %v37 = vld [vmem:[%s1 + $0xb0] sm:$0xff]
  %v38 = vld [vmem:[%s1 + $0xb8] sm:$0xff]
  %v39 = vld [vmem:[%s1 + $0xc0] sm:$0xff]
  %v40 = vld [vmem:[%s1 + $0xc8] sm:$0xff]
  %v41 = vld [vmem:[%s1 + $0xd0] sm:$0xff]
  %v42 = vld [vmem:[%s1 + $0xd8] sm:$0xff]
  %v43 = vld [vmem:[%s1 + $0xe0] sm:$0xff]
  %v44 = vld [vmem:[%s1 + $0xe8] sm:$0xff]
  %v45 = vld [vmem:[%s1 + $0xf0] sm:$0xff]
  %v46 = vld [vmem:[%s1 + $0xf8] sm:$0xff]
  %v47 = vld [vmem:[%s1 + $0x100] sm:$0xff]
  %v48 = vld [vmem:[%s1 + $0x108] sm:$0xff]
  %v49 = vld [vmem:[%s1 + $0x110] sm:$0xff]
  %v50 = vld [vmem:[%s1 + $0x118] sm:$0xff]
  %v51 = vld [vmem:[%s1 + $0x120] sm:$0xff]
  %v52 = vld [vmem:[%s1 + $0x128] sm:$0xff]
  %v53 = vld [vmem:[%s1 + $0x130] sm:$0xff]
  %v54 = vld [vmem:[%s1 + $0x138] sm:$0xff]
  %v55 = vld [vmem:[%s1 + $0x140] sm:$0xff]
  %v56 = vld [vmem:[%s1 + $0x148] sm:$0xff]
  %v57 = vld [vmem:[%s1 + $0x150] sm:$0xff]
  %v58 = vld [vmem:[%s1 + $0x158] sm:$0xff]
  %v59 = vld [vmem:[%s1 + $0x160] sm:$0xff]
  %v60 = vld [vmem:[%s1 + $0x168] sm:$0xff]
  %v61 = vld [vmem:[%s1 + $0x170] sm:$0xff]
  %v62 = vld [vmem:[%s1 + $0x178] sm:$0xff]
  %v63 = vld [vmem:[%s1 + $0x180] sm:$0xff]
  %v64 = vld [vmem:[%s1 + $0x188] sm:$0xff]
  %v65 = vld [vmem:[%s1 + $0x190] sm:$0xff]
  %v66 = vld [vmem:[%s1 + $0x198] sm:$0xff]
  %v67 = vld [vmem:[%s1 + $0x1a0] sm:$0xff]
  %v68 = vld [vmem:[%s1 + $0x1a8] sm:$0xff]
  %v69 = vld [vmem:[%s1 + $0x1b0] sm:$0xff]
  %v70 = vld [vmem:[%s1 + $0x1b8] sm:$0xff]
  %v71 = vld [vmem:[%s1 + $0x1c0] sm:$0xff]
  %v72 = vld [vmem:[%s1 + $0x1c8] sm:$0xff]
  %v73 = vld [vmem:[%s1 + $0x1d0] sm:$0xff]
  %v74 = vld [vmem:[%s1 + $0x1d8] sm:$0xff]
  %v75 = vld [vmem:[%s1 + $0x1e0] sm:$0xff]
  %v76 = vld [vmem:[%s1 + $0x1e8] sm:$0xff]
  %v77 = vld [vmem:[%s1 + $0x1f0] sm:$0xff]
  %v78 = vld [vmem:[%s1 + $0x1f8] sm:$0xff]
  %v79 = vld [vmem:[%s1 + $0x200] sm:$0xff]
  %v80 = vld [vmem:[%s1 + $0x208] sm:$0xff]
  %v81 = vld [vmem:[%s1 + $0x210] sm:$0xff]
  %v82 = vld [vmem:[%s1 + $0x218] sm:$0xff]
  %v83 = vld [vmem:[%s1 + $0x220] sm:$0xff]
  %v84 = vld [vmem:[%s1 + $0x228] sm:$0xff]
  %v85 = vld [vmem:[%s1 + $0x230] sm:$0xff]
  %v86 = vld [vmem:[%s1 + $0x238] sm:$0xff]
  %v87 = vld [vmem:[%s1 + $0x240] sm:$0xff]
  %v88 = vld [vmem:[%s1 + $0x248] sm:$0xff]
  %v89 = vld [vmem:[%s1 + $0x250] sm:$0xff]
  %v90 = vld [vmem:[%s1 + $0x258] sm:$0xff]
  %v91 = vld [vmem:[%s1 + $0x260] sm:$0xff]
  %v92 = vld [vmem:[%s1 + $0x268] sm:$0xff]
  %v93 = vld [vmem:[%s1 + $0x270] sm:$0xf]
  %v94 = vld [vmem:[%s1 + $0x278] sm:$0xf]
  %v95 = vld [vmem:[%s1 + $0x280] sm:$0xf]
  %v96 = vld [vmem:[%s1 + $0x288] sm:$0xf]
  %v97 = vld [vmem:[%s1 + $0x290] sm:$0xf]
  %v98 = vld [vmem:[%s1 + $0x298] sm:$0xf]
  %v99 = vld [vmem:[%s2] sm:$0xf]
  %101 = vset.pattern.permute.xlu0 0
  %102 = vperm.xlu0 %101, %v99
  %v103 = vpop.permute.xlu0 %102
  %vm105 = vcmask 883712
  %v107 = vsel %vm105, %v14, 0
  %vm109 = vcmask 1043456
  %v111 = vsel %vm109, %v93, 0
  %v114 = vsel %vm109, %v94, 0
  %v117 = vsel %vm109, %v95, 0
  %v120 = vsel %vm109, %v96, 0
  %v123 = vsel %vm109, %v97, 0
  %v126 = vsel %vm109, %v98, 0
  %128 = vmatprep.subr.mxu0 %v16
  %129 = vmatpush1.msra.mxu0 %v15
  %130 = vmatprep.subr.mxu0 %v22
  %131 = vmatpush1.msra.mxu0 %v21
  %132 = vmatprep.subr.mxu0 %v28
  %133 = vmatpush1.msra.mxu0 %v27
  %134 = vmatprep.subr.mxu0 %v34
  %135 = vmatpush1.msra.mxu0 %v33
  %136 = vmatprep.subr.mxu0 %v40
  %137 = vmatpush1.msra.mxu0 %v39
  %138 = vmatprep.subr.mxu0 %v46
  %139 = vmatpush1.msra.mxu0 %v45
  %140 = vmatprep.subr.mxu0 %v52
  %141 = vmatpush1.msra.mxu0 %v51
  %142 = vmatprep.subr.mxu0 %v58
  %143 = vmatpush1.msra.mxu0 %v57
  %144 = vmatprep.subr.mxu0 %v64
  %145 = vmatpush1.msra.mxu0 %v63
  %146 = vmatprep.subr.mxu0 %v70
  %147 = vmatpush1.msra.mxu0 %v69
  %148 = vmatprep.subr.mxu0 %v76
  %149 = vmatpush1.msra.mxu0 %v75
  %150 = vmatprep.subr.mxu0 %v82
  %151 = vmatpush1.msra.mxu0 %v81
  %152 = vmatprep.subr.mxu0 %v88
  %153 = vmatpush1.msra.mxu0 %v87
  %154 = vmatprep.subr.mxu0 %v114
  %155 = vmatpush1.msra.mxu0 %v111
  %156 = vmatprep.subr.mxu0 0.0
  %157 = vmatpush1.msra.mxu0 0.0
  %158 = vmatprep.subr.mxu0 0.0
  %159 = vmatpush1.msra.mxu0 0.0
  %160 = vmatprep.subr.mxu0 0.0
  %161 = vmatpush1.msra.mxu0 0.0
  %162 = vmatprep.subr.mxu0 0.0
  %163 = vmatpush1.msra.mxu0 0.0
  %164 = vmatprep.subr.mxu0 0.0
  %165 = vmatpush1.msra.mxu0 0.0
  %166 = vmatprep.subr.mxu0 0.0
  %167 = vmatpush1.msra.mxu0 0.0
  %168 = vmatprep.subr.mxu0 0.0
  %169 = vmatpush1.msra.mxu0 0.0
  %170 = vmatprep.subr.mxu0 0.0
  %171 = vmatpush1.msra.mxu0 0.0
  %172 = vmatprep.subr.mxu0 0.0
  %173 = vmatpush1.msra.mxu0 0.0
  %174 = vmatprep.subr.mxu0 0.0
  %175 = vmatpush1.msra.mxu0 0.0
  %176 = vmatprep.subr.mxu0 0.0
  %177 = vmatpush1.msra.mxu0 0.0
  %178 = vmatprep.subr.mxu0 0.0
  %179 = vmatpush1.msra.mxu0 0.0
  %180 = vmatprep.subr.mxu0 0.0
  %181 = vmatpush1.msra.mxu0 0.0
  %182 = vmatprep.subr.mxu0 0.0
  %183 = vmatpush1.msra.mxu0 0.0
  %184 = vmatprep.subr.mxu0 0.0
  %185 = vmatpush1.msra.mxu0 0.0
  %186 = vmatprep.subr.mxu0 0.0
  %187 = vmatpush1.msra.mxu0 0.0
  %188 = vmatprep.subr.mxu0 0.0
  %189 = vmatpush1.msra.mxu0 0.0
  %190 = vmatprep.subr.mxu0 0.0
  %191 = vmatpush1.msra.mxu0 0.0
  %192 = vmatprep.mubr.f32.mxu0 0.0
  %193 = vmatmul.mubr.f32.gmra.mrb[0].mxu0 %v107
  %v194 = vpop.f32.mrb[0].mxu0
  %v195 = vadd.f32 %v103, %v194
  %v196 = vpop.f32.mrb[0].mxu0
  %v197 = vadd.f32 %v103, %v196
  %198 = vdwg.mxu0
  %199 = vmatprep.subr.mxu0 %v18
  %200 = vmatpush1.msra.mxu0 %v17
  %201 = vmatprep.subr.mxu0 %v24
  %202 = vmatpush1.msra.mxu0 %v23
  %203 = vmatprep.subr.mxu0 %v30
  %204 = vmatpush1.msra.mxu0 %v29
  %205 = vmatprep.subr.mxu0 %v36
  %206 = vmatpush1.msra.mxu0 %v35
  %207 = vmatprep.subr.mxu0 %v42
  %208 = vmatpush1.msra.mxu0 %v41
  %209 = vmatprep.subr.mxu0 %v48
  %210 = vmatpush1.msra.mxu0 %v47
  %211 = vmatprep.subr.mxu0 %v54
  %212 = vmatpush1.msra.mxu0 %v53
  %213 = vmatprep.subr.mxu0 %v60
  %214 = vmatpush1.msra.mxu0 %v59
  %215 = vmatprep.subr.mxu0 %v66
  %216 = vmatpush1.msra.mxu0 %v65
  %217 = vmatprep.subr.mxu0 %v72
  %218 = vmatpush1.msra.mxu0 %v71
  %219 = vmatprep.subr.mxu0 %v78
  %220 = vmatpush1.msra.mxu0 %v77
  %221 = vmatprep.subr.mxu0 %v84
  %222 = vmatpush1.msra.mxu0 %v83
  %223 = vmatprep.subr.mxu0 %v90
  %224 = vmatpush1.msra.mxu0 %v89
  %225 = vmatprep.subr.mxu0 %v120
  %226 = vmatpush1.msra.mxu0 %v117
  %227 = vmatprep.subr.mxu0 0.0
  %228 = vmatpush1.msra.mxu0 0.0
  %229 = vmatprep.subr.mxu0 0.0
  %230 = vmatpush1.msra.mxu0 0.0
  %231 = vmatprep.subr.mxu0 0.0
  %232 = vmatpush1.msra.mxu0 0.0
  %233 = vmatprep.subr.mxu0 0.0
  %234 = vmatpush1.msra.mxu0 0.0
  %235 = vmatprep.subr.mxu0 0.0
  %236 = vmatpush1.msra.mxu0 0.0
  %237 = vmatprep.subr.mxu0 0.0
  %238 = vmatpush1.msra.mxu0 0.0
  %239 = vmatprep.subr.mxu0 0.0
  %240 = vmatpush1.msra.mxu0 0.0
  %241 = vmatprep.subr.mxu0 0.0
  %242 = vmatpush1.msra.mxu0 0.0
  %243 = vmatprep.subr.mxu0 0.0
  %244 = vmatpush1.msra.mxu0 0.0
  %245 = vmatprep.subr.mxu0 0.0
  %246 = vmatpush1.msra.mxu0 0.0
  %247 = vmatprep.subr.mxu0 0.0
  %248 = vmatpush1.msra.mxu0 0.0
  %249 = vmatprep.subr.mxu0 0.0
  %250 = vmatpush1.msra.mxu0 0.0
  %251 = vmatprep.subr.mxu0 0.0
  %252 = vmatpush1.msra.mxu0 0.0
  %253 = vmatprep.subr.mxu0 0.0
  %254 = vmatpush1.msra.mxu0 0.0
  %255 = vmatprep.subr.mxu0 0.0
  %256 = vmatpush1.msra.mxu0 0.0
  %257 = vmatprep.subr.mxu0 0.0
  %258 = vmatpush1.msra.mxu0 0.0
  %259 = vmatprep.subr.mxu0 0.0
  %260 = vmatpush1.msra.mxu0 0.0
  %261 = vmatprep.subr.mxu0 0.0
  %262 = vmatpush1.msra.mxu0 0.0
  %263 = vmatprep.mubr.f32.mxu0 0.0
  %264 = vmatmul.mubr.f32.gmra.mrb[0].mxu0 %v107
  %v265 = vpop.f32.mrb[0].mxu0
  %v266 = vadd.f32 %v103, %v265
  %v267 = vpop.f32.mrb[0].mxu0
  %v268 = vadd.f32 %v103, %v267
  %269 = vdwg.mxu0
  %270 = vmatprep.subr.mxu0 %v20
  %271 = vmatpush1.msra.mxu0 %v19
  %272 = vmatprep.subr.mxu0 %v26
  %273 = vmatpush1.msra.mxu0 %v25
  %274 = vmatprep.subr.mxu0 %v32
  %275 = vmatpush1.msra.mxu0 %v31
  %276 = vmatprep.subr.mxu0 %v38
  %277 = vmatpush1.msra.mxu0 %v37
  %278 = vmatprep.subr.mxu0 %v44
  %279 = vmatpush1.msra.mxu0 %v43
  %280 = vmatprep.subr.mxu0 %v50
  %281 = vmatpush1.msra.mxu0 %v49
  %282 = vmatprep.subr.mxu0 %v56
  %283 = vmatpush1.msra.mxu0 %v55
  %284 = vmatprep.subr.mxu0 %v62
  %285 = vmatpush1.msra.mxu0 %v61
  %286 = vmatprep.subr.mxu0 %v68
  %287 = vmatpush1.msra.mxu0 %v67
  %288 = vmatprep.subr.mxu0 %v74
  %289 = vmatpush1.msra.mxu0 %v73
  %290 = vmatprep.subr.mxu0 %v80
  %291 = vmatpush1.msra.mxu0 %v79
  %292 = vmatprep.subr.mxu0 %v86
  %293 = vmatpush1.msra.mxu0 %v85
  %294 = vmatprep.subr.mxu0 %v92
  %295 = vmatpush1.msra.mxu0 %v91
  %296 = vmatprep.subr.mxu0 %v126
  %297 = vmatpush1.msra.mxu0 %v123
  %298 = vmatprep.subr.mxu0 0.0
  %299 = vmatpush1.msra.mxu0 0.0
  %300 = vmatprep.subr.mxu0 0.0
  %301 = vmatpush1.msra.mxu0 0.0
  %302 = vmatprep.subr.mxu0 0.0
  %303 = vmatpush1.msra.mxu0 0.0
  %304 = vmatprep.subr.mxu0 0.0
  %305 = vmatpush1.msra.mxu0 0.0
  %306 = vmatprep.subr.mxu0 0.0
  %307 = vmatpush1.msra.mxu0 0.0
  %308 = vmatprep.subr.mxu0 0.0
  %309 = vmatpush1.msra.mxu0 0.0
  %310 = vmatprep.subr.mxu0 0.0
  %311 = vmatpush1.msra.mxu0 0.0
  %312 = vmatprep.subr.mxu0 0.0
  %313 = vmatpush1.msra.mxu0 0.0
  %314 = vmatprep.subr.mxu0 0.0
  %315 = vmatpush1.msra.mxu0 0.0
  %316 = vmatprep.subr.mxu0 0.0
  %317 = vmatpush1.msra.mxu0 0.0
  %318 = vmatprep.subr.mxu0 0.0
  %319 = vmatpush1.msra.mxu0 0.0
  %320 = vmatprep.subr.mxu0 0.0
  %321 = vmatpush1.msra.mxu0 0.0
  %322 = vmatprep.subr.mxu0 0.0
  %323 = vmatpush1.msra.mxu0 0.0
  %324 = vmatprep.subr.mxu0 0.0
  %325 = vmatpush1.msra.mxu0 0.0
  %326 = vmatprep.subr.mxu0 0.0
  %327 = vmatpush1.msra.mxu0 0.0
  %328 = vmatprep.subr.mxu0 0.0
  %329 = vmatpush1.msra.mxu0 0.0
  %330 = vmatprep.subr.mxu0 0.0
  %331 = vmatpush1.msra.mxu0 0.0
  %332 = vmatprep.subr.mxu0 0.0
  %333 = vmatpush1.msra.mxu0 0.0
  %334 = vmatprep.mubr.f32.mxu0 0.0
  %335 = vmatmul.mubr.f32.gmra.mrb[0].mxu0 %v107
  %v336 = vpop.f32.mrb[0].mxu0
  %v337 = vadd.f32 %v103, %v336
  %v338 = vpop.f32.mrb[0].mxu0
  %v339 = vadd.f32 %v103, %v338
  %340 = vdwg.mxu0
  %v341 = vmax.f32 %v195, 0.0
  %v342 = vmax.f32 %v197, 0.0
  %v343 = vmax.f32 %v266, 0.0
  %v344 = vmax.f32 %v268, 0.0
  %v345 = vmax.f32 %v337, 0.0
  %v346 = vmax.f32 %v339, 0.0
  %v353 = vcombine.low %v341, %v342
  %v354 = vcombine.low %v343, %v344
  %v355 = vcombine.low %v345, %v346
  %359 = vst [vmem:[%s3] sm:$0xff] %v353
  %360 = vst [vmem:[%s3 + $0x8] sm:$0xff] %v354
  %vm361 = vcmask 654340
  %vm362 = vmor %vm361, %vm109
  %363 = vst.msk [vmem:[%s3 + $0x10] sm:$0xff] %vm362, %v355
  // Predicated region
  $region14: #{forward.7} parent=0 // pred_check
    _
  $region15: #{forward.7} parent=0 // pred_check_branch
    %365 = sbr.rel (0) target = $region17
  $region16: #{forward.7} parent=0 // pred_region
    _
  $region17: #{forward.7} parent=0 // pred_fallthru
    _
  // Predicated region
  $region18: #{forward.7} parent=0 // pred_check
    _
  $region19: #{forward.7} parent=0 // pred_check_branch
    %367 = sbr.rel (0) target = $region21
  $region20: #{forward.7} parent=0 // pred_region
    _
  $region21: #{forward.7} parent=0 // pred_fallthru
    _

// kernel: forward.8
$region0: #{forward.8}
  #allocation0 [shape = 'u32[]', space=smem, size = 0x4, offset = 0x4, fixed_abs, tag = 'smem constant byte address 0x4 - core index']
  #allocation1 [shape = 'u32[144,128]{1,0:T(1,128)}', space=vmem, size = 0x12000, scoped, tag = 'internal scratch']
  %s0 = inlined_call_operand.vmem [shape: f32[4,108], index: 0, kind: input, shape index: {}]
  %s1 = inlined_call_operand.vmem [shape: f32[108,360], index: 1, kind: input, shape index: {}]
  %s2 = inlined_call_operand.vmem [shape: f32[4,1], index: 2, kind: input, shape index: {}]
  %s3 = inlined_call_operand.vmem [shape: f32[4,360], index: 3, kind: output, shape index: {}]
  %s4 = sld [smem:[#allocation0]]
  $region22: #{forward.8} parent=0
    _
  %s6 = ssub.s32 1, %s4
  %s7 = scalar_select 0, %s6, %s4
  // Predicated region
  $region2: #{forward.8} parent=0 // pred_check
    _
  $region3: #{forward.8} parent=0 // pred_check_branch
    %9 = sbr.rel (0) target = $region5
  $region4: #{forward.8} parent=0 // pred_region
    _
  $region5: #{forward.8} parent=0 // pred_fallthru
    _
  // Predicated region
  $region6: #{forward.8} parent=0 // pred_check
    _
  $region7: #{forward.8} parent=0 // pred_check_branch
    %11 = sbr.rel (0) target = $region9
  $region8: #{forward.8} parent=0 // pred_region
    _
  $region9: #{forward.8} parent=0 // pred_fallthru
    _
  // Predicated region
  $region10: #{forward.8} parent=0 // pred_check
    _
  $region11: #{forward.8} parent=0 // pred_check_branch
    %13 = sbr.rel (0) target = $region13
  $region12: #{forward.8} parent=0 // pred_region
    _
  $region13: #{forward.8} parent=0 // pred_fallthru
    _
  %v14 = vld [vmem:[%s0] sm:$0xf]
  %v15 = vld [vmem:[%s1] sm:$0xff]
  %v16 = vld [vmem:[%s1 + $0x8] sm:$0xff]
  %v17 = vld [vmem:[%s1 + $0x10] sm:$0xff]
  %v18 = vld [vmem:[%s1 + $0x18] sm:$0xff]
  %v19 = vld [vmem:[%s1 + $0x20] sm:$0xff]
  %v20 = vld [vmem:[%s1 + $0x28] sm:$0xff]
  %v21 = vld [vmem:[%s1 + $0x30] sm:$0xff]
  %v22 = vld [vmem:[%s1 + $0x38] sm:$0xff]
  %v23 = vld [vmem:[%s1 + $0x40] sm:$0xff]
  %v24 = vld [vmem:[%s1 + $0x48] sm:$0xff]
  %v25 = vld [vmem:[%s1 + $0x50] sm:$0xff]
  %v26 = vld [vmem:[%s1 + $0x58] sm:$0xff]
  %v27 = vld [vmem:[%s1 + $0x60] sm:$0xff]
  %v28 = vld [vmem:[%s1 + $0x68] sm:$0xff]
  %v29 = vld [vmem:[%s1 + $0x70] sm:$0xff]
  %v30 = vld [vmem:[%s1 + $0x78] sm:$0xff]
  %v31 = vld [vmem:[%s1 + $0x80] sm:$0xff]
  %v32 = vld [vmem:[%s1 + $0x88] sm:$0xff]
  %v33 = vld [vmem:[%s1 + $0x90] sm:$0xff]
  %v34 = vld [vmem:[%s1 + $0x98] sm:$0xff]
  %v35 = vld [vmem:[%s1 + $0xa0] sm:$0xff]
  %v36 = vld [vmem:[%s1 + $0xa8] sm:$0xff]
  %v37 = vld [vmem:[%s1 + $0xb0] sm:$0xff]
  %v38 = vld [vmem:[%s1 + $0xb8] sm:$0xff]
  %v39 = vld [vmem:[%s1 + $0xc0] sm:$0xff]
  %v40 = vld [vmem:[%s1 + $0xc8] sm:$0xff]
  %v41 = vld [vmem:[%s1 + $0xd0] sm:$0xff]
  %v42 = vld [vmem:[%s1 + $0xd8] sm:$0xff]
  %v43 = vld [vmem:[%s1 + $0xe0] sm:$0xff]
  %v44 = vld [vmem:[%s1 + $0xe8] sm:$0xff]
  %v45 = vld [vmem:[%s1 + $0xf0] sm:$0xff]
  %v46 = vld [vmem:[%s1 + $0xf8] sm:$0xff]
  %v47 = vld [vmem:[%s1 + $0x100] sm:$0xff]
  %v48 = vld [vmem:[%s1 + $0x108] sm:$0xff]
  %v49 = vld [vmem:[%s1 + $0x110] sm:$0xff]
  %v50 = vld [vmem:[%s1 + $0x118] sm:$0xff]
  %v51 = vld [vmem:[%s1 + $0x120] sm:$0xff]
  %v52 = vld [vmem:[%s1 + $0x128] sm:$0xff]
  %v53 = vld [vmem:[%s1 + $0x130] sm:$0xff]
  %v54 = vld [vmem:[%s1 + $0x138] sm:$0xf]
  %v55 = vld [vmem:[%s1 + $0x140] sm:$0xf]
  %v56 = vld [vmem:[%s1 + $0x148] sm:$0xf]
  %v57 = vld [vmem:[%s2] sm:$0xf]
  %59 = vset.pattern.permute.xlu0 0
  %60 = vperm.xlu0 %59, %v57
  %v61 = vpop.permute.xlu0 %60
  %vm63 = vcmask 883712
  %v65 = vsel %vm63, %v14, 0
  %vm67 = vcmask 1043456
  %v69 = vsel %vm67, %v54, 0
  %v72 = vsel %vm67, %v55, 0
  %v75 = vsel %vm67, %v56, 0
  %77 = vmatprep.subr.mxu0 %v16
  %78 = vmatpush1.msra.mxu0 %v15
  %79 = vmatprep.subr.mxu0 %v19
  %80 = vmatpush1.msra.mxu0 %v18
  %81 = vmatprep.subr.mxu0 %v22
  %82 = vmatpush1.msra.mxu0 %v21
  %83 = vmatprep.subr.mxu0 %v25
  %84 = vmatpush1.msra.mxu0 %v24
  %85 = vmatprep.subr.mxu0 %v28
  %86 = vmatpush1.msra.mxu0 %v27
  %87 = vmatprep.subr.mxu0 %v31
  %88 = vmatpush1.msra.mxu0 %v30
  %89 = vmatprep.subr.mxu0 %v34
  %90 = vmatpush1.msra.mxu0 %v33
  %91 = vmatprep.subr.mxu0 %v37
  %92 = vmatpush1.msra.mxu0 %v36
  %93 = vmatprep.subr.mxu0 %v40
  %94 = vmatpush1.msra.mxu0 %v39
  %95 = vmatprep.subr.mxu0 %v43
  %96 = vmatpush1.msra.mxu0 %v42
  %97 = vmatprep.subr.mxu0 %v46
  %98 = vmatpush1.msra.mxu0 %v45
  %99 = vmatprep.subr.mxu0 %v49
  %100 = vmatpush1.msra.mxu0 %v48
  %101 = vmatprep.subr.mxu0 %v52
  %102 = vmatpush1.msra.mxu0 %v51
  %103 = vmatprep.subr.mxu0 %v72
  %104 = vmatpush1.msra.mxu0 %v69
  %105 = vmatprep.subr.mxu0 0.0
  %106 = vmatpush1.msra.mxu0 0.0
  %107 = vmatprep.subr.mxu0 0.0
  %108 = vmatpush1.msra.mxu0 0.0
  %109 = vmatprep.subr.mxu0 0.0
  %110 = vmatpush1.msra.mxu0 0.0
  %111 = vmatprep.subr.mxu0 0.0
  %112 = vmatpush1.msra.mxu0 0.0
  %113 = vmatprep.subr.mxu0 0.0
  %114 = vmatpush1.msra.mxu0 0.0
  %115 = vmatprep.subr.mxu0 0.0
  %116 = vmatpush1.msra.mxu0 0.0
  %117 = vmatprep.subr.mxu0 0.0
  %118 = vmatpush1.msra.mxu0 0.0
  %119 = vmatprep.subr.mxu0 0.0
  %120 = vmatpush1.msra.mxu0 0.0
  %121 = vmatprep.subr.mxu0 0.0
  %122 = vmatpush1.msra.mxu0 0.0
  %123 = vmatprep.subr.mxu0 0.0
  %124 = vmatpush1.msra.mxu0 0.0
  %125 = vmatprep.subr.mxu0 0.0
  %126 = vmatpush1.msra.mxu0 0.0
  %127 = vmatprep.subr.mxu0 0.0
  %128 = vmatpush1.msra.mxu0 0.0
  %129 = vmatprep.subr.mxu0 0.0
  %130 = vmatpush1.msra.mxu0 0.0
  %131 = vmatprep.subr.mxu0 0.0
  %132 = vmatpush1.msra.mxu0 0.0
  %133 = vmatprep.subr.mxu0 0.0
  %134 = vmatpush1.msra.mxu0 0.0
  %135 = vmatprep.subr.mxu0 0.0
  %136 = vmatpush1.msra.mxu0 0.0
  %137 = vmatprep.subr.mxu0 0.0
  %138 = vmatpush1.msra.mxu0 0.0
  %139 = vmatprep.subr.mxu0 0.0
  %140 = vmatpush1.msra.mxu0 0.0
  %141 = vmatprep.mubr.f32.mxu0 0.0
  %142 = vmatmul.mubr.f32.gmra.mrb[0].mxu0 %v65
  %v143 = vpop.f32.mrb[0].mxu0
  %v144 = vadd.f32 %v61, %v143
  %v145 = vpop.f32.mrb[0].mxu0
  %v146 = vadd.f32 %v61, %v145
  %147 = vdwg.mxu0
  %148 = vmatprep.subr.mxu0 0.0
  %149 = vmatpush1.msra.mxu0 %v17
  %150 = vmatprep.subr.mxu0 0.0
  %151 = vmatpush1.msra.mxu0 %v20
  %152 = vmatprep.subr.mxu0 0.0
  %153 = vmatpush1.msra.mxu0 %v23
  %154 = vmatprep.subr.mxu0 0.0
  %155 = vmatpush1.msra.mxu0 %v26
  %156 = vmatprep.subr.mxu0 0.0
  %157 = vmatpush1.msra.mxu0 %v29
  %158 = vmatprep.subr.mxu0 0.0
  %159 = vmatpush1.msra.mxu0 %v32
  %160 = vmatprep.subr.mxu0 0.0
  %161 = vmatpush1.msra.mxu0 %v35
  %162 = vmatprep.subr.mxu0 0.0
  %163 = vmatpush1.msra.mxu0 %v38
  %164 = vmatprep.subr.mxu0 0.0
  %165 = vmatpush1.msra.mxu0 %v41
  %166 = vmatprep.subr.mxu0 0.0
  %167 = vmatpush1.msra.mxu0 %v44
  %168 = vmatprep.subr.mxu0 0.0
  %169 = vmatpush1.msra.mxu0 %v47
  %170 = vmatprep.subr.mxu0 0.0
  %171 = vmatpush1.msra.mxu0 %v50
  %172 = vmatprep.subr.mxu0 0.0
  %173 = vmatpush1.msra.mxu0 %v53
  %174 = vmatprep.subr.mxu0 0.0
  %175 = vmatpush1.msra.mxu0 %v75
  %176 = vmatprep.subr.mxu0 0.0
  %177 = vmatpush1.msra.mxu0 0.0
  %178 = vmatprep.subr.mxu0 0.0
  %179 = vmatpush1.msra.mxu0 0.0
  %180 = vmatprep.subr.mxu0 0.0
  %181 = vmatpush1.msra.mxu0 0.0
  %182 = vmatprep.subr.mxu0 0.0
  %183 = vmatpush1.msra.mxu0 0.0
  %184 = vmatprep.subr.mxu0 0.0
  %185 = vmatpush1.msra.mxu0 0.0
  %186 = vmatprep.subr.mxu0 0.0
  %187 = vmatpush1.msra.mxu0 0.0
  %188 = vmatprep.subr.mxu0 0.0
  %189 = vmatpush1.msra.mxu0 0.0
  %190 = vmatprep.subr.mxu0 0.0
  %191 = vmatpush1.msra.mxu0 0.0
  %192 = vmatprep.subr.mxu0 0.0
  %193 = vmatpush1.msra.mxu0 0.0
  %194 = vmatprep.subr.mxu0 0.0
  %195 = vmatpush1.msra.mxu0 0.0
  %196 = vmatprep.subr.mxu0 0.0
  %197 = vmatpush1.msra.mxu0 0.0
  %198 = vmatprep.subr.mxu0 0.0
  %199 = vmatpush1.msra.mxu0 0.0
  %200 = vmatprep.subr.mxu0 0.0
  %201 = vmatpush1.msra.mxu0 0.0
  %202 = vmatprep.subr.mxu0 0.0
  %203 = vmatpush1.msra.mxu0 0.0
  %204 = vmatprep.subr.mxu0 0.0
  %205 = vmatpush1.msra.mxu0 0.0
  %206 = vmatprep.subr.mxu0 0.0
  %207 = vmatpush1.msra.mxu0 0.0
  %208 = vmatprep.subr.mxu0 0.0
  %209 = vmatpush1.msra.mxu0 0.0
  %210 = vmatprep.subr.mxu0 0.0
  %211 = vmatpush1.msra.mxu0 0.0
  %212 = vmatprep.mubr.f32.mxu0 0.0
  %213 = vmatmul.mubr.f32.gmra.mrb[0].mxu0 %v65
  %v214 = vpop.f32.mrb[0].mxu0
  %v215 = vadd.f32 %v61, %v214
  %v216 = vpop.f32.mrb[0].mxu0
  %217 = vdwg.mxu0
  %v218 = vmax.f32 %v144, 0.0
  %v219 = vmax.f32 %v146, 0.0
  %v220 = vmax.f32 %v215, 0.0
  %v223 = vcombine.low %v218, %v219
  %225 = vst [vmem:[%s3] sm:$0xff] %v223
  %vm226 = vcmask 846848
  %227 = vst.msk [vmem:[%s3 + $0x8] sm:$0xf] %vm226, %v220
  // Predicated region
  $region14: #{forward.8} parent=0 // pred_check
    _
  $region15: #{forward.8} parent=0 // pred_check_branch
    %229 = sbr.rel (0) target = $region17
  $region16: #{forward.8} parent=0 // pred_region
    _
  $region17: #{forward.8} parent=0 // pred_fallthru
    _
  // Predicated region
  $region18: #{forward.8} parent=0 // pred_check
    _
  $region19: #{forward.8} parent=0 // pred_check_branch
    %231 = sbr.rel (0) target = $region21
  $region20: #{forward.8} parent=0 // pred_region
    _
  $region21: #{forward.8} parent=0 // pred_fallthru
    _

// kernel: forward.9
$region0: #{forward.9}
  #allocation0 [shape = 'u32[]', space=smem, size = 0x4, offset = 0x4, fixed_abs, tag = 'smem constant byte address 0x4 - core index']
  #allocation1 [shape = 'u32[144,128]{1,0:T(1,128)}', space=vmem, size = 0x12000, scoped, tag = 'internal scratch']
  %s0 = inlined_call_operand.vmem [shape: f32[4,360], index: 0, kind: input, shape index: {}]
  %s1 = inlined_call_operand.vmem [shape: f32[4,5], index: 1, kind: input, shape index: {}]
  %s2 = inlined_call_operand.vmem [shape: f32[360,5], index: 2, kind: input, shape index: {}]
  %s3 = inlined_call_operand.vmem [shape: f32[1,5], index: 3, kind: input, shape index: {}]
  %s4 = inlined_call_operand.vmem [shape: f32[3,5,5], index: 4, kind: input, shape index: {}]
  %s5 = inlined_call_operand.vmem [shape: f32[3,4,4], index: 5, kind: input, shape index: {}]
  %s6 = inlined_call_operand.vmem [shape: f32[3,4,4], index: 6, kind: input, shape index: {}]
  %s7 = inlined_call_operand.vmem [shape: f32[4,1], index: 7, kind: input, shape index: {}]
  %s8 = inlined_call_operand.vmem [shape: f32[5,16], index: 8, kind: input, shape index: {}]
  %s9 = inlined_call_operand.vmem [shape: f32[1,16], index: 9, kind: input, shape index: {}]
  %s10 = inlined_call_operand.vmem [shape: f32[16,32], index: 10, kind: input, shape index: {}]
  %s11 = inlined_call_operand.vmem [shape: f32[1,32], index: 11, kind: input, shape index: {}]
  %s12 = inlined_call_operand.vmem [shape: f32[4,32,32], index: 12, kind: input, shape index: {}]
  %s13 = inlined_call_operand.vmem [shape: f32[4,32,32], index: 13, kind: input, shape index: {}]
  %s14 = inlined_call_operand.vmem [shape: f32[4,1,32], index: 14, kind: input, shape index: {}]
  %s15 = inlined_call_operand.vmem [shape: f32[32,7], index: 15, kind: input, shape index: {}]
  %s16 = inlined_call_operand.vmem [shape: f32[1,7], index: 16, kind: input, shape index: {}]
  %s17 = inlined_call_operand.vmem [shape: f32[1,32], index: 17, kind: input, shape index: {}]
  %s18 = inlined_call_operand.vmem [shape: f32[1,32], index: 18, kind: input, shape index: {}]
  %s19 = inlined_call_operand.hbm [shape: f32[1,1], index: 19, kind: output, shape index: {0}]
  %s20 = inlined_call_operand.hbm [shape: f32[1,6], index: 20, kind: output, shape index: {1}]
  %s21 = inlined_call_operand.hbm [shape: f32[1,32], index: 21, kind: output, shape index: {2}]
  %s22 = inlined_call_operand.hbm [shape: f32[1,32], index: 22, kind: output, shape index: {3}]
  %23 = xla_tuple %s19, %s20, %s21, %s22
  %s24 = sld [smem:[#allocation0]]
  $region110: #{forward.9} parent=0
    _
  %s26 = ssub.s32 1, %s24
  %s27 = scalar_select 0, %s26, %s24
  $region1: #{forward.9} parent=0
    #allocation2 [shape = 'u8[512]{0}', space=vmem, size = 0x400, scoped, tag = 'output window, operand 0, single buffered']
    #allocation3 [shape = 's32[1]{0}', space=sflag, size = 0x4, scoped, tag = 'scoped memory for forward.9']
    #allocation4 [shape = 'u8[512]{0}', space=vmem, size = 0x400, scoped, tag = 'output window, operand 1, single buffered']
    #allocation5 [shape = 's32[1]{0}', space=sflag, size = 0x4, scoped, tag = 'scoped memory for forward.9']
    #allocation6 [shape = 'u8[512]{0}', space=vmem, size = 0x400, scoped, tag = 'output window, operand 2, single buffered']
    #allocation7 [shape = 'u8[512]{0}', space=vmem, size = 0x400, scoped, tag = 'output window, operand 3, single buffered']
    #allocation8 [shape = 's32[1]{0}', space=sflag, size = 0x4, scoped, tag = 'scoped memory for forward.9']
    %28 = vsyncpa [#allocation3], 0
    %29 = vsyncpa [#allocation5], 0
    %30 = vsyncpa [#allocation8], 0
    // Predicated region
    $region2: #{forward.9} parent=1 // pred_check
      _
    $region3: #{forward.9} parent=1 // pred_check_branch
      %32 = sbr.rel (0) target = $region5
    $region4: #{forward.9} parent=1 // pred_region
      _
    $region5: #{forward.9} parent=1 // pred_fallthru
      _
    // Predicated region
    $region6: #{forward.9} parent=1 // pred_check
      _
    $region7: #{forward.9} parent=1 // pred_check_branch
      %34 = sbr.rel (0) target = $region9
    $region8: #{forward.9} parent=1 // pred_region
      _
    $region9: #{forward.9} parent=1 // pred_fallthru
      _
    // Predicated region
    $region10: #{forward.9} parent=1 // pred_check
      _
    $region11: #{forward.9} parent=1 // pred_check_branch
      %36 = sbr.rel (0) target = $region13
    $region12: #{forward.9} parent=1 // pred_region
      _
    $region13: #{forward.9} parent=1 // pred_fallthru
      _
    // Predicated region
    $region14: #{forward.9} parent=1 // pred_check
      _
    $region15: #{forward.9} parent=1 // pred_check_branch
      %38 = sbr.rel (0) target = $region17
    $region16: #{forward.9} parent=1 // pred_region
      _
    $region17: #{forward.9} parent=1 // pred_fallthru
      _
    // Predicated region
    $region18: #{forward.9} parent=1 // pred_check
      _
    $region19: #{forward.9} parent=1 // pred_check_branch
      %40 = sbr.rel (0) target = $region21
    $region20: #{forward.9} parent=1 // pred_region
      _
    $region21: #{forward.9} parent=1 // pred_fallthru
      _
    // Predicated region
    $region22: #{forward.9} parent=1 // pred_check
      _
    $region23: #{forward.9} parent=1 // pred_check_branch
      %42 = sbr.rel (0) target = $region25
    $region24: #{forward.9} parent=1 // pred_region
      _
    $region25: #{forward.9} parent=1 // pred_fallthru
      _
    // Predicated region
    $region26: #{forward.9} parent=1 // pred_check
      _
    $region27: #{forward.9} parent=1 // pred_check_branch
      %44 = sbr.rel (0) target = $region29
    $region28: #{forward.9} parent=1 // pred_region
      _
    $region29: #{forward.9} parent=1 // pred_fallthru
      _
    // Predicated region
    $region30: #{forward.9} parent=1 // pred_check
      _
    $region31: #{forward.9} parent=1 // pred_check_branch
      %46 = sbr.rel (0) target = $region33
    $region32: #{forward.9} parent=1 // pred_region
      _
    $region33: #{forward.9} parent=1 // pred_fallthru
      _
    // Predicated region
    $region34: #{forward.9} parent=1 // pred_check
      _
    $region35: #{forward.9} parent=1 // pred_check_branch
      %48 = sbr.rel (0) target = $region37
    $region36: #{forward.9} parent=1 // pred_region
      _
    $region37: #{forward.9} parent=1 // pred_fallthru
      _
    // Predicated region
    $region38: #{forward.9} parent=1 // pred_check
      _
    $region39: #{forward.9} parent=1 // pred_check_branch
      %50 = sbr.rel (0) target = $region41
    $region40: #{forward.9} parent=1 // pred_region
      _
    $region41: #{forward.9} parent=1 // pred_fallthru
      _
    // Predicated region
    $region42: #{forward.9} parent=1 // pred_check
      _
    $region43: #{forward.9} parent=1 // pred_check_branch
      %52 = sbr.rel (0) target = $region45
    $region44: #{forward.9} parent=1 // pred_region
      _
    $region45: #{forward.9} parent=1 // pred_fallthru
      _
    // Predicated region
    $region46: #{forward.9} parent=1 // pred_check
      _
    $region47: #{forward.9} parent=1 // pred_check_branch
      %54 = sbr.rel (0) target = $region49
    $region48: #{forward.9} parent=1 // pred_region
      _
    $region49: #{forward.9} parent=1 // pred_fallthru
      _
    // Predicated region
    $region50: #{forward.9} parent=1 // pred_check
      _
    $region51: #{forward.9} parent=1 // pred_check_branch
      %56 = sbr.rel (0) target = $region53
    $region52: #{forward.9} parent=1 // pred_region
      _
    $region53: #{forward.9} parent=1 // pred_fallthru
      _
    // Predicated region
    $region54: #{forward.9} parent=1 // pred_check
      _
    $region55: #{forward.9} parent=1 // pred_check_branch
      %58 = sbr.rel (0) target = $region57
    $region56: #{forward.9} parent=1 // pred_region
      _
    $region57: #{forward.9} parent=1 // pred_fallthru
      _
    // Predicated region
    $region58: #{forward.9} parent=1 // pred_check
      _
    $region59: #{forward.9} parent=1 // pred_check_branch
      %60 = sbr.rel (0) target = $region61
    $region60: #{forward.9} parent=1 // pred_region
      _
    $region61: #{forward.9} parent=1 // pred_fallthru
      _
    // Predicated region
    $region62: #{forward.9} parent=1 // pred_check
      _
    $region63: #{forward.9} parent=1 // pred_check_branch
      %62 = sbr.rel (0) target = $region65
    $region64: #{forward.9} parent=1 // pred_region
      _
    $region65: #{forward.9} parent=1 // pred_fallthru
      _
    // Predicated region
    $region66: #{forward.9} parent=1 // pred_check
      _
    $region67: #{forward.9} parent=1 // pred_check_branch
      %64 = sbr.rel (0) target = $region69
    $region68: #{forward.9} parent=1 // pred_region
      _
    $region69: #{forward.9} parent=1 // pred_fallthru
      _
    // Predicated region
    $region70: #{forward.9} parent=1 // pred_check
      _
    $region71: #{forward.9} parent=1 // pred_check_branch
      %66 = sbr.rel (0) target = $region73
    $region72: #{forward.9} parent=1 // pred_region
      _
    $region73: #{forward.9} parent=1 // pred_fallthru
      _
    // Predicated region
    $region74: #{forward.9} parent=1 // pred_check
      _
    $region75: #{forward.9} parent=1 // pred_check_branch
      %68 = sbr.rel (0) target = $region77
    $region76: #{forward.9} parent=1 // pred_region
      _
    $region77: #{forward.9} parent=1 // pred_fallthru
      _
    %v69 = vld [vmem:[%s0] sm:$0xff]
    %v70 = vld [vmem:[%s0 + $0x8] sm:$0xf]
    %v71 = vld [vmem:[%s2] sm:$0xff]
    %v72 = vld [vmem:[%s2 + $0x8] sm:$0xff]
    %v73 = vld [vmem:[%s2 + $0x10] sm:$0xff]
    %v74 = vld [vmem:[%s2 + $0x18] sm:$0xff]
    %v75 = vld [vmem:[%s2 + $0x20] sm:$0xff]
    %v76 = vld [vmem:[%s2 + $0x28] sm:$0xff]
    %v77 = vld [vmem:[%s2 + $0x30] sm:$0xff]
    %v78 = vld [vmem:[%s2 + $0x38] sm:$0xff]
    %v79 = vld [vmem:[%s2 + $0x40] sm:$0xff]
    %v80 = vld [vmem:[%s2 + $0x48] sm:$0xff]
    %v81 = vld [vmem:[%s2 + $0x50] sm:$0xff]
    %v82 = vld [vmem:[%s2 + $0x58] sm:$0xff]
    %v83 = vld [vmem:[%s2 + $0x60] sm:$0xff]
    %v84 = vld [vmem:[%s2 + $0x68] sm:$0xff]
    %v85 = vld [vmem:[%s2 + $0x70] sm:$0xff]
    %v86 = vld [vmem:[%s2 + $0x78] sm:$0xff]
    %v87 = vld [vmem:[%s2 + $0x80] sm:$0xff]
    %v88 = vld [vmem:[%s2 + $0x88] sm:$0xff]
    %v89 = vld [vmem:[%s2 + $0x90] sm:$0xff]
    %v90 = vld [vmem:[%s2 + $0x98] sm:$0xff]
    %v91 = vld [vmem:[%s2 + $0xa0] sm:$0xff]
    %v92 = vld [vmem:[%s2 + $0xa8] sm:$0xff]
    %v93 = vld [vmem:[%s2 + $0xb0] sm:$0xff]
    %v94 = vld [vmem:[%s2 + $0xb8] sm:$0xff]
    %v95 = vld [vmem:[%s2 + $0xc0] sm:$0xff]
    %v96 = vld [vmem:[%s2 + $0xc8] sm:$0xff]
    %v97 = vld [vmem:[%s2 + $0xd0] sm:$0xff]
    %v98 = vld [vmem:[%s2 + $0xd8] sm:$0xff]
    %v99 = vld [vmem:[%s2 + $0xe0] sm:$0xff]
    %v100 = vld [vmem:[%s2 + $0xe8] sm:$0xff]
    %v101 = vld [vmem:[%s2 + $0xf0] sm:$0xff]
    %v102 = vld [vmem:[%s2 + $0xf8] sm:$0xff]
    %v103 = vld [vmem:[%s2 + $0x100] sm:$0xff]
    %v104 = vld [vmem:[%s2 + $0x108] sm:$0xff]
    %v105 = vld [vmem:[%s2 + $0x110] sm:$0xff]
    %v106 = vld [vmem:[%s2 + $0x118] sm:$0xff]
    %v107 = vld [vmem:[%s2 + $0x120] sm:$0xff]
    %v108 = vld [vmem:[%s2 + $0x128] sm:$0xff]
    %v109 = vld [vmem:[%s2 + $0x130] sm:$0xff]
    %v110 = vld [vmem:[%s2 + $0x138] sm:$0xff]
    %v111 = vld [vmem:[%s2 + $0x140] sm:$0xff]
    %v112 = vld [vmem:[%s2 + $0x148] sm:$0xff]
    %v113 = vld [vmem:[%s2 + $0x150] sm:$0xff]
    %v114 = vld [vmem:[%s2 + $0x158] sm:$0xff]
    %v115 = vld [vmem:[%s2 + $0x160] sm:$0xff]
    %v116 = vld [vmem:[%s3] sm:$0x1]
    %v118 = vlaneseq
    %v119 = vshrl.u32 %v118, 7
    %v120 = vsub.s32 0, %v119
    %v121 = vrot.slane %v116, %v120
    %v125 = vcombine.high %v69, %v69
    %vm127 = vcmask 850944
    %v128 = vsel %vm127, %v70, 0
    %130 = vmatprep.subr.mxu0 0.0
    %131 = vmatpush1.msra.mxu0 %v71
    %132 = vmatprep.subr.mxu0 0.0
    %133 = vmatpush1.msra.mxu0 %v72
    %134 = vmatprep.subr.mxu0 0.0
    %135 = vmatpush1.msra.mxu0 %v73
    %136 = vmatprep.subr.mxu0 0.0
    %137 = vmatpush1.msra.mxu0 %v74
    %138 = vmatprep.subr.mxu0 0.0
    %139 = vmatpush1.msra.mxu0 %v75
    %140 = vmatprep.subr.mxu0 0.0
    %141 = vmatpush1.msra.mxu0 %v76
    %142 = vmatprep.subr.mxu0 0.0
    %143 = vmatpush1.msra.mxu0 %v77
    %144 = vmatprep.subr.mxu0 0.0
    %145 = vmatpush1.msra.mxu0 %v78
    %146 = vmatprep.subr.mxu0 0.0
    %147 = vmatpush1.msra.mxu0 %v79
    %148 = vmatprep.subr.mxu0 0.0
    %149 = vmatpush1.msra.mxu0 %v80
    %150 = vmatprep.subr.mxu0 0.0
    %151 = vmatpush1.msra.mxu0 %v81
    %152 = vmatprep.subr.mxu0 0.0
    %153 = vmatpush1.msra.mxu0 %v82
    %154 = vmatprep.subr.mxu0 0.0
    %155 = vmatpush1.msra.mxu0 %v83
    %156 = vmatprep.subr.mxu0 0.0
    %157 = vmatpush1.msra.mxu0 %v84
    %158 = vmatprep.subr.mxu0 0.0
    %159 = vmatpush1.msra.mxu0 %v85
    %160 = vmatprep.subr.mxu0 0.0
    %161 = vmatpush1.msra.mxu0 %v86
    %162 = vmatprep.subr.mxu0 0.0
    %163 = vmatpush1.msra.mxu0 %v87
    %164 = vmatprep.subr.mxu0 0.0
    %165 = vmatpush1.msra.mxu0 %v88
    %166 = vmatprep.subr.mxu0 0.0
    %167 = vmatpush1.msra.mxu0 %v89
    %168 = vmatprep.subr.mxu0 0.0
    %169 = vmatpush1.msra.mxu0 %v90
    %170 = vmatprep.subr.mxu0 0.0
    %171 = vmatpush1.msra.mxu0 %v91
    %172 = vmatprep.subr.mxu0 0.0
    %173 = vmatpush1.msra.mxu0 %v92
    %174 = vmatprep.subr.mxu0 0.0
    %175 = vmatpush1.msra.mxu0 %v93
    %176 = vmatprep.subr.mxu0 0.0
    %177 = vmatpush1.msra.mxu0 %v94
    %178 = vmatprep.subr.mxu0 0.0
    %179 = vmatpush1.msra.mxu0 %v95
    %180 = vmatprep.subr.mxu0 0.0
    %181 = vmatpush1.msra.mxu0 %v96
    %182 = vmatprep.subr.mxu0 0.0
    %183 = vmatpush1.msra.mxu0 %v97
    %184 = vmatprep.subr.mxu0 0.0
    %185 = vmatpush1.msra.mxu0 %v98
    %186 = vmatprep.subr.mxu0 0.0
    %187 = vmatpush1.msra.mxu0 %v99
    %188 = vmatprep.subr.mxu0 0.0
    %189 = vmatpush1.msra.mxu0 %v100
    %190 = vmatprep.subr.mxu0 0.0
    %191 = vmatpush1.msra.mxu0 %v101
    %192 = vmatprep.subr.mxu0 0.0
    %193 = vmatpush1.msra.mxu0 %v102
    %194 = vmatprep.mubr.f32.mxu0 %v125
    %195 = vmatmul.mubr.f32.gmra.mrb[0].mxu0 %v69
    %v196 = vpop.f32.mrb[0].mxu0
    %v197 = vadd.f32 %v121, %v196
    %v198 = vpop.f32.mrb[0].mxu0
    %199 = vdwg.mxu0
    %200 = vmatprep.subr.mxu0 0.0
    %201 = vmatpush1.msra.mxu0 %v103
    %202 = vmatprep.subr.mxu0 0.0
    %203 = vmatpush1.msra.mxu0 %v104
    %204 = vmatprep.subr.mxu0 0.0
    %205 = vmatpush1.msra.mxu0 %v105
    %206 = vmatprep.subr.mxu0 0.0
    %207 = vmatpush1.msra.mxu0 %v106
    %208 = vmatprep.subr.mxu0 0.0
    %209 = vmatpush1.msra.mxu0 %v107
    %210 = vmatprep.subr.mxu0 0.0
    %211 = vmatpush1.msra.mxu0 %v108
    %212 = vmatprep.subr.mxu0 0.0
    %213 = vmatpush1.msra.mxu0 %v109
    %214 = vmatprep.subr.mxu0 0.0
    %215 = vmatpush1.msra.mxu0 %v110
    %216 = vmatprep.subr.mxu0 0.0
    %217 = vmatpush1.msra.mxu0 %v111
    %218 = vmatprep.subr.mxu0 0.0
    %219 = vmatpush1.msra.mxu0 %v112
    %220 = vmatprep.subr.mxu0 0.0
    %221 = vmatpush1.msra.mxu0 %v113
    %222 = vmatprep.subr.mxu0 0.0
    %223 = vmatpush1.msra.mxu0 %v114
    %224 = vmatprep.subr.mxu0 0.0
    %225 = vmatpush1.msra.mxu0 %v115
    %226 = vmatprep.subr.mxu0 0.0
    %227 = vmatpush1.msra.mxu0 0.0
    %228 = vmatprep.subr.mxu0 0.0
    %229 = vmatpush1.msra.mxu0 0.0
    %230 = vmatprep.subr.mxu0 0.0
    %231 = vmatpush1.msra.mxu0 0.0
    %232 = vmatprep.subr.mxu0 0.0
    %233 = vmatpush1.msra.mxu0 0.0
    %234 = vmatprep.subr.mxu0 0.0
    %235 = vmatpush1.msra.mxu0 0.0
    %236 = vmatprep.subr.mxu0 0.0
    %237 = vmatpush1.msra.mxu0 0.0
    %238 = vmatprep.subr.mxu0 0.0
    %239 = vmatpush1.msra.mxu0 0.0
    %240 = vmatprep.subr.mxu0 0.0
    %241 = vmatpush1.msra.mxu0 0.0
    %242 = vmatprep.subr.mxu0 0.0
    %243 = vmatpush1.msra.mxu0 0.0
    %244 = vmatprep.subr.mxu0 0.0
    %245 = vmatpush1.msra.mxu0 0.0
    %246 = vmatprep.subr.mxu0 0.0
    %247 = vmatpush1.msra.mxu0 0.0
    %248 = vmatprep.subr.mxu0 0.0
    %249 = vmatpush1.msra.mxu0 0.0
    %250 = vmatprep.subr.mxu0 0.0
    %251 = vmatpush1.msra.mxu0 0.0
    %252 = vmatprep.subr.mxu0 0.0
    %253 = vmatpush1.msra.mxu0 0.0
    %254 = vmatprep.subr.mxu0 0.0
    %255 = vmatpush1.msra.mxu0 0.0
    %256 = vmatprep.subr.mxu0 0.0
    %257 = vmatpush1.msra.mxu0 0.0
    %258 = vmatprep.subr.mxu0 0.0
    %259 = vmatpush1.msra.mxu0 0.0
    %260 = vmatprep.subr.mxu0 0.0
    %261 = vmatpush1.msra.mxu0 0.0
    %262 = vmatprep.subr.mxu0 0.0
    %263 = vmatpush1.msra.mxu0 0.0
    %264 = vmatprep.mubr.f32.mxu0 0.0
    %265 = vmatmul.mubr.f32.gmra.mrb[0].mxu0 %v128
    %v266 = vpop.f32.mrb[0].mxu0
    %v267 = vadd.f32 %v197, %v266
    %v268 = vpop.f32.mrb[0].mxu0
    %269 = vdwg.mxu0
    %v270 = vld [vmem:[%s1] sm:$0xf]
    %v271 = vld [vmem:[%s4] sm:$0x1f]
    %vm272 = vcmask 39936
    %v274 = vsel %vm272, %v267, 0
    %vm276 = vcmask 1044480
    %v278 = vsel %vm276, %v271, 0
    %280 = vmatprep.subr.mxu0 0.0
    %281 = vmatpush1.msra.mxu0 %v278
    %282 = vmatprep.subr.mxu0 0.0
    %283 = vmatpush1.msra.mxu0 0.0
    %284 = vmatprep.subr.mxu0 0.0
    %285 = vmatpush1.msra.mxu0 0.0
    %286 = vmatprep.subr.mxu0 0.0
    %287 = vmatpush1.msra.mxu0 0.0
    %288 = vmatprep.subr.mxu0 0.0
    %289 = vmatpush1.msra.mxu0 0.0
    %290 = vmatprep.subr.mxu0 0.0
    %291 = vmatpush1.msra.mxu0 0.0
    %292 = vmatprep.subr.mxu0 0.0
    %293 = vmatpush1.msra.mxu0 0.0
    %294 = vmatprep.subr.mxu0 0.0
    %295 = vmatpush1.msra.mxu0 0.0
    %296 = vmatprep.subr.mxu0 0.0
    %297 = vmatpush1.msra.mxu0 0.0
    %298 = vmatprep.subr.mxu0 0.0
    %299 = vmatpush1.msra.mxu0 0.0
    %300 = vmatprep.subr.mxu0 0.0
    %301 = vmatpush1.msra.mxu0 0.0
    %302 = vmatprep.subr.mxu0 0.0
    %303 = vmatpush1.msra.mxu0 0.0
    %304 = vmatprep.subr.mxu0 0.0
    %305 = vmatpush1.msra.mxu0 0.0
    %306 = vmatprep.subr.mxu0 0.0
    %307 = vmatpush1.msra.mxu0 0.0
    %308 = vmatprep.subr.mxu0 0.0
    %309 = vmatpush1.msra.mxu0 0.0
    %310 = vmatprep.subr.mxu0 0.0
    %311 = vmatpush1.msra.mxu0 0.0
    %312 = vmatprep.subr.mxu0 0.0
    %313 = vmatpush1.msra.mxu0 0.0
    %314 = vmatprep.subr.mxu0 0.0
    %315 = vmatpush1.msra.mxu0 0.0
    %316 = vmatprep.subr.mxu0 0.0
    %317 = vmatpush1.msra.mxu0 0.0
    %318 = vmatprep.subr.mxu0 0.0
    %319 = vmatpush1.msra.mxu0 0.0
    %320 = vmatprep.subr.mxu0 0.0
    %321 = vmatpush1.msra.mxu0 0.0
    %322 = vmatprep.subr.mxu0 0.0
    %323 = vmatpush1.msra.mxu0 0.0
    %324 = vmatprep.subr.mxu0 0.0
    %325 = vmatpush1.msra.mxu0 0.0
    %326 = vmatprep.subr.mxu0 0.0
    %327 = vmatpush1.msra.mxu0 0.0
    %328 = vmatprep.subr.mxu0 0.0
    %329 = vmatpush1.msra.mxu0 0.0
    %330 = vmatprep.subr.mxu0 0.0
    %331 = vmatpush1.msra.mxu0 0.0
    %332 = vmatprep.subr.mxu0 0.0
    %333 = vmatpush1.msra.mxu0 0.0
    %334 = vmatprep.subr.mxu0 0.0
    %335 = vmatpush1.msra.mxu0 0.0
    %336 = vmatprep.subr.mxu0 0.0
    %337 = vmatpush1.msra.mxu0 0.0
    %338 = vmatprep.subr.mxu0 0.0
    %339 = vmatpush1.msra.mxu0 0.0
    %340 = vmatprep.subr.mxu0 0.0
    %341 = vmatpush1.msra.mxu0 0.0
    %342 = vmatprep.subr.mxu0 0.0
    %343 = vmatpush1.msra.mxu0 0.0
    %344 = vmatprep.mubr.f32.mxu0 0.0
    %345 = vmatmul.mubr.f32.gmra.mrb[0].mxu0 %v274
    %v346 = vpop.f32.mrb[0].mxu0
    %v347 = vadd.f32 0.0, %v346
    %v348 = vpop.f32.mrb[0].mxu0
    %349 = vdwg.mxu0
    %v351 = vsel %vm272, %v270, 0
    %353 = vmatprep.subr.mxu0 0.0
    %354 = vmatpush1.msra.mxu0 %v278
    %355 = vmatprep.subr.mxu0 0.0
    %356 = vmatpush1.msra.mxu0 0.0
    %357 = vmatprep.subr.mxu0 0.0
    %358 = vmatpush1.msra.mxu0 0.0
    %359 = vmatprep.subr.mxu0 0.0
    %360 = vmatpush1.msra.mxu0 0.0
    %361 = vmatprep.subr.mxu0 0.0
    %362 = vmatpush1.msra.mxu0 0.0
    %363 = vmatprep.subr.mxu0 0.0
    %364 = vmatpush1.msra.mxu0 0.0
    %365 = vmatprep.subr.mxu0 0.0
    %366 = vmatpush1.msra.mxu0 0.0
    %367 = vmatprep.subr.mxu0 0.0
    %368 = vmatpush1.msra.mxu0 0.0
    %369 = vmatprep.subr.mxu0 0.0
    %370 = vmatpush1.msra.mxu0 0.0
    %371 = vmatprep.subr.mxu0 0.0
    %372 = vmatpush1.msra.mxu0 0.0
    %373 = vmatprep.subr.mxu0 0.0
    %374 = vmatpush1.msra.mxu0 0.0
    %375 = vmatprep.subr.mxu0 0.0
    %376 = vmatpush1.msra.mxu0 0.0
    %377 = vmatprep.subr.mxu0 0.0
    %378 = vmatpush1.msra.mxu0 0.0
    %379 = vmatprep.subr.mxu0 0.0
    %380 = vmatpush1.msra.mxu0 0.0
    %381 = vmatprep.subr.mxu0 0.0
    %382 = vmatpush1.msra.mxu0 0.0
    %383 = vmatprep.subr.mxu0 0.0
    %384 = vmatpush1.msra.mxu0 0.0
    %385 = vmatprep.subr.mxu0 0.0
    %386 = vmatpush1.msra.mxu0 0.0
    %387 = vmatprep.subr.mxu0 0.0
    %388 = vmatpush1.msra.mxu0 0.0
    %389 = vmatprep.subr.mxu0 0.0
    %390 = vmatpush1.msra.mxu0 0.0
    %391 = vmatprep.subr.mxu0 0.0
    %392 = vmatpush1.msra.mxu0 0.0
    %393 = vmatprep.subr.mxu0 0.0
    %394 = vmatpush1.msra.mxu0 0.0
    %395 = vmatprep.subr.mxu0 0.0
    %396 = vmatpush1.msra.mxu0 0.0
    %397 = vmatprep.subr.mxu0 0.0
    %398 = vmatpush1.msra.mxu0 0.0
    %399 = vmatprep.subr.mxu0 0.0
    %400 = vmatpush1.msra.mxu0 0.0
    %401 = vmatprep.subr.mxu0 0.0
    %402 = vmatpush1.msra.mxu0 0.0
    %403 = vmatprep.subr.mxu0 0.0
    %404 = vmatpush1.msra.mxu0 0.0
    %405 = vmatprep.subr.mxu0 0.0
    %406 = vmatpush1.msra.mxu0 0.0
    %407 = vmatprep.subr.mxu0 0.0
    %408 = vmatpush1.msra.mxu0 0.0
    %409 = vmatprep.subr.mxu0 0.0
    %410 = vmatpush1.msra.mxu0 0.0
    %411 = vmatprep.subr.mxu0 0.0
    %412 = vmatpush1.msra.mxu0 0.0
    %413 = vmatprep.subr.mxu0 0.0
    %414 = vmatpush1.msra.mxu0 0.0
    %415 = vmatprep.subr.mxu0 0.0
    %416 = vmatpush1.msra.mxu0 0.0
    %417 = vmatprep.mubr.f32.mxu0 0.0
    %418 = vmatmul.mubr.f32.gmra.mrb[0].mxu0 %v351
    %v419 = vpop.f32.mrb[0].mxu0
    %v420 = vadd.f32 0.0, %v419
    %v421 = vpop.f32.mrb[0].mxu0
    %422 = vdwg.mxu0
    %v423 = vld [vmem:[%s5] sm:$0xf]
    %v424 = vld [vmem:[%s6] sm:$0xf]
    %vm425 = vcmask 31744
    %v427 = vsel %vm425, %v424, 0
    %vm429 = vcmask 1043456
    %v431 = vsel %vm429, %v420, 0
    %433 = vmatprep.subr.mxu0 0.0
    %434 = vmatpush1.msra.mxu0 %v431
    %435 = vmatprep.subr.mxu0 0.0
    %436 = vmatpush1.msra.mxu0 0.0
    %437 = vmatprep.subr.mxu0 0.0
    %438 = vmatpush1.msra.mxu0 0.0
    %439 = vmatprep.subr.mxu0 0.0
    %440 = vmatpush1.msra.mxu0 0.0
    %441 = vmatprep.subr.mxu0 0.0
    %442 = vmatpush1.msra.mxu0 0.0
    %443 = vmatprep.subr.mxu0 0.0
    %444 = vmatpush1.msra.mxu0 0.0
    %445 = vmatprep.subr.mxu0 0.0
    %446 = vmatpush1.msra.mxu0 0.0
    %447 = vmatprep.subr.mxu0 0.0
    %448 = vmatpush1.msra.mxu0 0.0
    %449 = vmatprep.subr.mxu0 0.0
    %450 = vmatpush1.msra.mxu0 0.0
    %451 = vmatprep.subr.mxu0 0.0
    %452 = vmatpush1.msra.mxu0 0.0
    %453 = vmatprep.subr.mxu0 0.0
    %454 = vmatpush1.msra.mxu0 0.0
    %455 = vmatprep.subr.mxu0 0.0
    %456 = vmatpush1.msra.mxu0 0.0
    %457 = vmatprep.subr.mxu0 0.0
    %458 = vmatpush1.msra.mxu0 0.0
    %459 = vmatprep.subr.mxu0 0.0
    %460 = vmatpush1.msra.mxu0 0.0
    %461 = vmatprep.subr.mxu0 0.0
    %462 = vmatpush1.msra.mxu0 0.0
    %463 = vmatprep.subr.mxu0 0.0
    %464 = vmatpush1.msra.mxu0 0.0
    %465 = vmatprep.subr.mxu0 0.0
    %466 = vmatpush1.msra.mxu0 0.0
    %467 = vmatprep.subr.mxu0 0.0
    %468 = vmatpush1.msra.mxu0 0.0
    %469 = vmatprep.subr.mxu0 0.0
    %470 = vmatpush1.msra.mxu0 0.0
    %471 = vmatprep.subr.mxu0 0.0
    %472 = vmatpush1.msra.mxu0 0.0
    %473 = vmatprep.subr.mxu0 0.0
    %474 = vmatpush1.msra.mxu0 0.0
    %475 = vmatprep.subr.mxu0 0.0
    %476 = vmatpush1.msra.mxu0 0.0
    %477 = vmatprep.subr.mxu0 0.0
    %478 = vmatpush1.msra.mxu0 0.0
    %479 = vmatprep.subr.mxu0 0.0
    %480 = vmatpush1.msra.mxu0 0.0
    %481 = vmatprep.subr.mxu0 0.0
    %482 = vmatpush1.msra.mxu0 0.0
    %483 = vmatprep.subr.mxu0 0.0
    %484 = vmatpush1.msra.mxu0 0.0
    %485 = vmatprep.subr.mxu0 0.0
    %486 = vmatpush1.msra.mxu0 0.0
    %487 = vmatprep.subr.mxu0 0.0
    %488 = vmatpush1.msra.mxu0 0.0
    %489 = vmatprep.subr.mxu0 0.0
    %490 = vmatpush1.msra.mxu0 0.0
    %491 = vmatprep.subr.mxu0 0.0
    %492 = vmatpush1.msra.mxu0 0.0
    %493 = vmatprep.subr.mxu0 0.0
    %494 = vmatpush1.msra.mxu0 0.0
    %495 = vmatprep.subr.mxu0 0.0
    %496 = vmatpush1.msra.mxu0 0.0
    %497 = vmatprep.mubr.f32.mxu0 0.0
    %498 = vmatmul.mubr.f32.gmra.mrb[0].mxu0 %v427
    %v499 = vpop.f32.mrb[0].mxu0
    %v500 = vadd.f32 0.0, %v499
    %v501 = vpop.f32.mrb[0].mxu0
    %502 = vdwg.mxu0
    %v504 = vsel %vm425, %v423, 0
    %v507 = vsel %vm429, %v347, 0
    %509 = vmatprep.subr.mxu0 0.0
    %510 = vmatpush1.msra.mxu0 %v507
    %511 = vmatprep.subr.mxu0 0.0
    %512 = vmatpush1.msra.mxu0 0.0
    %513 = vmatprep.subr.mxu0 0.0
    %514 = vmatpush1.msra.mxu0 0.0
    %515 = vmatprep.subr.mxu0 0.0
    %516 = vmatpush1.msra.mxu0 0.0
    %517 = vmatprep.subr.mxu0 0.0
    %518 = vmatpush1.msra.mxu0 0.0
    %519 = vmatprep.subr.mxu0 0.0
    %520 = vmatpush1.msra.mxu0 0.0
    %521 = vmatprep.subr.mxu0 0.0
    %522 = vmatpush1.msra.mxu0 0.0
    %523 = vmatprep.subr.mxu0 0.0
    %524 = vmatpush1.msra.mxu0 0.0
    %525 = vmatprep.subr.mxu0 0.0
    %526 = vmatpush1.msra.mxu0 0.0
    %527 = vmatprep.subr.mxu0 0.0
    %528 = vmatpush1.msra.mxu0 0.0
    %529 = vmatprep.subr.mxu0 0.0
    %530 = vmatpush1.msra.mxu0 0.0
    %531 = vmatprep.subr.mxu0 0.0
    %532 = vmatpush1.msra.mxu0 0.0
    %533 = vmatprep.subr.mxu0 0.0
    %534 = vmatpush1.msra.mxu0 0.0
    %535 = vmatprep.subr.mxu0 0.0
    %536 = vmatpush1.msra.mxu0 0.0
    %537 = vmatprep.subr.mxu0 0.0
    %538 = vmatpush1.msra.mxu0 0.0
    %539 = vmatprep.subr.mxu0 0.0
    %540 = vmatpush1.msra.mxu0 0.0
    %541 = vmatprep.subr.mxu0 0.0
    %542 = vmatpush1.msra.mxu0 0.0
    %543 = vmatprep.subr.mxu0 0.0
    %544 = vmatpush1.msra.mxu0 0.0
    %545 = vmatprep.subr.mxu0 0.0
    %546 = vmatpush1.msra.mxu0 0.0
    %547 = vmatprep.subr.mxu0 0.0
    %548 = vmatpush1.msra.mxu0 0.0
    %549 = vmatprep.subr.mxu0 0.0
    %550 = vmatpush1.msra.mxu0 0.0
    %551 = vmatprep.subr.mxu0 0.0
    %552 = vmatpush1.msra.mxu0 0.0
    %553 = vmatprep.subr.mxu0 0.0
    %554 = vmatpush1.msra.mxu0 0.0
    %555 = vmatprep.subr.mxu0 0.0
    %556 = vmatpush1.msra.mxu0 0.0
    %557 = vmatprep.subr.mxu0 0.0
    %558 = vmatpush1.msra.mxu0 0.0
    %559 = vmatprep.subr.mxu0 0.0
    %560 = vmatpush1.msra.mxu0 0.0
    %561 = vmatprep.subr.mxu0 0.0
    %562 = vmatpush1.msra.mxu0 0.0
    %563 = vmatprep.subr.mxu0 0.0
    %564 = vmatpush1.msra.mxu0 0.0
    %565 = vmatprep.subr.mxu0 0.0
    %566 = vmatpush1.msra.mxu0 0.0
    %567 = vmatprep.subr.mxu0 0.0
    %568 = vmatpush1.msra.mxu0 0.0
    %569 = vmatprep.subr.mxu0 0.0
    %570 = vmatpush1.msra.mxu0 0.0
    %571 = vmatprep.subr.mxu0 0.0
    %572 = vmatpush1.msra.mxu0 0.0
    %573 = vmatprep.mubr.f32.mxu0 0.0
    %574 = vmatmul.mubr.f32.gmra.mrb[0].mxu0 %v504
    %v575 = vpop.f32.mrb[0].mxu0
    %v576 = vadd.f32 %v500, %v575
    %v577 = vpop.f32.mrb[0].mxu0
    %578 = vdwg.mxu0
    %s579 = scalar_lea.vmem %s4, 8
    %v580 = vld [vmem:[%s579] sm:$0x1f]
    %v582 = vsel %vm276, %v580, 0
    %584 = vmatprep.subr.mxu0 0.0
    %585 = vmatpush1.msra.mxu0 %v582
    %586 = vmatprep.subr.mxu0 0.0
    %587 = vmatpush1.msra.mxu0 0.0
    %588 = vmatprep.subr.mxu0 0.0
    %589 = vmatpush1.msra.mxu0 0.0
    %590 = vmatprep.subr.mxu0 0.0
    %591 = vmatpush1.msra.mxu0 0.0
    %592 = vmatprep.subr.mxu0 0.0
    %593 = vmatpush1.msra.mxu0 0.0
    %594 = vmatprep.subr.mxu0 0.0
    %595 = vmatpush1.msra.mxu0 0.0
    %596 = vmatprep.subr.mxu0 0.0
    %597 = vmatpush1.msra.mxu0 0.0
    %598 = vmatprep.subr.mxu0 0.0
    %599 = vmatpush1.msra.mxu0 0.0
    %600 = vmatprep.subr.mxu0 0.0
    %601 = vmatpush1.msra.mxu0 0.0
    %602 = vmatprep.subr.mxu0 0.0
    %603 = vmatpush1.msra.mxu0 0.0
    %604 = vmatprep.subr.mxu0 0.0
    %605 = vmatpush1.msra.mxu0 0.0
    %606 = vmatprep.subr.mxu0 0.0
    %607 = vmatpush1.msra.mxu0 0.0
    %608 = vmatprep.subr.mxu0 0.0
    %609 = vmatpush1.msra.mxu0 0.0
    %610 = vmatprep.subr.mxu0 0.0
    %611 = vmatpush1.msra.mxu0 0.0
    %612 = vmatprep.subr.mxu0 0.0
    %613 = vmatpush1.msra.mxu0 0.0
    %614 = vmatprep.subr.mxu0 0.0
    %615 = vmatpush1.msra.mxu0 0.0
    %616 = vmatprep.subr.mxu0 0.0
    %617 = vmatpush1.msra.mxu0 0.0
    %618 = vmatprep.subr.mxu0 0.0
    %619 = vmatpush1.msra.mxu0 0.0
    %620 = vmatprep.subr.mxu0 0.0
    %621 = vmatpush1.msra.mxu0 0.0
    %622 = vmatprep.subr.mxu0 0.0
    %623 = vmatpush1.msra.mxu0 0.0
    %624 = vmatprep.subr.mxu0 0.0
    %625 = vmatpush1.msra.mxu0 0.0
    %626 = vmatprep.subr.mxu0 0.0
    %627 = vmatpush1.msra.mxu0 0.0
    %628 = vmatprep.subr.mxu0 0.0
    %629 = vmatpush1.msra.mxu0 0.0
    %630 = vmatprep.subr.mxu0 0.0
    %631 = vmatpush1.msra.mxu0 0.0
    %632 = vmatprep.subr.mxu0 0.0
    %633 = vmatpush1.msra.mxu0 0.0
    %634 = vmatprep.subr.mxu0 0.0
    %635 = vmatpush1.msra.mxu0 0.0
    %636 = vmatprep.subr.mxu0 0.0
    %637 = vmatpush1.msra.mxu0 0.0
    %638 = vmatprep.subr.mxu0 0.0
    %639 = vmatpush1.msra.mxu0 0.0
    %640 = vmatprep.subr.mxu0 0.0
    %641 = vmatpush1.msra.mxu0 0.0
    %642 = vmatprep.subr.mxu0 0.0
    %643 = vmatpush1.msra.mxu0 0.0
    %644 = vmatprep.subr.mxu0 0.0
    %645 = vmatpush1.msra.mxu0 0.0
    %646 = vmatprep.subr.mxu0 0.0
    %647 = vmatpush1.msra.mxu0 0.0
    %648 = vmatprep.mubr.f32.mxu0 0.0
    %649 = vmatmul.mubr.f32.gmra.mrb[0].mxu0 %v274
    %v650 = vpop.f32.mrb[0].mxu0
    %v651 = vadd.f32 0.0, %v650
    %v652 = vpop.f32.mrb[0].mxu0
    %653 = vdwg.mxu0
    %654 = vmatprep.subr.mxu0 0.0
    %655 = vmatpush1.msra.mxu0 %v582
    %656 = vmatprep.subr.mxu0 0.0
    %657 = vmatpush1.msra.mxu0 0.0
    %658 = vmatprep.subr.mxu0 0.0
    %659 = vmatpush1.msra.mxu0 0.0
    %660 = vmatprep.subr.mxu0 0.0
    %661 = vmatpush1.msra.mxu0 0.0
    %662 = vmatprep.subr.mxu0 0.0
    %663 = vmatpush1.msra.mxu0 0.0
    %664 = vmatprep.subr.mxu0 0.0
    %665 = vmatpush1.msra.mxu0 0.0
    %666 = vmatprep.subr.mxu0 0.0
    %667 = vmatpush1.msra.mxu0 0.0
    %668 = vmatprep.subr.mxu0 0.0
    %669 = vmatpush1.msra.mxu0 0.0
    %670 = vmatprep.subr.mxu0 0.0
    %671 = vmatpush1.msra.mxu0 0.0
    %672 = vmatprep.subr.mxu0 0.0
    %673 = vmatpush1.msra.mxu0 0.0
    %674 = vmatprep.subr.mxu0 0.0
    %675 = vmatpush1.msra.mxu0 0.0
    %676 = vmatprep.subr.mxu0 0.0
    %677 = vmatpush1.msra.mxu0 0.0
    %678 = vmatprep.subr.mxu0 0.0
    %679 = vmatpush1.msra.mxu0 0.0
    %680 = vmatprep.subr.mxu0 0.0
    %681 = vmatpush1.msra.mxu0 0.0
    %682 = vmatprep.subr.mxu0 0.0
    %683 = vmatpush1.msra.mxu0 0.0
    %684 = vmatprep.subr.mxu0 0.0
    %685 = vmatpush1.msra.mxu0 0.0
    %686 = vmatprep.subr.mxu0 0.0
    %687 = vmatpush1.msra.mxu0 0.0
    %688 = vmatprep.subr.mxu0 0.0
    %689 = vmatpush1.msra.mxu0 0.0
    %690 = vmatprep.subr.mxu0 0.0
    %691 = vmatpush1.msra.mxu0 0.0
    %692 = vmatprep.subr.mxu0 0.0
    %693 = vmatpush1.msra.mxu0 0.0
    %694 = vmatprep.subr.mxu0 0.0
    %695 = vmatpush1.msra.mxu0 0.0
    %696 = vmatprep.subr.mxu0 0.0
    %697 = vmatpush1.msra.mxu0 0.0
    %698 = vmatprep.subr.mxu0 0.0
    %699 = vmatpush1.msra.mxu0 0.0
    %700 = vmatprep.subr.mxu0 0.0
    %701 = vmatpush1.msra.mxu0 0.0
    %702 = vmatprep.subr.mxu0 0.0
    %703 = vmatpush1.msra.mxu0 0.0
    %704 = vmatprep.subr.mxu0 0.0
    %705 = vmatpush1.msra.mxu0 0.0
    %706 = vmatprep.subr.mxu0 0.0
    %707 = vmatpush1.msra.mxu0 0.0
    %708 = vmatprep.subr.mxu0 0.0
    %709 = vmatpush1.msra.mxu0 0.0
    %710 = vmatprep.subr.mxu0 0.0
    %711 = vmatpush1.msra.mxu0 0.0
    %712 = vmatprep.subr.mxu0 0.0
    %713 = vmatpush1.msra.mxu0 0.0
    %714 = vmatprep.subr.mxu0 0.0
    %715 = vmatpush1.msra.mxu0 0.0
    %716 = vmatprep.subr.mxu0 0.0
    %717 = vmatpush1.msra.mxu0 0.0
    %718 = vmatprep.mubr.f32.mxu0 0.0
    %719 = vmatmul.mubr.f32.gmra.mrb[0].mxu0 %v351
    %v720 = vpop.f32.mrb[0].mxu0
    %v721 = vadd.f32 0.0, %v720
    %v722 = vpop.f32.mrb[0].mxu0
    %723 = vdwg.mxu0
    %s724 = scalar_lea.vmem %s5, 4
    %v725 = vld [vmem:[%s724] sm:$0xf]
    %s726 = scalar_lea.vmem %s6, 4
    %v727 = vld [vmem:[%s726] sm:$0xf]
    %v729 = vsel %vm425, %v727, 0
    %v732 = vsel %vm429, %v721, 0
    %734 = vmatprep.subr.mxu0 0.0
    %735 = vmatpush1.msra.mxu0 %v732
    %736 = vmatprep.subr.mxu0 0.0
    %737 = vmatpush1.msra.mxu0 0.0
    %738 = vmatprep.subr.mxu0 0.0
    %739 = vmatpush1.msra.mxu0 0.0
    %740 = vmatprep.subr.mxu0 0.0
    %741 = vmatpush1.msra.mxu0 0.0
    %742 = vmatprep.subr.mxu0 0.0
    %743 = vmatpush1.msra.mxu0 0.0
    %744 = vmatprep.subr.mxu0 0.0
    %745 = vmatpush1.msra.mxu0 0.0
    %746 = vmatprep.subr.mxu0 0.0
    %747 = vmatpush1.msra.mxu0 0.0
    %748 = vmatprep.subr.mxu0 0.0
    %749 = vmatpush1.msra.mxu0 0.0
    %750 = vmatprep.subr.mxu0 0.0
    %751 = vmatpush1.msra.mxu0 0.0
    %752 = vmatprep.subr.mxu0 0.0
    %753 = vmatpush1.msra.mxu0 0.0
    %754 = vmatprep.subr.mxu0 0.0
    %755 = vmatpush1.msra.mxu0 0.0
    %756 = vmatprep.subr.mxu0 0.0
    %757 = vmatpush1.msra.mxu0 0.0
    %758 = vmatprep.subr.mxu0 0.0
    %759 = vmatpush1.msra.mxu0 0.0
    %760 = vmatprep.subr.mxu0 0.0
    %761 = vmatpush1.msra.mxu0 0.0
    %762 = vmatprep.subr.mxu0 0.0
    %763 = vmatpush1.msra.mxu0 0.0
    %764 = vmatprep.subr.mxu0 0.0
    %765 = vmatpush1.msra.mxu0 0.0
    %766 = vmatprep.subr.mxu0 0.0
    %767 = vmatpush1.msra.mxu0 0.0
    %768 = vmatprep.subr.mxu0 0.0
    %769 = vmatpush1.msra.mxu0 0.0
    %770 = vmatprep.subr.mxu0 0.0
    %771 = vmatpush1.msra.mxu0 0.0
    %772 = vmatprep.subr.mxu0 0.0
    %773 = vmatpush1.msra.mxu0 0.0
    %774 = vmatprep.subr.mxu0 0.0
    %775 = vmatpush1.msra.mxu0 0.0
    %776 = vmatprep.subr.mxu0 0.0
    %777 = vmatpush1.msra.mxu0 0.0
    %778 = vmatprep.subr.mxu0 0.0
    %779 = vmatpush1.msra.mxu0 0.0
    %780 = vmatprep.subr.mxu0 0.0
    %781 = vmatpush1.msra.mxu0 0.0
    %782 = vmatprep.subr.mxu0 0.0
    %783 = vmatpush1.msra.mxu0 0.0
    %784 = vmatprep.subr.mxu0 0.0
    %785 = vmatpush1.msra.mxu0 0.0
    %786 = vmatprep.subr.mxu0 0.0
    %787 = vmatpush1.msra.mxu0 0.0
    %788 = vmatprep.subr.mxu0 0.0
    %789 = vmatpush1.msra.mxu0 0.0
    %790 = vmatprep.subr.mxu0 0.0
    %791 = vmatpush1.msra.mxu0 0.0
    %792 = vmatprep.subr.mxu0 0.0
    %793 = vmatpush1.msra.mxu0 0.0
    %794 = vmatprep.subr.mxu0 0.0
    %795 = vmatpush1.msra.mxu0 0.0
    %796 = vmatprep.subr.mxu0 0.0
    %797 = vmatpush1.msra.mxu0 0.0
    %798 = vmatprep.mubr.f32.mxu0 0.0
    %799 = vmatmul.mubr.f32.gmra.mrb[0].mxu0 %v729
    %v800 = vpop.f32.mrb[0].mxu0
    %v801 = vadd.f32 0.0, %v800
    %v802 = vpop.f32.mrb[0].mxu0
    %803 = vdwg.mxu0
    %v805 = vsel %vm425, %v725, 0
    %v808 = vsel %vm429, %v651, 0
    %810 = vmatprep.subr.mxu0 0.0
    %811 = vmatpush1.msra.mxu0 %v808
    %812 = vmatprep.subr.mxu0 0.0
    %813 = vmatpush1.msra.mxu0 0.0
    %814 = vmatprep.subr.mxu0 0.0
    %815 = vmatpush1.msra.mxu0 0.0
    %816 = vmatprep.subr.mxu0 0.0
    %817 = vmatpush1.msra.mxu0 0.0
    %818 = vmatprep.subr.mxu0 0.0
    %819 = vmatpush1.msra.mxu0 0.0
    %820 = vmatprep.subr.mxu0 0.0
    %821 = vmatpush1.msra.mxu0 0.0
    %822 = vmatprep.subr.mxu0 0.0
    %823 = vmatpush1.msra.mxu0 0.0
    %824 = vmatprep.subr.mxu0 0.0
    %825 = vmatpush1.msra.mxu0 0.0
    %826 = vmatprep.subr.mxu0 0.0
    %827 = vmatpush1.msra.mxu0 0.0
    %828 = vmatprep.subr.mxu0 0.0
    %829 = vmatpush1.msra.mxu0 0.0
    %830 = vmatprep.subr.mxu0 0.0
    %831 = vmatpush1.msra.mxu0 0.0
    %832 = vmatprep.subr.mxu0 0.0
    %833 = vmatpush1.msra.mxu0 0.0
    %834 = vmatprep.subr.mxu0 0.0
    %835 = vmatpush1.msra.mxu0 0.0
    %836 = vmatprep.subr.mxu0 0.0
    %837 = vmatpush1.msra.mxu0 0.0
    %838 = vmatprep.subr.mxu0 0.0
    %839 = vmatpush1.msra.mxu0 0.0
    %840 = vmatprep.subr.mxu0 0.0
    %841 = vmatpush1.msra.mxu0 0.0
    %842 = vmatprep.subr.mxu0 0.0
    %843 = vmatpush1.msra.mxu0 0.0
    %844 = vmatprep.subr.mxu0 0.0
    %845 = vmatpush1.msra.mxu0 0.0
    %846 = vmatprep.subr.mxu0 0.0
    %847 = vmatpush1.msra.mxu0 0.0
    %848 = vmatprep.subr.mxu0 0.0
    %849 = vmatpush1.msra.mxu0 0.0
    %850 = vmatprep.subr.mxu0 0.0
    %851 = vmatpush1.msra.mxu0 0.0
    %852 = vmatprep.subr.mxu0 0.0
    %853 = vmatpush1.msra.mxu0 0.0
    %854 = vmatprep.subr.mxu0 0.0
    %855 = vmatpush1.msra.mxu0 0.0
    %856 = vmatprep.subr.mxu0 0.0
    %857 = vmatpush1.msra.mxu0 0.0
    %858 = vmatprep.subr.mxu0 0.0
    %859 = vmatpush1.msra.mxu0 0.0
    %860 = vmatprep.subr.mxu0 0.0
    %861 = vmatpush1.msra.mxu0 0.0
    %862 = vmatprep.subr.mxu0 0.0
    %863 = vmatpush1.msra.mxu0 0.0
    %864 = vmatprep.subr.mxu0 0.0
    %865 = vmatpush1.msra.mxu0 0.0
    %866 = vmatprep.subr.mxu0 0.0
    %867 = vmatpush1.msra.mxu0 0.0
    %868 = vmatprep.subr.mxu0 0.0
    %869 = vmatpush1.msra.mxu0 0.0
    %870 = vmatprep.subr.mxu0 0.0
    %871 = vmatpush1.msra.mxu0 0.0
    %872 = vmatprep.subr.mxu0 0.0
    %873 = vmatpush1.msra.mxu0 0.0
    %874 = vmatprep.mubr.f32.mxu0 0.0
    %875 = vmatmul.mubr.f32.gmra.mrb[0].mxu0 %v805
    %v876 = vpop.f32.mrb[0].mxu0
    %v877 = vadd.f32 %v801, %v876
    %v878 = vpop.f32.mrb[0].mxu0
    %879 = vdwg.mxu0
    %v880 = vadd.f32 %v576, %v877
    %s881 = scalar_lea.vmem %s4, 16
    %v882 = vld [vmem:[%s881] sm:$0x1f]
    %v884 = vsel %vm276, %v882, 0
    %886 = vmatprep.subr.mxu0 0.0
    %887 = vmatpush1.msra.mxu0 %v884
    %888 = vmatprep.subr.mxu0 0.0
    %889 = vmatpush1.msra.mxu0 0.0
    %890 = vmatprep.subr.mxu0 0.0
    %891 = vmatpush1.msra.mxu0 0.0
    %892 = vmatprep.subr.mxu0 0.0
    %893 = vmatpush1.msra.mxu0 0.0
    %894 = vmatprep.subr.mxu0 0.0
    %895 = vmatpush1.msra.mxu0 0.0
    %896 = vmatprep.subr.mxu0 0.0
    %897 = vmatpush1.msra.mxu0 0.0
    %898 = vmatprep.subr.mxu0 0.0
    %899 = vmatpush1.msra.mxu0 0.0
    %900 = vmatprep.subr.mxu0 0.0
    %901 = vmatpush1.msra.mxu0 0.0
    %902 = vmatprep.subr.mxu0 0.0
    %903 = vmatpush1.msra.mxu0 0.0
    %904 = vmatprep.subr.mxu0 0.0
    %905 = vmatpush1.msra.mxu0 0.0
    %906 = vmatprep.subr.mxu0 0.0
    %907 = vmatpush1.msra.mxu0 0.0
    %908 = vmatprep.subr.mxu0 0.0
    %909 = vmatpush1.msra.mxu0 0.0
    %910 = vmatprep.subr.mxu0 0.0
    %911 = vmatpush1.msra.mxu0 0.0
    %912 = vmatprep.subr.mxu0 0.0
    %913 = vmatpush1.msra.mxu0 0.0
    %914 = vmatprep.subr.mxu0 0.0
    %915 = vmatpush1.msra.mxu0 0.0
    %916 = vmatprep.subr.mxu0 0.0
    %917 = vmatpush1.msra.mxu0 0.0
    %918 = vmatprep.subr.mxu0 0.0
    %919 = vmatpush1.msra.mxu0 0.0
    %920 = vmatprep.subr.mxu0 0.0
    %921 = vmatpush1.msra.mxu0 0.0
    %922 = vmatprep.subr.mxu0 0.0
    %923 = vmatpush1.msra.mxu0 0.0
    %924 = vmatprep.subr.mxu0 0.0
    %925 = vmatpush1.msra.mxu0 0.0
    %926 = vmatprep.subr.mxu0 0.0
    %927 = vmatpush1.msra.mxu0 0.0
    %928 = vmatprep.subr.mxu0 0.0
    %929 = vmatpush1.msra.mxu0 0.0
    %930 = vmatprep.subr.mxu0 0.0
    %931 = vmatpush1.msra.mxu0 0.0
    %932 = vmatprep.subr.mxu0 0.0
    %933 = vmatpush1.msra.mxu0 0.0
    %934 = vmatprep.subr.mxu0 0.0
    %935 = vmatpush1.msra.mxu0 0.0
    %936 = vmatprep.subr.mxu0 0.0
    %937 = vmatpush1.msra.mxu0 0.0
    %938 = vmatprep.subr.mxu0 0.0
    %939 = vmatpush1.msra.mxu0 0.0
    %940 = vmatprep.subr.mxu0 0.0
    %941 = vmatpush1.msra.mxu0 0.0
    %942 = vmatprep.subr.mxu0 0.0
    %943 = vmatpush1.msra.mxu0 0.0
    %944 = vmatprep.subr.mxu0 0.0
    %945 = vmatpush1.msra.mxu0 0.0
    %946 = vmatprep.subr.mxu0 0.0
    %947 = vmatpush1.msra.mxu0 0.0
    %948 = vmatprep.subr.mxu0 0.0
    %949 = vmatpush1.msra.mxu0 0.0
    %950 = vmatprep.mubr.f32.mxu0 0.0
    %951 = vmatmul.mubr.f32.gmra.mrb[0].mxu0 %v274
    %v952 = vpop.f32.mrb[0].mxu0
    %v953 = vadd.f32 0.0, %v952
    %v954 = vpop.f32.mrb[0].mxu0
    %955 = vdwg.mxu0
    %956 = vmatprep.subr.mxu0 0.0
    %957 = vmatpush1.msra.mxu0 %v884
    %958 = vmatprep.subr.mxu0 0.0
    %959 = vmatpush1.msra.mxu0 0.0
    %960 = vmatprep.subr.mxu0 0.0
    %961 = vmatpush1.msra.mxu0 0.0
    %962 = vmatprep.subr.mxu0 0.0
    %963 = vmatpush1.msra.mxu0 0.0
    %964 = vmatprep.subr.mxu0 0.0
    %965 = vmatpush1.msra.mxu0 0.0
    %966 = vmatprep.subr.mxu0 0.0
    %967 = vmatpush1.msra.mxu0 0.0
    %968 = vmatprep.subr.mxu0 0.0
    %969 = vmatpush1.msra.mxu0 0.0
    %970 = vmatprep.subr.mxu0 0.0
    %971 = vmatpush1.msra.mxu0 0.0
    %972 = vmatprep.subr.mxu0 0.0
    %973 = vmatpush1.msra.mxu0 0.0
    %974 = vmatprep.subr.mxu0 0.0
    %975 = vmatpush1.msra.mxu0 0.0
    %976 = vmatprep.subr.mxu0 0.0
    %977 = vmatpush1.msra.mxu0 0.0
    %978 = vmatprep.subr.mxu0 0.0
    %979 = vmatpush1.msra.mxu0 0.0
    %980 = vmatprep.subr.mxu0 0.0
    %981 = vmatpush1.msra.mxu0 0.0
    %982 = vmatprep.subr.mxu0 0.0
    %983 = vmatpush1.msra.mxu0 0.0
    %984 = vmatprep.subr.mxu0 0.0
    %985 = vmatpush1.msra.mxu0 0.0
    %986 = vmatprep.subr.mxu0 0.0
    %987 = vmatpush1.msra.mxu0 0.0
    %988 = vmatprep.subr.mxu0 0.0
    %989 = vmatpush1.msra.mxu0 0.0
    %990 = vmatprep.subr.mxu0 0.0
    %991 = vmatpush1.msra.mxu0 0.0
    %992 = vmatprep.subr.mxu0 0.0
    %993 = vmatpush1.msra.mxu0 0.0
    %994 = vmatprep.subr.mxu0 0.0
    %995 = vmatpush1.msra.mxu0 0.0
    %996 = vmatprep.subr.mxu0 0.0
    %997 = vmatpush1.msra.mxu0 0.0
    %998 = vmatprep.subr.mxu0 0.0
    %999 = vmatpush1.msra.mxu0 0.0
    %1000 = vmatprep.subr.mxu0 0.0
    %1001 = vmatpush1.msra.mxu0 0.0
    %1002 = vmatprep.subr.mxu0 0.0
    %1003 = vmatpush1.msra.mxu0 0.0
    %1004 = vmatprep.subr.mxu0 0.0
    %1005 = vmatpush1.msra.mxu0 0.0
    %1006 = vmatprep.subr.mxu0 0.0
    %1007 = vmatpush1.msra.mxu0 0.0
    %1008 = vmatprep.subr.mxu0 0.0
    %1009 = vmatpush1.msra.mxu0 0.0
    %1010 = vmatprep.subr.mxu0 0.0
    %1011 = vmatpush1.msra.mxu0 0.0
    %1012 = vmatprep.subr.mxu0 0.0
    %1013 = vmatpush1.msra.mxu0 0.0
    %1014 = vmatprep.subr.mxu0 0.0
    %1015 = vmatpush1.msra.mxu0 0.0
    %1016 = vmatprep.subr.mxu0 0.0
    %1017 = vmatpush1.msra.mxu0 0.0
    %1018 = vmatprep.subr.mxu0 0.0
    %1019 = vmatpush1.msra.mxu0 0.0
    %1020 = vmatprep.mubr.f32.mxu0 0.0
    %1021 = vmatmul.mubr.f32.gmra.mrb[0].mxu0 %v351
    %v1022 = vpop.f32.mrb[0].mxu0
    %v1023 = vadd.f32 0.0, %v1022
    %v1024 = vpop.f32.mrb[0].mxu0
    %1025 = vdwg.mxu0
    %s1026 = scalar_lea.vmem %s5, 8
    %v1027 = vld [vmem:[%s1026] sm:$0xf]
    %s1028 = scalar_lea.vmem %s6, 8
    %v1029 = vld [vmem:[%s1028] sm:$0xf]
    %v1031 = vsel %vm425, %v1029, 0
    %v1034 = vsel %vm429, %v1023, 0
    %1036 = vmatprep.subr.mxu0 0.0
    %1037 = vmatpush1.msra.mxu0 %v1034
    %1038 = vmatprep.subr.mxu0 0.0
    %1039 = vmatpush1.msra.mxu0 0.0
    %1040 = vmatprep.subr.mxu0 0.0
    %1041 = vmatpush1.msra.mxu0 0.0
    %1042 = vmatprep.subr.mxu0 0.0
    %1043 = vmatpush1.msra.mxu0 0.0
    %1044 = vmatprep.subr.mxu0 0.0
    %1045 = vmatpush1.msra.mxu0 0.0
    %1046 = vmatprep.subr.mxu0 0.0
    %1047 = vmatpush1.msra.mxu0 0.0
    %1048 = vmatprep.subr.mxu0 0.0
    %1049 = vmatpush1.msra.mxu0 0.0
    %1050 = vmatprep.subr.mxu0 0.0
    %1051 = vmatpush1.msra.mxu0 0.0
    %1052 = vmatprep.subr.mxu0 0.0
    %1053 = vmatpush1.msra.mxu0 0.0
    %1054 = vmatprep.subr.mxu0 0.0
    %1055 = vmatpush1.msra.mxu0 0.0
    %1056 = vmatprep.subr.mxu0 0.0
    %1057 = vmatpush1.msra.mxu0 0.0
    %1058 = vmatprep.subr.mxu0 0.0
    %1059 = vmatpush1.msra.mxu0 0.0
    %1060 = vmatprep.subr.mxu0 0.0
    %1061 = vmatpush1.msra.mxu0 0.0
    %1062 = vmatprep.subr.mxu0 0.0
    %1063 = vmatpush1.msra.mxu0 0.0
    %1064 = vmatprep.subr.mxu0 0.0
    %1065 = vmatpush1.msra.mxu0 0.0
    %1066 = vmatprep.subr.mxu0 0.0
    %1067 = vmatpush1.msra.mxu0 0.0
    %1068 = vmatprep.subr.mxu0 0.0
    %1069 = vmatpush1.msra.mxu0 0.0
    %1070 = vmatprep.subr.mxu0 0.0
    %1071 = vmatpush1.msra.mxu0 0.0
    %1072 = vmatprep.subr.mxu0 0.0
    %1073 = vmatpush1.msra.mxu0 0.0
    %1074 = vmatprep.subr.mxu0 0.0
    %1075 = vmatpush1.msra.mxu0 0.0
    %1076 = vmatprep.subr.mxu0 0.0
    %1077 = vmatpush1.msra.mxu0 0.0
    %1078 = vmatprep.subr.mxu0 0.0
    %1079 = vmatpush1.msra.mxu0 0.0
    %1080 = vmatprep.subr.mxu0 0.0
    %1081 = vmatpush1.msra.mxu0 0.0
    %1082 = vmatprep.subr.mxu0 0.0
    %1083 = vmatpush1.msra.mxu0 0.0
    %1084 = vmatprep.subr.mxu0 0.0
    %1085 = vmatpush1.msra.mxu0 0.0
    %1086 = vmatprep.subr.mxu0 0.0
    %1087 = vmatpush1.msra.mxu0 0.0
    %1088 = vmatprep.subr.mxu0 0.0
    %1089 = vmatpush1.msra.mxu0 0.0
    %1090 = vmatprep.subr.mxu0 0.0
    %1091 = vmatpush1.msra.mxu0 0.0
    %1092 = vmatprep.subr.mxu0 0.0
    %1093 = vmatpush1.msra.mxu0 0.0
    %1094 = vmatprep.subr.mxu0 0.0
    %1095 = vmatpush1.msra.mxu0 0.0
    %1096 = vmatprep.subr.mxu0 0.0
    %1097 = vmatpush1.msra.mxu0 0.0
    %1098 = vmatprep.subr.mxu0 0.0
    %1099 = vmatpush1.msra.mxu0 0.0
    %1100 = vmatprep.mubr.f32.mxu0 0.0
    %1101 = vmatmul.mubr.f32.gmra.mrb[0].mxu0 %v1031
    %v1102 = vpop.f32.mrb[0].mxu0
    %v1103 = vadd.f32 0.0, %v1102
    %v1104 = vpop.f32.mrb[0].mxu0
    %1105 = vdwg.mxu0
    %v1107 = vsel %vm425, %v1027, 0
    %v1110 = vsel %vm429, %v953, 0
    %1112 = vmatprep.subr.mxu0 0.0
    %1113 = vmatpush1.msra.mxu0 %v1110
    %1114 = vmatprep.subr.mxu0 0.0
    %1115 = vmatpush1.msra.mxu0 0.0
    %1116 = vmatprep.subr.mxu0 0.0
    %1117 = vmatpush1.msra.mxu0 0.0
    %1118 = vmatprep.subr.mxu0 0.0
    %1119 = vmatpush1.msra.mxu0 0.0
    %1120 = vmatprep.subr.mxu0 0.0
    %1121 = vmatpush1.msra.mxu0 0.0
    %1122 = vmatprep.subr.mxu0 0.0
    %1123 = vmatpush1.msra.mxu0 0.0
    %1124 = vmatprep.subr.mxu0 0.0
    %1125 = vmatpush1.msra.mxu0 0.0
    %1126 = vmatprep.subr.mxu0 0.0
    %1127 = vmatpush1.msra.mxu0 0.0
    %1128 = vmatprep.subr.mxu0 0.0
    %1129 = vmatpush1.msra.mxu0 0.0
    %1130 = vmatprep.subr.mxu0 0.0
    %1131 = vmatpush1.msra.mxu0 0.0
    %1132 = vmatprep.subr.mxu0 0.0
    %1133 = vmatpush1.msra.mxu0 0.0
    %1134 = vmatprep.subr.mxu0 0.0
    %1135 = vmatpush1.msra.mxu0 0.0
    %1136 = vmatprep.subr.mxu0 0.0
    %1137 = vmatpush1.msra.mxu0 0.0
    %1138 = vmatprep.subr.mxu0 0.0
    %1139 = vmatpush1.msra.mxu0 0.0
    %1140 = vmatprep.subr.mxu0 0.0
    %1141 = vmatpush1.msra.mxu0 0.0
    %1142 = vmatprep.subr.mxu0 0.0
    %1143 = vmatpush1.msra.mxu0 0.0
    %1144 = vmatprep.subr.mxu0 0.0
    %1145 = vmatpush1.msra.mxu0 0.0
    %1146 = vmatprep.subr.mxu0 0.0
    %1147 = vmatpush1.msra.mxu0 0.0
    %1148 = vmatprep.subr.mxu0 0.0
    %1149 = vmatpush1.msra.mxu0 0.0
    %1150 = vmatprep.subr.mxu0 0.0
    %1151 = vmatpush1.msra.mxu0 0.0
    %1152 = vmatprep.subr.mxu0 0.0
    %1153 = vmatpush1.msra.mxu0 0.0
    %1154 = vmatprep.subr.mxu0 0.0
    %1155 = vmatpush1.msra.mxu0 0.0
    %1156 = vmatprep.subr.mxu0 0.0
    %1157 = vmatpush1.msra.mxu0 0.0
    %1158 = vmatprep.subr.mxu0 0.0
    %1159 = vmatpush1.msra.mxu0 0.0
    %1160 = vmatprep.subr.mxu0 0.0
    %1161 = vmatpush1.msra.mxu0 0.0
    %1162 = vmatprep.subr.mxu0 0.0
    %1163 = vmatpush1.msra.mxu0 0.0
    %1164 = vmatprep.subr.mxu0 0.0
    %1165 = vmatpush1.msra.mxu0 0.0
    %1166 = vmatprep.subr.mxu0 0.0
    %1167 = vmatpush1.msra.mxu0 0.0
    %1168 = vmatprep.subr.mxu0 0.0
    %1169 = vmatpush1.msra.mxu0 0.0
    %1170 = vmatprep.subr.mxu0 0.0
    %1171 = vmatpush1.msra.mxu0 0.0
    %1172 = vmatprep.subr.mxu0 0.0
    %1173 = vmatpush1.msra.mxu0 0.0
    %1174 = vmatprep.subr.mxu0 0.0
    %1175 = vmatpush1.msra.mxu0 0.0
    %1176 = vmatprep.mubr.f32.mxu0 0.0
    %1177 = vmatmul.mubr.f32.gmra.mrb[0].mxu0 %v1107
    %v1178 = vpop.f32.mrb[0].mxu0
    %v1179 = vadd.f32 %v1103, %v1178
    %v1180 = vpop.f32.mrb[0].mxu0
    %1181 = vdwg.mxu0
    %v1182 = vadd.f32 %v880, %v1179
    %v1183 = vld [vmem:[%s7] sm:$0xf]
    %1185 = vset.pattern.permute.xlu0 0
    %1186 = vperm.xlu0 %1185, %v1183
    %v1187 = vpop.permute.xlu0 %1186
    %v1189 = vadd.f32 %v1182, %v1187
    %v1190 = vmax.f32 %v1189, 0.0
    %v1191 = vld [vmem:[%s8] sm:$0x1f]
    %v1192 = vld [vmem:[%s9] sm:$0x1]
    %v1194 = vlaneseq
    %v1195 = vshrl.u32 %v1194, 7
    %v1196 = vsub.s32 0, %v1195
    %v1197 = vrot.slane %v1192, %v1196
    %v1200 = vsel %vm272, %v1190, 0
    %v1203 = vsel %vm276, %v1191, 0
    %1205 = vmatprep.subr.mxu0 0.0
    %1206 = vmatpush1.msra.mxu0 %v1203
    %1207 = vmatprep.subr.mxu0 0.0
    %1208 = vmatpush1.msra.mxu0 0.0
    %1209 = vmatprep.subr.mxu0 0.0
    %1210 = vmatpush1.msra.mxu0 0.0
    %1211 = vmatprep.subr.mxu0 0.0
    %1212 = vmatpush1.msra.mxu0 0.0
    %1213 = vmatprep.subr.mxu0 0.0
    %1214 = vmatpush1.msra.mxu0 0.0
    %1215 = vmatprep.subr.mxu0 0.0
    %1216 = vmatpush1.msra.mxu0 0.0
    %1217 = vmatprep.subr.mxu0 0.0
    %1218 = vmatpush1.msra.mxu0 0.0
    %1219 = vmatprep.subr.mxu0 0.0
    %1220 = vmatpush1.msra.mxu0 0.0
    %1221 = vmatprep.subr.mxu0 0.0
    %1222 = vmatpush1.msra.mxu0 0.0
    %1223 = vmatprep.subr.mxu0 0.0
    %1224 = vmatpush1.msra.mxu0 0.0
    %1225 = vmatprep.subr.mxu0 0.0
    %1226 = vmatpush1.msra.mxu0 0.0
    %1227 = vmatprep.subr.mxu0 0.0
    %1228 = vmatpush1.msra.mxu0 0.0
    %1229 = vmatprep.subr.mxu0 0.0
    %1230 = vmatpush1.msra.mxu0 0.0
    %1231 = vmatprep.subr.mxu0 0.0
    %1232 = vmatpush1.msra.mxu0 0.0
    %1233 = vmatprep.subr.mxu0 0.0
    %1234 = vmatpush1.msra.mxu0 0.0
    %1235 = vmatprep.subr.mxu0 0.0
    %1236 = vmatpush1.msra.mxu0 0.0
    %1237 = vmatprep.subr.mxu0 0.0
    %1238 = vmatpush1.msra.mxu0 0.0
    %1239 = vmatprep.subr.mxu0 0.0
    %1240 = vmatpush1.msra.mxu0 0.0
    %1241 = vmatprep.subr.mxu0 0.0
    %1242 = vmatpush1.msra.mxu0 0.0
    %1243 = vmatprep.subr.mxu0 0.0
    %1244 = vmatpush1.msra.mxu0 0.0
    %1245 = vmatprep.subr.mxu0 0.0
    %1246 = vmatpush1.msra.mxu0 0.0
    %1247 = vmatprep.subr.mxu0 0.0
    %1248 = vmatpush1.msra.mxu0 0.0
    %1249 = vmatprep.subr.mxu0 0.0
    %1250 = vmatpush1.msra.mxu0 0.0
    %1251 = vmatprep.subr.mxu0 0.0
    %1252 = vmatpush1.msra.mxu0 0.0
    %1253 = vmatprep.subr.mxu0 0.0
    %1254 = vmatpush1.msra.mxu0 0.0
    %1255 = vmatprep.subr.mxu0 0.0
    %1256 = vmatpush1.msra.mxu0 0.0
    %1257 = vmatprep.subr.mxu0 0.0
    %1258 = vmatpush1.msra.mxu0 0.0
    %1259 = vmatprep.subr.mxu0 0.0
    %1260 = vmatpush1.msra.mxu0 0.0
    %1261 = vmatprep.subr.mxu0 0.0
    %1262 = vmatpush1.msra.mxu0 0.0
    %1263 = vmatprep.subr.mxu0 0.0
    %1264 = vmatpush1.msra.mxu0 0.0
    %1265 = vmatprep.subr.mxu0 0.0
    %1266 = vmatpush1.msra.mxu0 0.0
    %1267 = vmatprep.subr.mxu0 0.0
    %1268 = vmatpush1.msra.mxu0 0.0
    %1269 = vmatprep.mubr.f32.mxu0 0.0
    %1270 = vmatmul.mubr.f32.gmra.mrb[0].mxu0 %v1200
    %v1271 = vpop.f32.mrb[0].mxu0
    %v1272 = vadd.f32 %v1197, %v1271
    %v1273 = vpop.f32.mrb[0].mxu0
    %1274 = vdwg.mxu0
    %v1275 = vmax.f32 %v1272, 0.0
    %v1276 = vld [vmem:[%s10] sm:$0xff]
    %v1277 = vld [vmem:[%s10 + $0x8] sm:$0xff]
    %v1278 = vld [vmem:[%s11] sm:$0x1]
    %v1280 = vlaneseq
    %v1281 = vshrl.u32 %v1280, 7
    %v1282 = vsub.s32 0, %v1281
    %v1283 = vrot.slane %v1278, %v1282
    %vm1285 = vcmask 130048
    %v1287 = vsel %vm1285, %v1275, 0
    %1289 = vmatprep.subr.mxu0 0.0
    %1290 = vmatpush1.msra.mxu0 %v1276
    %1291 = vmatprep.subr.mxu0 0.0
    %1292 = vmatpush1.msra.mxu0 %v1277
    %1293 = vmatprep.subr.mxu0 0.0
    %1294 = vmatpush1.msra.mxu0 0.0
    %1295 = vmatprep.subr.mxu0 0.0
    %1296 = vmatpush1.msra.mxu0 0.0
    %1297 = vmatprep.subr.mxu0 0.0
    %1298 = vmatpush1.msra.mxu0 0.0
    %1299 = vmatprep.subr.mxu0 0.0
    %1300 = vmatpush1.msra.mxu0 0.0
    %1301 = vmatprep.subr.mxu0 0.0
    %1302 = vmatpush1.msra.mxu0 0.0
    %1303 = vmatprep.subr.mxu0 0.0
    %1304 = vmatpush1.msra.mxu0 0.0
    %1305 = vmatprep.subr.mxu0 0.0
    %1306 = vmatpush1.msra.mxu0 0.0
    %1307 = vmatprep.subr.mxu0 0.0
    %1308 = vmatpush1.msra.mxu0 0.0
    %1309 = vmatprep.subr.mxu0 0.0
    %1310 = vmatpush1.msra.mxu0 0.0
    %1311 = vmatprep.subr.mxu0 0.0
    %1312 = vmatpush1.msra.mxu0 0.0
    %1313 = vmatprep.subr.mxu0 0.0
    %1314 = vmatpush1.msra.mxu0 0.0
    %1315 = vmatprep.subr.mxu0 0.0
    %1316 = vmatpush1.msra.mxu0 0.0
    %1317 = vmatprep.subr.mxu0 0.0
    %1318 = vmatpush1.msra.mxu0 0.0
    %1319 = vmatprep.subr.mxu0 0.0
    %1320 = vmatpush1.msra.mxu0 0.0
    %1321 = vmatprep.subr.mxu0 0.0
    %1322 = vmatpush1.msra.mxu0 0.0
    %1323 = vmatprep.subr.mxu0 0.0
    %1324 = vmatpush1.msra.mxu0 0.0
    %1325 = vmatprep.subr.mxu0 0.0
    %1326 = vmatpush1.msra.mxu0 0.0
    %1327 = vmatprep.subr.mxu0 0.0
    %1328 = vmatpush1.msra.mxu0 0.0
    %1329 = vmatprep.subr.mxu0 0.0
    %1330 = vmatpush1.msra.mxu0 0.0
    %1331 = vmatprep.subr.mxu0 0.0
    %1332 = vmatpush1.msra.mxu0 0.0
    %1333 = vmatprep.subr.mxu0 0.0
    %1334 = vmatpush1.msra.mxu0 0.0
    %1335 = vmatprep.subr.mxu0 0.0
    %1336 = vmatpush1.msra.mxu0 0.0
    %1337 = vmatprep.subr.mxu0 0.0
    %1338 = vmatpush1.msra.mxu0 0.0
    %1339 = vmatprep.subr.mxu0 0.0
    %1340 = vmatpush1.msra.mxu0 0.0
    %1341 = vmatprep.subr.mxu0 0.0
    %1342 = vmatpush1.msra.mxu0 0.0
    %1343 = vmatprep.subr.mxu0 0.0
    %1344 = vmatpush1.msra.mxu0 0.0
    %1345 = vmatprep.subr.mxu0 0.0
    %1346 = vmatpush1.msra.mxu0 0.0
    %1347 = vmatprep.subr.mxu0 0.0
    %1348 = vmatpush1.msra.mxu0 0.0
    %1349 = vmatprep.subr.mxu0 0.0
    %1350 = vmatpush1.msra.mxu0 0.0
    %1351 = vmatprep.subr.mxu0 0.0
    %1352 = vmatpush1.msra.mxu0 0.0
    %1353 = vmatprep.mubr.f32.mxu0 0.0
    %1354 = vmatmul.mubr.f32.gmra.mrb[0].mxu0 %v1287
    %v1355 = vpop.f32.mrb[0].mxu0
    %v1356 = vadd.f32 %v1283, %v1355
    %v1357 = vpop.f32.mrb[0].mxu0
    %1358 = vdwg.mxu0
    %v1359 = vld [vmem:[%s12] sm:$0xff]
    %v1360 = vld [vmem:[%s12 + $0x8] sm:$0xff]
    %v1361 = vld [vmem:[%s12 + $0x10] sm:$0xff]
    %v1362 = vld [vmem:[%s12 + $0x18] sm:$0xff]
    %s1363 = scalar_lea.vmem %s12, 32
    %v1364 = vld [vmem:[%s1363] sm:$0xff]
    %v1365 = vld [vmem:[%s1363 + $0x8] sm:$0xff]
    %v1366 = vld [vmem:[%s1363 + $0x10] sm:$0xff]
    %v1367 = vld [vmem:[%s1363 + $0x18] sm:$0xff]
    %s1368 = scalar_lea.vmem %s12, 64
    %v1369 = vld [vmem:[%s1368] sm:$0xff]
    %v1370 = vld [vmem:[%s1368 + $0x8] sm:$0xff]
    %v1371 = vld [vmem:[%s1368 + $0x10] sm:$0xff]
    %v1372 = vld [vmem:[%s1368 + $0x18] sm:$0xff]
    %s1373 = scalar_lea.vmem %s12, 96
    %v1374 = vld [vmem:[%s1373] sm:$0xff]
    %v1375 = vld [vmem:[%s1373 + $0x8] sm:$0xff]
    %v1376 = vld [vmem:[%s1373 + $0x10] sm:$0xff]
    %v1377 = vld [vmem:[%s1373 + $0x18] sm:$0xff]
    %v1378 = vld [vmem:[%s13] sm:$0xff]
    %v1379 = vld [vmem:[%s13 + $0x8] sm:$0xff]
    %v1380 = vld [vmem:[%s13 + $0x10] sm:$0xff]
    %v1381 = vld [vmem:[%s13 + $0x18] sm:$0xff]
    %s1382 = scalar_lea.vmem %s13, 32
    %v1383 = vld [vmem:[%s1382] sm:$0xff]
    %v1384 = vld [vmem:[%s1382 + $0x8] sm:$0xff]
    %v1385 = vld [vmem:[%s1382 + $0x10] sm:$0xff]
    %v1386 = vld [vmem:[%s1382 + $0x18] sm:$0xff]
    %s1387 = scalar_lea.vmem %s13, 64
    %v1388 = vld [vmem:[%s1387] sm:$0xff]
    %v1389 = vld [vmem:[%s1387 + $0x8] sm:$0xff]
    %v1390 = vld [vmem:[%s1387 + $0x10] sm:$0xff]
    %v1391 = vld [vmem:[%s1387 + $0x18] sm:$0xff]
    %s1392 = scalar_lea.vmem %s13, 96
    %v1393 = vld [vmem:[%s1392] sm:$0xff]
    %v1394 = vld [vmem:[%s1392 + $0x8] sm:$0xff]
    %v1395 = vld [vmem:[%s1392 + $0x10] sm:$0xff]
    %v1396 = vld [vmem:[%s1392 + $0x18] sm:$0xff]
    %v1397 = vld [vmem:[%s14] sm:$0x1]
    %s1398 = scalar_lea.vmem %s14, 1
    %v1399 = vld [vmem:[%s1398] sm:$0x1]
    %s1400 = scalar_lea.vmem %s14, 2
    %v1401 = vld [vmem:[%s1400] sm:$0x1]
    %s1402 = scalar_lea.vmem %s14, 3
    %v1403 = vld [vmem:[%s1402] sm:$0x1]
    %v1404 = vld [vmem:[%s17] sm:$0x1]
    %v1405 = vld [vmem:[%s18] sm:$0x1]
    %vm1406 = vcmask 261120
    %v1408 = vsel %vm1406, %v1404, 0
    %1410 = vmatprep.subr.mxu0 0.0
    %1411 = vmatpush1.msra.mxu0 %v1378
    %1412 = vmatprep.subr.mxu0 0.0
    %1413 = vmatpush1.msra.mxu0 %v1379
    %1414 = vmatprep.subr.mxu0 0.0
    %1415 = vmatpush1.msra.mxu0 %v1380
    %1416 = vmatprep.subr.mxu0 0.0
    %1417 = vmatpush1.msra.mxu0 %v1381
    %1418 = vmatprep.subr.mxu0 0.0
    %1419 = vmatpush1.msra.mxu0 0.0
    %1420 = vmatprep.subr.mxu0 0.0
    %1421 = vmatpush1.msra.mxu0 0.0
    %1422 = vmatprep.subr.mxu0 0.0
    %1423 = vmatpush1.msra.mxu0 0.0
    %1424 = vmatprep.subr.mxu0 0.0
    %1425 = vmatpush1.msra.mxu0 0.0
    %1426 = vmatprep.subr.mxu0 0.0
    %1427 = vmatpush1.msra.mxu0 0.0
    %1428 = vmatprep.subr.mxu0 0.0
    %1429 = vmatpush1.msra.mxu0 0.0
    %1430 = vmatprep.subr.mxu0 0.0
    %1431 = vmatpush1.msra.mxu0 0.0
    %1432 = vmatprep.subr.mxu0 0.0
    %1433 = vmatpush1.msra.mxu0 0.0
    %1434 = vmatprep.subr.mxu0 0.0
    %1435 = vmatpush1.msra.mxu0 0.0
    %1436 = vmatprep.subr.mxu0 0.0
    %1437 = vmatpush1.msra.mxu0 0.0
    %1438 = vmatprep.subr.mxu0 0.0
    %1439 = vmatpush1.msra.mxu0 0.0
    %1440 = vmatprep.subr.mxu0 0.0
    %1441 = vmatpush1.msra.mxu0 0.0
    %1442 = vmatprep.subr.mxu0 0.0
    %1443 = vmatpush1.msra.mxu0 0.0
    %1444 = vmatprep.subr.mxu0 0.0
    %1445 = vmatpush1.msra.mxu0 0.0
    %1446 = vmatprep.subr.mxu0 0.0
    %1447 = vmatpush1.msra.mxu0 0.0
    %1448 = vmatprep.subr.mxu0 0.0
    %1449 = vmatpush1.msra.mxu0 0.0
    %1450 = vmatprep.subr.mxu0 0.0
    %1451 = vmatpush1.msra.mxu0 0.0
    %1452 = vmatprep.subr.mxu0 0.0
    %1453 = vmatpush1.msra.mxu0 0.0
    %1454 = vmatprep.subr.mxu0 0.0
    %1455 = vmatpush1.msra.mxu0 0.0
    %1456 = vmatprep.subr.mxu0 0.0
    %1457 = vmatpush1.msra.mxu0 0.0
    %1458 = vmatprep.subr.mxu0 0.0
    %1459 = vmatpush1.msra.mxu0 0.0
    %1460 = vmatprep.subr.mxu0 0.0
    %1461 = vmatpush1.msra.mxu0 0.0
    %1462 = vmatprep.subr.mxu0 0.0
    %1463 = vmatpush1.msra.mxu0 0.0
    %1464 = vmatprep.subr.mxu0 0.0
    %1465 = vmatpush1.msra.mxu0 0.0
    %1466 = vmatprep.subr.mxu0 0.0
    %1467 = vmatpush1.msra.mxu0 0.0
    %1468 = vmatprep.subr.mxu0 0.0
    %1469 = vmatpush1.msra.mxu0 0.0
    %1470 = vmatprep.subr.mxu0 0.0
    %1471 = vmatpush1.msra.mxu0 0.0
    %1472 = vmatprep.subr.mxu0 0.0
    %1473 = vmatpush1.msra.mxu0 0.0
    %1474 = vmatprep.mubr.f32.mxu0 0.0
    %1475 = vmatmul.mubr.f32.gmra.mrb[0].mxu0 %v1408
    %v1476 = vpop.f32.mrb[0].mxu0
    %v1477 = vadd.f32 0.0, %v1476
    %v1478 = vpop.f32.mrb[0].mxu0
    %1479 = vdwg.mxu0
    %v1481 = vsel %vm1406, %v1356, 0
    %1483 = vmatprep.subr.mxu0 0.0
    %1484 = vmatpush1.msra.mxu0 %v1359
    %1485 = vmatprep.subr.mxu0 0.0
    %1486 = vmatpush1.msra.mxu0 %v1360
    %1487 = vmatprep.subr.mxu0 0.0
    %1488 = vmatpush1.msra.mxu0 %v1361
    %1489 = vmatprep.subr.mxu0 0.0
    %1490 = vmatpush1.msra.mxu0 %v1362
    %1491 = vmatprep.subr.mxu0 0.0
    %1492 = vmatpush1.msra.mxu0 0.0
    %1493 = vmatprep.subr.mxu0 0.0
    %1494 = vmatpush1.msra.mxu0 0.0
    %1495 = vmatprep.subr.mxu0 0.0
    %1496 = vmatpush1.msra.mxu0 0.0
    %1497 = vmatprep.subr.mxu0 0.0
    %1498 = vmatpush1.msra.mxu0 0.0
    %1499 = vmatprep.subr.mxu0 0.0
    %1500 = vmatpush1.msra.mxu0 0.0
    %1501 = vmatprep.subr.mxu0 0.0
    %1502 = vmatpush1.msra.mxu0 0.0
    %1503 = vmatprep.subr.mxu0 0.0
    %1504 = vmatpush1.msra.mxu0 0.0
    %1505 = vmatprep.subr.mxu0 0.0
    %1506 = vmatpush1.msra.mxu0 0.0
    %1507 = vmatprep.subr.mxu0 0.0
    %1508 = vmatpush1.msra.mxu0 0.0
    %1509 = vmatprep.subr.mxu0 0.0
    %1510 = vmatpush1.msra.mxu0 0.0
    %1511 = vmatprep.subr.mxu0 0.0
    %1512 = vmatpush1.msra.mxu0 0.0
    %1513 = vmatprep.subr.mxu0 0.0
    %1514 = vmatpush1.msra.mxu0 0.0
    %1515 = vmatprep.subr.mxu0 0.0
    %1516 = vmatpush1.msra.mxu0 0.0
    %1517 = vmatprep.subr.mxu0 0.0
    %1518 = vmatpush1.msra.mxu0 0.0
    %1519 = vmatprep.subr.mxu0 0.0
    %1520 = vmatpush1.msra.mxu0 0.0
    %1521 = vmatprep.subr.mxu0 0.0
    %1522 = vmatpush1.msra.mxu0 0.0
    %1523 = vmatprep.subr.mxu0 0.0
    %1524 = vmatpush1.msra.mxu0 0.0
    %1525 = vmatprep.subr.mxu0 0.0
    %1526 = vmatpush1.msra.mxu0 0.0
    %1527 = vmatprep.subr.mxu0 0.0
    %1528 = vmatpush1.msra.mxu0 0.0
    %1529 = vmatprep.subr.mxu0 0.0
    %1530 = vmatpush1.msra.mxu0 0.0
    %1531 = vmatprep.subr.mxu0 0.0
    %1532 = vmatpush1.msra.mxu0 0.0
    %1533 = vmatprep.subr.mxu0 0.0
    %1534 = vmatpush1.msra.mxu0 0.0
    %1535 = vmatprep.subr.mxu0 0.0
    %1536 = vmatpush1.msra.mxu0 0.0
    %1537 = vmatprep.subr.mxu0 0.0
    %1538 = vmatpush1.msra.mxu0 0.0
    %1539 = vmatprep.subr.mxu0 0.0
    %1540 = vmatpush1.msra.mxu0 0.0
    %1541 = vmatprep.subr.mxu0 0.0
    %1542 = vmatpush1.msra.mxu0 0.0
    %1543 = vmatprep.subr.mxu0 0.0
    %1544 = vmatpush1.msra.mxu0 0.0
    %1545 = vmatprep.subr.mxu0 0.0
    %1546 = vmatpush1.msra.mxu0 0.0
    %1547 = vmatprep.mubr.f32.mxu0 0.0
    %1548 = vmatmul.mubr.f32.gmra.mrb[0].mxu0 %v1481
    %v1549 = vpop.f32.mrb[0].mxu0
    %v1550 = vadd.f32 %v1477, %v1549
    %v1551 = vpop.f32.mrb[0].mxu0
    %1552 = vdwg.mxu0
    %v1553 = vadd.f32 %v1550, %v1397
    %1554 = vmatprep.subr.mxu0 0.0
    %1555 = vmatpush1.msra.mxu0 %v1383
    %1556 = vmatprep.subr.mxu0 0.0
    %1557 = vmatpush1.msra.mxu0 %v1384
    %1558 = vmatprep.subr.mxu0 0.0
    %1559 = vmatpush1.msra.mxu0 %v1385
    %1560 = vmatprep.subr.mxu0 0.0
    %1561 = vmatpush1.msra.mxu0 %v1386
    %1562 = vmatprep.subr.mxu0 0.0
    %1563 = vmatpush1.msra.mxu0 0.0
    %1564 = vmatprep.subr.mxu0 0.0
    %1565 = vmatpush1.msra.mxu0 0.0
    %1566 = vmatprep.subr.mxu0 0.0
    %1567 = vmatpush1.msra.mxu0 0.0
    %1568 = vmatprep.subr.mxu0 0.0
    %1569 = vmatpush1.msra.mxu0 0.0
    %1570 = vmatprep.subr.mxu0 0.0
    %1571 = vmatpush1.msra.mxu0 0.0
    %1572 = vmatprep.subr.mxu0 0.0
    %1573 = vmatpush1.msra.mxu0 0.0
    %1574 = vmatprep.subr.mxu0 0.0
    %1575 = vmatpush1.msra.mxu0 0.0
    %1576 = vmatprep.subr.mxu0 0.0
    %1577 = vmatpush1.msra.mxu0 0.0
    %1578 = vmatprep.subr.mxu0 0.0
    %1579 = vmatpush1.msra.mxu0 0.0
    %1580 = vmatprep.subr.mxu0 0.0
    %1581 = vmatpush1.msra.mxu0 0.0
    %1582 = vmatprep.subr.mxu0 0.0
    %1583 = vmatpush1.msra.mxu0 0.0
    %1584 = vmatprep.subr.mxu0 0.0
    %1585 = vmatpush1.msra.mxu0 0.0
    %1586 = vmatprep.subr.mxu0 0.0
    %1587 = vmatpush1.msra.mxu0 0.0
    %1588 = vmatprep.subr.mxu0 0.0
    %1589 = vmatpush1.msra.mxu0 0.0
    %1590 = vmatprep.subr.mxu0 0.0
    %1591 = vmatpush1.msra.mxu0 0.0
    %1592 = vmatprep.subr.mxu0 0.0
    %1593 = vmatpush1.msra.mxu0 0.0
    %1594 = vmatprep.subr.mxu0 0.0
    %1595 = vmatpush1.msra.mxu0 0.0
    %1596 = vmatprep.subr.mxu0 0.0
    %1597 = vmatpush1.msra.mxu0 0.0
    %1598 = vmatprep.subr.mxu0 0.0
    %1599 = vmatpush1.msra.mxu0 0.0
    %1600 = vmatprep.subr.mxu0 0.0
    %1601 = vmatpush1.msra.mxu0 0.0
    %1602 = vmatprep.subr.mxu0 0.0
    %1603 = vmatpush1.msra.mxu0 0.0
    %1604 = vmatprep.subr.mxu0 0.0
    %1605 = vmatpush1.msra.mxu0 0.0
    %1606 = vmatprep.subr.mxu0 0.0
    %1607 = vmatpush1.msra.mxu0 0.0
    %1608 = vmatprep.subr.mxu0 0.0
    %1609 = vmatpush1.msra.mxu0 0.0
    %1610 = vmatprep.subr.mxu0 0.0
    %1611 = vmatpush1.msra.mxu0 0.0
    %1612 = vmatprep.subr.mxu0 0.0
    %1613 = vmatpush1.msra.mxu0 0.0
    %1614 = vmatprep.subr.mxu0 0.0
    %1615 = vmatpush1.msra.mxu0 0.0
    %1616 = vmatprep.subr.mxu0 0.0
    %1617 = vmatpush1.msra.mxu0 0.0
    %1618 = vmatprep.mubr.f32.mxu0 0.0
    %1619 = vmatmul.mubr.f32.gmra.mrb[0].mxu0 %v1408
    %v1620 = vpop.f32.mrb[0].mxu0
    %v1621 = vadd.f32 0.0, %v1620
    %v1622 = vpop.f32.mrb[0].mxu0
    %1623 = vdwg.mxu0
    %1624 = vmatprep.subr.mxu0 0.0
    %1625 = vmatpush1.msra.mxu0 %v1364
    %1626 = vmatprep.subr.mxu0 0.0
    %1627 = vmatpush1.msra.mxu0 %v1365
    %1628 = vmatprep.subr.mxu0 0.0
    %1629 = vmatpush1.msra.mxu0 %v1366
    %1630 = vmatprep.subr.mxu0 0.0
    %1631 = vmatpush1.msra.mxu0 %v1367
    %1632 = vmatprep.subr.mxu0 0.0
    %1633 = vmatpush1.msra.mxu0 0.0
    %1634 = vmatprep.subr.mxu0 0.0
    %1635 = vmatpush1.msra.mxu0 0.0
    %1636 = vmatprep.subr.mxu0 0.0
    %1637 = vmatpush1.msra.mxu0 0.0
    %1638 = vmatprep.subr.mxu0 0.0
    %1639 = vmatpush1.msra.mxu0 0.0
    %1640 = vmatprep.subr.mxu0 0.0
    %1641 = vmatpush1.msra.mxu0 0.0
    %1642 = vmatprep.subr.mxu0 0.0
    %1643 = vmatpush1.msra.mxu0 0.0
    %1644 = vmatprep.subr.mxu0 0.0
    %1645 = vmatpush1.msra.mxu0 0.0
    %1646 = vmatprep.subr.mxu0 0.0
    %1647 = vmatpush1.msra.mxu0 0.0
    %1648 = vmatprep.subr.mxu0 0.0
    %1649 = vmatpush1.msra.mxu0 0.0
    %1650 = vmatprep.subr.mxu0 0.0
    %1651 = vmatpush1.msra.mxu0 0.0
    %1652 = vmatprep.subr.mxu0 0.0
    %1653 = vmatpush1.msra.mxu0 0.0
    %1654 = vmatprep.subr.mxu0 0.0
    %1655 = vmatpush1.msra.mxu0 0.0
    %1656 = vmatprep.subr.mxu0 0.0
    %1657 = vmatpush1.msra.mxu0 0.0
    %1658 = vmatprep.subr.mxu0 0.0
    %1659 = vmatpush1.msra.mxu0 0.0
    %1660 = vmatprep.subr.mxu0 0.0
    %1661 = vmatpush1.msra.mxu0 0.0
    %1662 = vmatprep.subr.mxu0 0.0
    %1663 = vmatpush1.msra.mxu0 0.0
    %1664 = vmatprep.subr.mxu0 0.0
    %1665 = vmatpush1.msra.mxu0 0.0
    %1666 = vmatprep.subr.mxu0 0.0
    %1667 = vmatpush1.msra.mxu0 0.0
    %1668 = vmatprep.subr.mxu0 0.0
    %1669 = vmatpush1.msra.mxu0 0.0
    %1670 = vmatprep.subr.mxu0 0.0
    %1671 = vmatpush1.msra.mxu0 0.0
    %1672 = vmatprep.subr.mxu0 0.0
    %1673 = vmatpush1.msra.mxu0 0.0
    %1674 = vmatprep.subr.mxu0 0.0
    %1675 = vmatpush1.msra.mxu0 0.0
    %1676 = vmatprep.subr.mxu0 0.0
    %1677 = vmatpush1.msra.mxu0 0.0
    %1678 = vmatprep.subr.mxu0 0.0
    %1679 = vmatpush1.msra.mxu0 0.0
    %1680 = vmatprep.subr.mxu0 0.0
    %1681 = vmatpush1.msra.mxu0 0.0
    %1682 = vmatprep.subr.mxu0 0.0
    %1683 = vmatpush1.msra.mxu0 0.0
    %1684 = vmatprep.subr.mxu0 0.0
    %1685 = vmatpush1.msra.mxu0 0.0
    %1686 = vmatprep.subr.mxu0 0.0
    %1687 = vmatpush1.msra.mxu0 0.0
    %1688 = vmatprep.mubr.f32.mxu0 0.0
    %1689 = vmatmul.mubr.f32.gmra.mrb[0].mxu0 %v1481
    %v1690 = vpop.f32.mrb[0].mxu0
    %v1691 = vadd.f32 %v1621, %v1690
    %v1692 = vpop.f32.mrb[0].mxu0
    %1693 = vdwg.mxu0
    %v1694 = vadd.f32 %v1691, %v1399
    %1695 = vmatprep.subr.mxu0 0.0
    %1696 = vmatpush1.msra.mxu0 %v1388
    %1697 = vmatprep.subr.mxu0 0.0
    %1698 = vmatpush1.msra.mxu0 %v1389
    %1699 = vmatprep.subr.mxu0 0.0
    %1700 = vmatpush1.msra.mxu0 %v1390
    %1701 = vmatprep.subr.mxu0 0.0
    %1702 = vmatpush1.msra.mxu0 %v1391
    %1703 = vmatprep.subr.mxu0 0.0
    %1704 = vmatpush1.msra.mxu0 0.0
    %1705 = vmatprep.subr.mxu0 0.0
    %1706 = vmatpush1.msra.mxu0 0.0
    %1707 = vmatprep.subr.mxu0 0.0
    %1708 = vmatpush1.msra.mxu0 0.0
    %1709 = vmatprep.subr.mxu0 0.0
    %1710 = vmatpush1.msra.mxu0 0.0
    %1711 = vmatprep.subr.mxu0 0.0
    %1712 = vmatpush1.msra.mxu0 0.0
    %1713 = vmatprep.subr.mxu0 0.0
    %1714 = vmatpush1.msra.mxu0 0.0
    %1715 = vmatprep.subr.mxu0 0.0
    %1716 = vmatpush1.msra.mxu0 0.0
    %1717 = vmatprep.subr.mxu0 0.0
    %1718 = vmatpush1.msra.mxu0 0.0
    %1719 = vmatprep.subr.mxu0 0.0
    %1720 = vmatpush1.msra.mxu0 0.0
    %1721 = vmatprep.subr.mxu0 0.0
    %1722 = vmatpush1.msra.mxu0 0.0
    %1723 = vmatprep.subr.mxu0 0.0
    %1724 = vmatpush1.msra.mxu0 0.0
    %1725 = vmatprep.subr.mxu0 0.0
    %1726 = vmatpush1.msra.mxu0 0.0
    %1727 = vmatprep.subr.mxu0 0.0
    %1728 = vmatpush1.msra.mxu0 0.0
    %1729 = vmatprep.subr.mxu0 0.0
    %1730 = vmatpush1.msra.mxu0 0.0
    %1731 = vmatprep.subr.mxu0 0.0
    %1732 = vmatpush1.msra.mxu0 0.0
    %1733 = vmatprep.subr.mxu0 0.0
    %1734 = vmatpush1.msra.mxu0 0.0
    %1735 = vmatprep.subr.mxu0 0.0
    %1736 = vmatpush1.msra.mxu0 0.0
    %1737 = vmatprep.subr.mxu0 0.0
    %1738 = vmatpush1.msra.mxu0 0.0
    %1739 = vmatprep.subr.mxu0 0.0
    %1740 = vmatpush1.msra.mxu0 0.0
    %1741 = vmatprep.subr.mxu0 0.0
    %1742 = vmatpush1.msra.mxu0 0.0
    %1743 = vmatprep.subr.mxu0 0.0
    %1744 = vmatpush1.msra.mxu0 0.0
    %1745 = vmatprep.subr.mxu0 0.0
    %1746 = vmatpush1.msra.mxu0 0.0
    %1747 = vmatprep.subr.mxu0 0.0
    %1748 = vmatpush1.msra.mxu0 0.0
    %1749 = vmatprep.subr.mxu0 0.0
    %1750 = vmatpush1.msra.mxu0 0.0
    %1751 = vmatprep.subr.mxu0 0.0
    %1752 = vmatpush1.msra.mxu0 0.0
    %1753 = vmatprep.subr.mxu0 0.0
    %1754 = vmatpush1.msra.mxu0 0.0
    %1755 = vmatprep.subr.mxu0 0.0
    %1756 = vmatpush1.msra.mxu0 0.0
    %1757 = vmatprep.subr.mxu0 0.0
    %1758 = vmatpush1.msra.mxu0 0.0
    %1759 = vmatprep.mubr.f32.mxu0 0.0
    %1760 = vmatmul.mubr.f32.gmra.mrb[0].mxu0 %v1408
    %v1761 = vpop.f32.mrb[0].mxu0
    %v1762 = vadd.f32 0.0, %v1761
    %v1763 = vpop.f32.mrb[0].mxu0
    %1764 = vdwg.mxu0
    %1765 = vmatprep.subr.mxu0 0.0
    %1766 = vmatpush1.msra.mxu0 %v1369
    %1767 = vmatprep.subr.mxu0 0.0
    %1768 = vmatpush1.msra.mxu0 %v1370
    %1769 = vmatprep.subr.mxu0 0.0
    %1770 = vmatpush1.msra.mxu0 %v1371
    %1771 = vmatprep.subr.mxu0 0.0
    %1772 = vmatpush1.msra.mxu0 %v1372
    %1773 = vmatprep.subr.mxu0 0.0
    %1774 = vmatpush1.msra.mxu0 0.0
    %1775 = vmatprep.subr.mxu0 0.0
    %1776 = vmatpush1.msra.mxu0 0.0
    %1777 = vmatprep.subr.mxu0 0.0
    %1778 = vmatpush1.msra.mxu0 0.0
    %1779 = vmatprep.subr.mxu0 0.0
    %1780 = vmatpush1.msra.mxu0 0.0
    %1781 = vmatprep.subr.mxu0 0.0
    %1782 = vmatpush1.msra.mxu0 0.0
    %1783 = vmatprep.subr.mxu0 0.0
    %1784 = vmatpush1.msra.mxu0 0.0
    %1785 = vmatprep.subr.mxu0 0.0
    %1786 = vmatpush1.msra.mxu0 0.0
    %1787 = vmatprep.subr.mxu0 0.0
    %1788 = vmatpush1.msra.mxu0 0.0
    %1789 = vmatprep.subr.mxu0 0.0
    %1790 = vmatpush1.msra.mxu0 0.0
    %1791 = vmatprep.subr.mxu0 0.0
    %1792 = vmatpush1.msra.mxu0 0.0
    %1793 = vmatprep.subr.mxu0 0.0
    %1794 = vmatpush1.msra.mxu0 0.0
    %1795 = vmatprep.subr.mxu0 0.0
    %1796 = vmatpush1.msra.mxu0 0.0
    %1797 = vmatprep.subr.mxu0 0.0
    %1798 = vmatpush1.msra.mxu0 0.0
    %1799 = vmatprep.subr.mxu0 0.0
    %1800 = vmatpush1.msra.mxu0 0.0
    %1801 = vmatprep.subr.mxu0 0.0
    %1802 = vmatpush1.msra.mxu0 0.0
    %1803 = vmatprep.subr.mxu0 0.0
    %1804 = vmatpush1.msra.mxu0 0.0
    %1805 = vmatprep.subr.mxu0 0.0
    %1806 = vmatpush1.msra.mxu0 0.0
    %1807 = vmatprep.subr.mxu0 0.0
    %1808 = vmatpush1.msra.mxu0 0.0
    %1809 = vmatprep.subr.mxu0 0.0
    %1810 = vmatpush1.msra.mxu0 0.0
    %1811 = vmatprep.subr.mxu0 0.0
    %1812 = vmatpush1.msra.mxu0 0.0
    %1813 = vmatprep.subr.mxu0 0.0
    %1814 = vmatpush1.msra.mxu0 0.0
    %1815 = vmatprep.subr.mxu0 0.0
    %1816 = vmatpush1.msra.mxu0 0.0
    %1817 = vmatprep.subr.mxu0 0.0
    %1818 = vmatpush1.msra.mxu0 0.0
    %1819 = vmatprep.subr.mxu0 0.0
    %1820 = vmatpush1.msra.mxu0 0.0
    %1821 = vmatprep.subr.mxu0 0.0
    %1822 = vmatpush1.msra.mxu0 0.0
    %1823 = vmatprep.subr.mxu0 0.0
    %1824 = vmatpush1.msra.mxu0 0.0
    %1825 = vmatprep.subr.mxu0 0.0
    %1826 = vmatpush1.msra.mxu0 0.0
    %1827 = vmatprep.subr.mxu0 0.0
    %1828 = vmatpush1.msra.mxu0 0.0
    %1829 = vmatprep.mubr.f32.mxu0 0.0
    %1830 = vmatmul.mubr.f32.gmra.mrb[0].mxu0 %v1481
    %v1831 = vpop.f32.mrb[0].mxu0
    %v1832 = vadd.f32 %v1762, %v1831
    %v1833 = vpop.f32.mrb[0].mxu0
    %1834 = vdwg.mxu0
    %v1835 = vadd.f32 %v1832, %v1401
    %1836 = vmatprep.subr.mxu0 0.0
    %1837 = vmatpush1.msra.mxu0 %v1393
    %1838 = vmatprep.subr.mxu0 0.0
    %1839 = vmatpush1.msra.mxu0 %v1394
    %1840 = vmatprep.subr.mxu0 0.0
    %1841 = vmatpush1.msra.mxu0 %v1395
    %1842 = vmatprep.subr.mxu0 0.0
    %1843 = vmatpush1.msra.mxu0 %v1396
    %1844 = vmatprep.subr.mxu0 0.0
    %1845 = vmatpush1.msra.mxu0 0.0
    %1846 = vmatprep.subr.mxu0 0.0
    %1847 = vmatpush1.msra.mxu0 0.0
    %1848 = vmatprep.subr.mxu0 0.0
    %1849 = vmatpush1.msra.mxu0 0.0
    %1850 = vmatprep.subr.mxu0 0.0
    %1851 = vmatpush1.msra.mxu0 0.0
    %1852 = vmatprep.subr.mxu0 0.0
    %1853 = vmatpush1.msra.mxu0 0.0
    %1854 = vmatprep.subr.mxu0 0.0
    %1855 = vmatpush1.msra.mxu0 0.0
    %1856 = vmatprep.subr.mxu0 0.0
    %1857 = vmatpush1.msra.mxu0 0.0
    %1858 = vmatprep.subr.mxu0 0.0
    %1859 = vmatpush1.msra.mxu0 0.0
    %1860 = vmatprep.subr.mxu0 0.0
    %1861 = vmatpush1.msra.mxu0 0.0
    %1862 = vmatprep.subr.mxu0 0.0
    %1863 = vmatpush1.msra.mxu0 0.0
    %1864 = vmatprep.subr.mxu0 0.0
    %1865 = vmatpush1.msra.mxu0 0.0
    %1866 = vmatprep.subr.mxu0 0.0
    %1867 = vmatpush1.msra.mxu0 0.0
    %1868 = vmatprep.subr.mxu0 0.0
    %1869 = vmatpush1.msra.mxu0 0.0
    %1870 = vmatprep.subr.mxu0 0.0
    %1871 = vmatpush1.msra.mxu0 0.0
    %1872 = vmatprep.subr.mxu0 0.0
    %1873 = vmatpush1.msra.mxu0 0.0
    %1874 = vmatprep.subr.mxu0 0.0
    %1875 = vmatpush1.msra.mxu0 0.0
    %1876 = vmatprep.subr.mxu0 0.0
    %1877 = vmatpush1.msra.mxu0 0.0
    %1878 = vmatprep.subr.mxu0 0.0
    %1879 = vmatpush1.msra.mxu0 0.0
    %1880 = vmatprep.subr.mxu0 0.0
    %1881 = vmatpush1.msra.mxu0 0.0
    %1882 = vmatprep.subr.mxu0 0.0
    %1883 = vmatpush1.msra.mxu0 0.0
    %1884 = vmatprep.subr.mxu0 0.0
    %1885 = vmatpush1.msra.mxu0 0.0
    %1886 = vmatprep.subr.mxu0 0.0
    %1887 = vmatpush1.msra.mxu0 0.0
    %1888 = vmatprep.subr.mxu0 0.0
    %1889 = vmatpush1.msra.mxu0 0.0
    %1890 = vmatprep.subr.mxu0 0.0
    %1891 = vmatpush1.msra.mxu0 0.0
    %1892 = vmatprep.subr.mxu0 0.0
    %1893 = vmatpush1.msra.mxu0 0.0
    %1894 = vmatprep.subr.mxu0 0.0
    %1895 = vmatpush1.msra.mxu0 0.0
    %1896 = vmatprep.subr.mxu0 0.0
    %1897 = vmatpush1.msra.mxu0 0.0
    %1898 = vmatprep.subr.mxu0 0.0
    %1899 = vmatpush1.msra.mxu0 0.0
    %1900 = vmatprep.mubr.f32.mxu0 0.0
    %1901 = vmatmul.mubr.f32.gmra.mrb[0].mxu0 %v1408
    %v1902 = vpop.f32.mrb[0].mxu0
    %v1903 = vadd.f32 0.0, %v1902
    %v1904 = vpop.f32.mrb[0].mxu0
    %1905 = vdwg.mxu0
    %1906 = vmatprep.subr.mxu0 0.0
    %1907 = vmatpush1.msra.mxu0 %v1374
    %1908 = vmatprep.subr.mxu0 0.0
    %1909 = vmatpush1.msra.mxu0 %v1375
    %1910 = vmatprep.subr.mxu0 0.0
    %1911 = vmatpush1.msra.mxu0 %v1376
    %1912 = vmatprep.subr.mxu0 0.0
    %1913 = vmatpush1.msra.mxu0 %v1377
    %1914 = vmatprep.subr.mxu0 0.0
    %1915 = vmatpush1.msra.mxu0 0.0
    %1916 = vmatprep.subr.mxu0 0.0
    %1917 = vmatpush1.msra.mxu0 0.0
    %1918 = vmatprep.subr.mxu0 0.0
    %1919 = vmatpush1.msra.mxu0 0.0
    %1920 = vmatprep.subr.mxu0 0.0
    %1921 = vmatpush1.msra.mxu0 0.0
    %1922 = vmatprep.subr.mxu0 0.0
    %1923 = vmatpush1.msra.mxu0 0.0
    %1924 = vmatprep.subr.mxu0 0.0
    %1925 = vmatpush1.msra.mxu0 0.0
    %1926 = vmatprep.subr.mxu0 0.0
    %1927 = vmatpush1.msra.mxu0 0.0
    %1928 = vmatprep.subr.mxu0 0.0
    %1929 = vmatpush1.msra.mxu0 0.0
    %1930 = vmatprep.subr.mxu0 0.0
    %1931 = vmatpush1.msra.mxu0 0.0
    %1932 = vmatprep.subr.mxu0 0.0
    %1933 = vmatpush1.msra.mxu0 0.0
    %1934 = vmatprep.subr.mxu0 0.0
    %1935 = vmatpush1.msra.mxu0 0.0
    %1936 = vmatprep.subr.mxu0 0.0
    %1937 = vmatpush1.msra.mxu0 0.0
    %1938 = vmatprep.subr.mxu0 0.0
    %1939 = vmatpush1.msra.mxu0 0.0
    %1940 = vmatprep.subr.mxu0 0.0
    %1941 = vmatpush1.msra.mxu0 0.0
    %1942 = vmatprep.subr.mxu0 0.0
    %1943 = vmatpush1.msra.mxu0 0.0
    %1944 = vmatprep.subr.mxu0 0.0
    %1945 = vmatpush1.msra.mxu0 0.0
    %1946 = vmatprep.subr.mxu0 0.0
    %1947 = vmatpush1.msra.mxu0 0.0
    %1948 = vmatprep.subr.mxu0 0.0
    %1949 = vmatpush1.msra.mxu0 0.0
    %1950 = vmatprep.subr.mxu0 0.0
    %1951 = vmatpush1.msra.mxu0 0.0
    %1952 = vmatprep.subr.mxu0 0.0
    %1953 = vmatpush1.msra.mxu0 0.0
    %1954 = vmatprep.subr.mxu0 0.0
    %1955 = vmatpush1.msra.mxu0 0.0
    %1956 = vmatprep.subr.mxu0 0.0
    %1957 = vmatpush1.msra.mxu0 0.0
    %1958 = vmatprep.subr.mxu0 0.0
    %1959 = vmatpush1.msra.mxu0 0.0
    %1960 = vmatprep.subr.mxu0 0.0
    %1961 = vmatpush1.msra.mxu0 0.0
    %1962 = vmatprep.subr.mxu0 0.0
    %1963 = vmatpush1.msra.mxu0 0.0
    %1964 = vmatprep.subr.mxu0 0.0
    %1965 = vmatpush1.msra.mxu0 0.0
    %1966 = vmatprep.subr.mxu0 0.0
    %1967 = vmatpush1.msra.mxu0 0.0
    %1968 = vmatprep.subr.mxu0 0.0
    %1969 = vmatpush1.msra.mxu0 0.0
    %1970 = vmatprep.mubr.f32.mxu0 0.0
    %1971 = vmatmul.mubr.f32.gmra.mrb[0].mxu0 %v1481
    %v1972 = vpop.f32.mrb[0].mxu0
    %v1973 = vadd.f32 %v1903, %v1972
    %v1974 = vpop.f32.mrb[0].mxu0
    %1975 = vdwg.mxu0
    %v1976 = vadd.f32 %v1973, %v1403
    %v1977 = vxor.u32 %v1553, 2147483648
    %v1978 = vmul.f32 %v1977, 1.442695
    %v1979 = vpow.pop %v1978
    %v1980 = vadd.f32 %v1979, 1.0
    %v1981 = vrcp.pop %v1980
    %v1982 = vmul.f32 1.0, %v1981
    %v1983 = vxor.u32 %v1694, 2147483648
    %v1984 = vmul.f32 %v1983, 1.442695
    %v1985 = vpow.pop %v1984
    %v1986 = vadd.f32 %v1985, 1.0
    %v1987 = vrcp.pop %v1986
    %v1988 = vmul.f32 1.0, %v1987
    %v1989 = vtanh.pop %v1835
    %v1990 = vxor.u32 %v1976, 2147483648
    %v1991 = vmul.f32 %v1990, 1.442695
    %v1992 = vpow.pop %v1991
    %v1993 = vadd.f32 %v1992, 1.0
    %v1994 = vrcp.pop %v1993
    %v1995 = vmul.f32 1.0, %v1994
    %v1996 = vmul.f32 %v1988, %v1405
    %v1997 = vmul.f32 %v1982, %v1989
    %v1998 = vadd.f32 %v1996, %v1997
    %v1999 = vtanh.pop %v1998
    %v2000 = vmul.f32 %v1995, %v1999
    %v2002 = vsel %vm1406, %v2000, 0
    %2004 = vmatprep.subr.mxu0 0.0
    %2005 = vmatpush1.msra.mxu0 %v1378
    %2006 = vmatprep.subr.mxu0 0.0
    %2007 = vmatpush1.msra.mxu0 %v1379
    %2008 = vmatprep.subr.mxu0 0.0
    %2009 = vmatpush1.msra.mxu0 %v1380
    %2010 = vmatprep.subr.mxu0 0.0
    %2011 = vmatpush1.msra.mxu0 %v1381
    %2012 = vmatprep.subr.mxu0 0.0
    %2013 = vmatpush1.msra.mxu0 0.0
    %2014 = vmatprep.subr.mxu0 0.0
    %2015 = vmatpush1.msra.mxu0 0.0
    %2016 = vmatprep.subr.mxu0 0.0
    %2017 = vmatpush1.msra.mxu0 0.0
    %2018 = vmatprep.subr.mxu0 0.0
    %2019 = vmatpush1.msra.mxu0 0.0
    %2020 = vmatprep.subr.mxu0 0.0
    %2021 = vmatpush1.msra.mxu0 0.0
    %2022 = vmatprep.subr.mxu0 0.0
    %2023 = vmatpush1.msra.mxu0 0.0
    %2024 = vmatprep.subr.mxu0 0.0
    %2025 = vmatpush1.msra.mxu0 0.0
    %2026 = vmatprep.subr.mxu0 0.0
    %2027 = vmatpush1.msra.mxu0 0.0
    %2028 = vmatprep.subr.mxu0 0.0
    %2029 = vmatpush1.msra.mxu0 0.0
    %2030 = vmatprep.subr.mxu0 0.0
    %2031 = vmatpush1.msra.mxu0 0.0
    %2032 = vmatprep.subr.mxu0 0.0
    %2033 = vmatpush1.msra.mxu0 0.0
    %2034 = vmatprep.subr.mxu0 0.0
    %2035 = vmatpush1.msra.mxu0 0.0
    %2036 = vmatprep.subr.mxu0 0.0
    %2037 = vmatpush1.msra.mxu0 0.0
    %2038 = vmatprep.subr.mxu0 0.0
    %2039 = vmatpush1.msra.mxu0 0.0
    %2040 = vmatprep.subr.mxu0 0.0
    %2041 = vmatpush1.msra.mxu0 0.0
    %2042 = vmatprep.subr.mxu0 0.0
    %2043 = vmatpush1.msra.mxu0 0.0
    %2044 = vmatprep.subr.mxu0 0.0
    %2045 = vmatpush1.msra.mxu0 0.0
    %2046 = vmatprep.subr.mxu0 0.0
    %2047 = vmatpush1.msra.mxu0 0.0
    %2048 = vmatprep.subr.mxu0 0.0
    %2049 = vmatpush1.msra.mxu0 0.0
    %2050 = vmatprep.subr.mxu0 0.0
    %2051 = vmatpush1.msra.mxu0 0.0
    %2052 = vmatprep.subr.mxu0 0.0
    %2053 = vmatpush1.msra.mxu0 0.0
    %2054 = vmatprep.subr.mxu0 0.0
    %2055 = vmatpush1.msra.mxu0 0.0
    %2056 = vmatprep.subr.mxu0 0.0
    %2057 = vmatpush1.msra.mxu0 0.0
    %2058 = vmatprep.subr.mxu0 0.0
    %2059 = vmatpush1.msra.mxu0 0.0
    %2060 = vmatprep.subr.mxu0 0.0
    %2061 = vmatpush1.msra.mxu0 0.0
    %2062 = vmatprep.subr.mxu0 0.0
    %2063 = vmatpush1.msra.mxu0 0.0
    %2064 = vmatprep.subr.mxu0 0.0
    %2065 = vmatpush1.msra.mxu0 0.0
    %2066 = vmatprep.subr.mxu0 0.0
    %2067 = vmatpush1.msra.mxu0 0.0
    %2068 = vmatprep.mubr.f32.mxu0 0.0
    %2069 = vmatmul.mubr.f32.gmra.mrb[0].mxu0 %v2002
    %v2070 = vpop.f32.mrb[0].mxu0
    %v2071 = vadd.f32 0.0, %v2070
    %v2072 = vpop.f32.mrb[0].mxu0
    %2073 = vdwg.mxu0
    %v2074 = vrot.slane %v1356, 1
    %v2075 = vsel %vm1406, %v2074, 0
    %2077 = vmatprep.subr.mxu0 0.0
    %2078 = vmatpush1.msra.mxu0 %v1359
    %2079 = vmatprep.subr.mxu0 0.0
    %2080 = vmatpush1.msra.mxu0 %v1360
    %2081 = vmatprep.subr.mxu0 0.0
    %2082 = vmatpush1.msra.mxu0 %v1361
    %2083 = vmatprep.subr.mxu0 0.0
    %2084 = vmatpush1.msra.mxu0 %v1362
    %2085 = vmatprep.subr.mxu0 0.0
    %2086 = vmatpush1.msra.mxu0 0.0
    %2087 = vmatprep.subr.mxu0 0.0
    %2088 = vmatpush1.msra.mxu0 0.0
    %2089 = vmatprep.subr.mxu0 0.0
    %2090 = vmatpush1.msra.mxu0 0.0
    %2091 = vmatprep.subr.mxu0 0.0
    %2092 = vmatpush1.msra.mxu0 0.0
    %2093 = vmatprep.subr.mxu0 0.0
    %2094 = vmatpush1.msra.mxu0 0.0
    %2095 = vmatprep.subr.mxu0 0.0
    %2096 = vmatpush1.msra.mxu0 0.0
    %2097 = vmatprep.subr.mxu0 0.0
    %2098 = vmatpush1.msra.mxu0 0.0
    %2099 = vmatprep.subr.mxu0 0.0
    %2100 = vmatpush1.msra.mxu0 0.0
    %2101 = vmatprep.subr.mxu0 0.0
    %2102 = vmatpush1.msra.mxu0 0.0
    %2103 = vmatprep.subr.mxu0 0.0
    %2104 = vmatpush1.msra.mxu0 0.0
    %2105 = vmatprep.subr.mxu0 0.0
    %2106 = vmatpush1.msra.mxu0 0.0
    %2107 = vmatprep.subr.mxu0 0.0
    %2108 = vmatpush1.msra.mxu0 0.0
    %2109 = vmatprep.subr.mxu0 0.0
    %2110 = vmatpush1.msra.mxu0 0.0
    %2111 = vmatprep.subr.mxu0 0.0
    %2112 = vmatpush1.msra.mxu0 0.0
    %2113 = vmatprep.subr.mxu0 0.0
    %2114 = vmatpush1.msra.mxu0 0.0
    %2115 = vmatprep.subr.mxu0 0.0
    %2116 = vmatpush1.msra.mxu0 0.0
    %2117 = vmatprep.subr.mxu0 0.0
    %2118 = vmatpush1.msra.mxu0 0.0
    %2119 = vmatprep.subr.mxu0 0.0
    %2120 = vmatpush1.msra.mxu0 0.0
    %2121 = vmatprep.subr.mxu0 0.0
    %2122 = vmatpush1.msra.mxu0 0.0
    %2123 = vmatprep.subr.mxu0 0.0
    %2124 = vmatpush1.msra.mxu0 0.0
    %2125 = vmatprep.subr.mxu0 0.0
    %2126 = vmatpush1.msra.mxu0 0.0
    %2127 = vmatprep.subr.mxu0 0.0
    %2128 = vmatpush1.msra.mxu0 0.0
    %2129 = vmatprep.subr.mxu0 0.0
    %2130 = vmatpush1.msra.mxu0 0.0
    %2131 = vmatprep.subr.mxu0 0.0
    %2132 = vmatpush1.msra.mxu0 0.0
    %2133 = vmatprep.subr.mxu0 0.0
    %2134 = vmatpush1.msra.mxu0 0.0
    %2135 = vmatprep.subr.mxu0 0.0
    %2136 = vmatpush1.msra.mxu0 0.0
    %2137 = vmatprep.subr.mxu0 0.0
    %2138 = vmatpush1.msra.mxu0 0.0
    %2139 = vmatprep.subr.mxu0 0.0
    %2140 = vmatpush1.msra.mxu0 0.0
    %2141 = vmatprep.mubr.f32.mxu0 0.0
    %2142 = vmatmul.mubr.f32.gmra.mrb[0].mxu0 %v2075
    %v2143 = vpop.f32.mrb[0].mxu0
    %v2144 = vadd.f32 %v2071, %v2143
    %v2145 = vpop.f32.mrb[0].mxu0
    %2146 = vdwg.mxu0
    %v2147 = vadd.f32 %v2144, %v1397
    %2148 = vmatprep.subr.mxu0 0.0
    %2149 = vmatpush1.msra.mxu0 %v1383
    %2150 = vmatprep.subr.mxu0 0.0
    %2151 = vmatpush1.msra.mxu0 %v1384
    %2152 = vmatprep.subr.mxu0 0.0
    %2153 = vmatpush1.msra.mxu0 %v1385
    %2154 = vmatprep.subr.mxu0 0.0
    %2155 = vmatpush1.msra.mxu0 %v1386
    %2156 = vmatprep.subr.mxu0 0.0
    %2157 = vmatpush1.msra.mxu0 0.0
    %2158 = vmatprep.subr.mxu0 0.0
    %2159 = vmatpush1.msra.mxu0 0.0
    %2160 = vmatprep.subr.mxu0 0.0
    %2161 = vmatpush1.msra.mxu0 0.0
    %2162 = vmatprep.subr.mxu0 0.0
    %2163 = vmatpush1.msra.mxu0 0.0
    %2164 = vmatprep.subr.mxu0 0.0
    %2165 = vmatpush1.msra.mxu0 0.0
    %2166 = vmatprep.subr.mxu0 0.0
    %2167 = vmatpush1.msra.mxu0 0.0
    %2168 = vmatprep.subr.mxu0 0.0
    %2169 = vmatpush1.msra.mxu0 0.0
    %2170 = vmatprep.subr.mxu0 0.0
    %2171 = vmatpush1.msra.mxu0 0.0
    %2172 = vmatprep.subr.mxu0 0.0
    %2173 = vmatpush1.msra.mxu0 0.0
    %2174 = vmatprep.subr.mxu0 0.0
    %2175 = vmatpush1.msra.mxu0 0.0
    %2176 = vmatprep.subr.mxu0 0.0
    %2177 = vmatpush1.msra.mxu0 0.0
    %2178 = vmatprep.subr.mxu0 0.0
    %2179 = vmatpush1.msra.mxu0 0.0
    %2180 = vmatprep.subr.mxu0 0.0
    %2181 = vmatpush1.msra.mxu0 0.0
    %2182 = vmatprep.subr.mxu0 0.0
    %2183 = vmatpush1.msra.mxu0 0.0
    %2184 = vmatprep.subr.mxu0 0.0
    %2185 = vmatpush1.msra.mxu0 0.0
    %2186 = vmatprep.subr.mxu0 0.0
    %2187 = vmatpush1.msra.mxu0 0.0
    %2188 = vmatprep.subr.mxu0 0.0
    %2189 = vmatpush1.msra.mxu0 0.0
    %2190 = vmatprep.subr.mxu0 0.0
    %2191 = vmatpush1.msra.mxu0 0.0
    %2192 = vmatprep.subr.mxu0 0.0
    %2193 = vmatpush1.msra.mxu0 0.0
    %2194 = vmatprep.subr.mxu0 0.0
    %2195 = vmatpush1.msra.mxu0 0.0
    %2196 = vmatprep.subr.mxu0 0.0
    %2197 = vmatpush1.msra.mxu0 0.0
    %2198 = vmatprep.subr.mxu0 0.0
    %2199 = vmatpush1.msra.mxu0 0.0
    %2200 = vmatprep.subr.mxu0 0.0
    %2201 = vmatpush1.msra.mxu0 0.0
    %2202 = vmatprep.subr.mxu0 0.0
    %2203 = vmatpush1.msra.mxu0 0.0
    %2204 = vmatprep.subr.mxu0 0.0
    %2205 = vmatpush1.msra.mxu0 0.0
    %2206 = vmatprep.subr.mxu0 0.0
    %2207 = vmatpush1.msra.mxu0 0.0
    %2208 = vmatprep.subr.mxu0 0.0
    %2209 = vmatpush1.msra.mxu0 0.0
    %2210 = vmatprep.subr.mxu0 0.0
    %2211 = vmatpush1.msra.mxu0 0.0
    %2212 = vmatprep.mubr.f32.mxu0 0.0
    %2213 = vmatmul.mubr.f32.gmra.mrb[0].mxu0 %v2002
    %v2214 = vpop.f32.mrb[0].mxu0
    %v2215 = vadd.f32 0.0, %v2214
    %v2216 = vpop.f32.mrb[0].mxu0
    %2217 = vdwg.mxu0
    %2218 = vmatprep.subr.mxu0 0.0
    %2219 = vmatpush1.msra.mxu0 %v1364
    %2220 = vmatprep.subr.mxu0 0.0
    %2221 = vmatpush1.msra.mxu0 %v1365
    %2222 = vmatprep.subr.mxu0 0.0
    %2223 = vmatpush1.msra.mxu0 %v1366
    %2224 = vmatprep.subr.mxu0 0.0
    %2225 = vmatpush1.msra.mxu0 %v1367
    %2226 = vmatprep.subr.mxu0 0.0
    %2227 = vmatpush1.msra.mxu0 0.0
    %2228 = vmatprep.subr.mxu0 0.0
    %2229 = vmatpush1.msra.mxu0 0.0
    %2230 = vmatprep.subr.mxu0 0.0
    %2231 = vmatpush1.msra.mxu0 0.0
    %2232 = vmatprep.subr.mxu0 0.0
    %2233 = vmatpush1.msra.mxu0 0.0
    %2234 = vmatprep.subr.mxu0 0.0
    %2235 = vmatpush1.msra.mxu0 0.0
    %2236 = vmatprep.subr.mxu0 0.0
    %2237 = vmatpush1.msra.mxu0 0.0
    %2238 = vmatprep.subr.mxu0 0.0
    %2239 = vmatpush1.msra.mxu0 0.0
    %2240 = vmatprep.subr.mxu0 0.0
    %2241 = vmatpush1.msra.mxu0 0.0
    %2242 = vmatprep.subr.mxu0 0.0
    %2243 = vmatpush1.msra.mxu0 0.0
    %2244 = vmatprep.subr.mxu0 0.0
    %2245 = vmatpush1.msra.mxu0 0.0
    %2246 = vmatprep.subr.mxu0 0.0
    %2247 = vmatpush1.msra.mxu0 0.0
    %2248 = vmatprep.subr.mxu0 0.0
    %2249 = vmatpush1.msra.mxu0 0.0
    %2250 = vmatprep.subr.mxu0 0.0
    %2251 = vmatpush1.msra.mxu0 0.0
    %2252 = vmatprep.subr.mxu0 0.0
    %2253 = vmatpush1.msra.mxu0 0.0
    %2254 = vmatprep.subr.mxu0 0.0
    %2255 = vmatpush1.msra.mxu0 0.0
    %2256 = vmatprep.subr.mxu0 0.0
    %2257 = vmatpush1.msra.mxu0 0.0
    %2258 = vmatprep.subr.mxu0 0.0
    %2259 = vmatpush1.msra.mxu0 0.0
    %2260 = vmatprep.subr.mxu0 0.0
    %2261 = vmatpush1.msra.mxu0 0.0
    %2262 = vmatprep.subr.mxu0 0.0
    %2263 = vmatpush1.msra.mxu0 0.0
    %2264 = vmatprep.subr.mxu0 0.0
    %2265 = vmatpush1.msra.mxu0 0.0
    %2266 = vmatprep.subr.mxu0 0.0
    %2267 = vmatpush1.msra.mxu0 0.0
    %2268 = vmatprep.subr.mxu0 0.0
    %2269 = vmatpush1.msra.mxu0 0.0
    %2270 = vmatprep.subr.mxu0 0.0
    %2271 = vmatpush1.msra.mxu0 0.0
    %2272 = vmatprep.subr.mxu0 0.0
    %2273 = vmatpush1.msra.mxu0 0.0
    %2274 = vmatprep.subr.mxu0 0.0
    %2275 = vmatpush1.msra.mxu0 0.0
    %2276 = vmatprep.subr.mxu0 0.0
    %2277 = vmatpush1.msra.mxu0 0.0
    %2278 = vmatprep.subr.mxu0 0.0
    %2279 = vmatpush1.msra.mxu0 0.0
    %2280 = vmatprep.subr.mxu0 0.0
    %2281 = vmatpush1.msra.mxu0 0.0
    %2282 = vmatprep.mubr.f32.mxu0 0.0
    %2283 = vmatmul.mubr.f32.gmra.mrb[0].mxu0 %v2075
    %v2284 = vpop.f32.mrb[0].mxu0
    %v2285 = vadd.f32 %v2215, %v2284
    %v2286 = vpop.f32.mrb[0].mxu0
    %2287 = vdwg.mxu0
    %v2288 = vadd.f32 %v2285, %v1399
    %2289 = vmatprep.subr.mxu0 0.0
    %2290 = vmatpush1.msra.mxu0 %v1388
    %2291 = vmatprep.subr.mxu0 0.0
    %2292 = vmatpush1.msra.mxu0 %v1389
    %2293 = vmatprep.subr.mxu0 0.0
    %2294 = vmatpush1.msra.mxu0 %v1390
    %2295 = vmatprep.subr.mxu0 0.0
    %2296 = vmatpush1.msra.mxu0 %v1391
    %2297 = vmatprep.subr.mxu0 0.0
    %2298 = vmatpush1.msra.mxu0 0.0
    %2299 = vmatprep.subr.mxu0 0.0
    %2300 = vmatpush1.msra.mxu0 0.0
    %2301 = vmatprep.subr.mxu0 0.0
    %2302 = vmatpush1.msra.mxu0 0.0
    %2303 = vmatprep.subr.mxu0 0.0
    %2304 = vmatpush1.msra.mxu0 0.0
    %2305 = vmatprep.subr.mxu0 0.0
    %2306 = vmatpush1.msra.mxu0 0.0
    %2307 = vmatprep.subr.mxu0 0.0
    %2308 = vmatpush1.msra.mxu0 0.0
    %2309 = vmatprep.subr.mxu0 0.0
    %2310 = vmatpush1.msra.mxu0 0.0
    %2311 = vmatprep.subr.mxu0 0.0
    %2312 = vmatpush1.msra.mxu0 0.0
    %2313 = vmatprep.subr.mxu0 0.0
    %2314 = vmatpush1.msra.mxu0 0.0
    %2315 = vmatprep.subr.mxu0 0.0
    %2316 = vmatpush1.msra.mxu0 0.0
    %2317 = vmatprep.subr.mxu0 0.0
    %2318 = vmatpush1.msra.mxu0 0.0
    %2319 = vmatprep.subr.mxu0 0.0
    %2320 = vmatpush1.msra.mxu0 0.0
    %2321 = vmatprep.subr.mxu0 0.0
    %2322 = vmatpush1.msra.mxu0 0.0
    %2323 = vmatprep.subr.mxu0 0.0
    %2324 = vmatpush1.msra.mxu0 0.0
    %2325 = vmatprep.subr.mxu0 0.0
    %2326 = vmatpush1.msra.mxu0 0.0
    %2327 = vmatprep.subr.mxu0 0.0
    %2328 = vmatpush1.msra.mxu0 0.0
    %2329 = vmatprep.subr.mxu0 0.0
    %2330 = vmatpush1.msra.mxu0 0.0
    %2331 = vmatprep.subr.mxu0 0.0
    %2332 = vmatpush1.msra.mxu0 0.0
    %2333 = vmatprep.subr.mxu0 0.0
    %2334 = vmatpush1.msra.mxu0 0.0
    %2335 = vmatprep.subr.mxu0 0.0
    %2336 = vmatpush1.msra.mxu0 0.0
    %2337 = vmatprep.subr.mxu0 0.0
    %2338 = vmatpush1.msra.mxu0 0.0
    %2339 = vmatprep.subr.mxu0 0.0
    %2340 = vmatpush1.msra.mxu0 0.0
    %2341 = vmatprep.subr.mxu0 0.0
    %2342 = vmatpush1.msra.mxu0 0.0
    %2343 = vmatprep.subr.mxu0 0.0
    %2344 = vmatpush1.msra.mxu0 0.0
    %2345 = vmatprep.subr.mxu0 0.0
    %2346 = vmatpush1.msra.mxu0 0.0
    %2347 = vmatprep.subr.mxu0 0.0
    %2348 = vmatpush1.msra.mxu0 0.0
    %2349 = vmatprep.subr.mxu0 0.0
    %2350 = vmatpush1.msra.mxu0 0.0
    %2351 = vmatprep.subr.mxu0 0.0
    %2352 = vmatpush1.msra.mxu0 0.0
    %2353 = vmatprep.mubr.f32.mxu0 0.0
    %2354 = vmatmul.mubr.f32.gmra.mrb[0].mxu0 %v2002
    %v2355 = vpop.f32.mrb[0].mxu0
    %v2356 = vadd.f32 0.0, %v2355
    %v2357 = vpop.f32.mrb[0].mxu0
    %2358 = vdwg.mxu0
    %2359 = vmatprep.subr.mxu0 0.0
    %2360 = vmatpush1.msra.mxu0 %v1369
    %2361 = vmatprep.subr.mxu0 0.0
    %2362 = vmatpush1.msra.mxu0 %v1370
    %2363 = vmatprep.subr.mxu0 0.0
    %2364 = vmatpush1.msra.mxu0 %v1371
    %2365 = vmatprep.subr.mxu0 0.0
    %2366 = vmatpush1.msra.mxu0 %v1372
    %2367 = vmatprep.subr.mxu0 0.0
    %2368 = vmatpush1.msra.mxu0 0.0
    %2369 = vmatprep.subr.mxu0 0.0
    %2370 = vmatpush1.msra.mxu0 0.0
    %2371 = vmatprep.subr.mxu0 0.0
    %2372 = vmatpush1.msra.mxu0 0.0
    %2373 = vmatprep.subr.mxu0 0.0
    %2374 = vmatpush1.msra.mxu0 0.0
    %2375 = vmatprep.subr.mxu0 0.0
    %2376 = vmatpush1.msra.mxu0 0.0
    %2377 = vmatprep.subr.mxu0 0.0
    %2378 = vmatpush1.msra.mxu0 0.0
    %2379 = vmatprep.subr.mxu0 0.0
    %2380 = vmatpush1.msra.mxu0 0.0
    %2381 = vmatprep.subr.mxu0 0.0
    %2382 = vmatpush1.msra.mxu0 0.0
    %2383 = vmatprep.subr.mxu0 0.0
    %2384 = vmatpush1.msra.mxu0 0.0
    %2385 = vmatprep.subr.mxu0 0.0
    %2386 = vmatpush1.msra.mxu0 0.0
    %2387 = vmatprep.subr.mxu0 0.0
    %2388 = vmatpush1.msra.mxu0 0.0
    %2389 = vmatprep.subr.mxu0 0.0
    %2390 = vmatpush1.msra.mxu0 0.0
    %2391 = vmatprep.subr.mxu0 0.0
    %2392 = vmatpush1.msra.mxu0 0.0
    %2393 = vmatprep.subr.mxu0 0.0
    %2394 = vmatpush1.msra.mxu0 0.0
    %2395 = vmatprep.subr.mxu0 0.0
    %2396 = vmatpush1.msra.mxu0 0.0
    %2397 = vmatprep.subr.mxu0 0.0
    %2398 = vmatpush1.msra.mxu0 0.0
    %2399 = vmatprep.subr.mxu0 0.0
    %2400 = vmatpush1.msra.mxu0 0.0
    %2401 = vmatprep.subr.mxu0 0.0
    %2402 = vmatpush1.msra.mxu0 0.0
    %2403 = vmatprep.subr.mxu0 0.0
    %2404 = vmatpush1.msra.mxu0 0.0
    %2405 = vmatprep.subr.mxu0 0.0
    %2406 = vmatpush1.msra.mxu0 0.0
    %2407 = vmatprep.subr.mxu0 0.0
    %2408 = vmatpush1.msra.mxu0 0.0
    %2409 = vmatprep.subr.mxu0 0.0
    %2410 = vmatpush1.msra.mxu0 0.0
    %2411 = vmatprep.subr.mxu0 0.0
    %2412 = vmatpush1.msra.mxu0 0.0
    %2413 = vmatprep.subr.mxu0 0.0
    %2414 = vmatpush1.msra.mxu0 0.0
    %2415 = vmatprep.subr.mxu0 0.0
    %2416 = vmatpush1.msra.mxu0 0.0
    %2417 = vmatprep.subr.mxu0 0.0
    %2418 = vmatpush1.msra.mxu0 0.0
    %2419 = vmatprep.subr.mxu0 0.0
    %2420 = vmatpush1.msra.mxu0 0.0
    %2421 = vmatprep.subr.mxu0 0.0
    %2422 = vmatpush1.msra.mxu0 0.0
    %2423 = vmatprep.mubr.f32.mxu0 0.0
    %2424 = vmatmul.mubr.f32.gmra.mrb[0].mxu0 %v2075
    %v2425 = vpop.f32.mrb[0].mxu0
    %v2426 = vadd.f32 %v2356, %v2425
    %v2427 = vpop.f32.mrb[0].mxu0
    %2428 = vdwg.mxu0
    %v2429 = vadd.f32 %v2426, %v1401
    %2430 = vmatprep.subr.mxu0 0.0
    %2431 = vmatpush1.msra.mxu0 %v1393
    %2432 = vmatprep.subr.mxu0 0.0
    %2433 = vmatpush1.msra.mxu0 %v1394
    %2434 = vmatprep.subr.mxu0 0.0
    %2435 = vmatpush1.msra.mxu0 %v1395
    %2436 = vmatprep.subr.mxu0 0.0
    %2437 = vmatpush1.msra.mxu0 %v1396
    %2438 = vmatprep.subr.mxu0 0.0
    %2439 = vmatpush1.msra.mxu0 0.0
    %2440 = vmatprep.subr.mxu0 0.0
    %2441 = vmatpush1.msra.mxu0 0.0
    %2442 = vmatprep.subr.mxu0 0.0
    %2443 = vmatpush1.msra.mxu0 0.0
    %2444 = vmatprep.subr.mxu0 0.0
    %2445 = vmatpush1.msra.mxu0 0.0
    %2446 = vmatprep.subr.mxu0 0.0
    %2447 = vmatpush1.msra.mxu0 0.0
    %2448 = vmatprep.subr.mxu0 0.0
    %2449 = vmatpush1.msra.mxu0 0.0
    %2450 = vmatprep.subr.mxu0 0.0
    %2451 = vmatpush1.msra.mxu0 0.0
    %2452 = vmatprep.subr.mxu0 0.0
    %2453 = vmatpush1.msra.mxu0 0.0
    %2454 = vmatprep.subr.mxu0 0.0
    %2455 = vmatpush1.msra.mxu0 0.0
    %2456 = vmatprep.subr.mxu0 0.0
    %2457 = vmatpush1.msra.mxu0 0.0
    %2458 = vmatprep.subr.mxu0 0.0
    %2459 = vmatpush1.msra.mxu0 0.0
    %2460 = vmatprep.subr.mxu0 0.0
    %2461 = vmatpush1.msra.mxu0 0.0
    %2462 = vmatprep.subr.mxu0 0.0
    %2463 = vmatpush1.msra.mxu0 0.0
    %2464 = vmatprep.subr.mxu0 0.0
    %2465 = vmatpush1.msra.mxu0 0.0
    %2466 = vmatprep.subr.mxu0 0.0
    %2467 = vmatpush1.msra.mxu0 0.0
    %2468 = vmatprep.subr.mxu0 0.0
    %2469 = vmatpush1.msra.mxu0 0.0
    %2470 = vmatprep.subr.mxu0 0.0
    %2471 = vmatpush1.msra.mxu0 0.0
    %2472 = vmatprep.subr.mxu0 0.0
    %2473 = vmatpush1.msra.mxu0 0.0
    %2474 = vmatprep.subr.mxu0 0.0
    %2475 = vmatpush1.msra.mxu0 0.0
    %2476 = vmatprep.subr.mxu0 0.0
    %2477 = vmatpush1.msra.mxu0 0.0
    %2478 = vmatprep.subr.mxu0 0.0
    %2479 = vmatpush1.msra.mxu0 0.0
    %2480 = vmatprep.subr.mxu0 0.0
    %2481 = vmatpush1.msra.mxu0 0.0
    %2482 = vmatprep.subr.mxu0 0.0
    %2483 = vmatpush1.msra.mxu0 0.0
    %2484 = vmatprep.subr.mxu0 0.0
    %2485 = vmatpush1.msra.mxu0 0.0
    %2486 = vmatprep.subr.mxu0 0.0
    %2487 = vmatpush1.msra.mxu0 0.0
    %2488 = vmatprep.subr.mxu0 0.0
    %2489 = vmatpush1.msra.mxu0 0.0
    %2490 = vmatprep.subr.mxu0 0.0
    %2491 = vmatpush1.msra.mxu0 0.0
    %2492 = vmatprep.subr.mxu0 0.0
    %2493 = vmatpush1.msra.mxu0 0.0
    %2494 = vmatprep.mubr.f32.mxu0 0.0
    %2495 = vmatmul.mubr.f32.gmra.mrb[0].mxu0 %v2002
    %v2496 = vpop.f32.mrb[0].mxu0
    %v2497 = vadd.f32 0.0, %v2496
    %v2498 = vpop.f32.mrb[0].mxu0
    %2499 = vdwg.mxu0
    %2500 = vmatprep.subr.mxu0 0.0
    %2501 = vmatpush1.msra.mxu0 %v1374
    %2502 = vmatprep.subr.mxu0 0.0
    %2503 = vmatpush1.msra.mxu0 %v1375
    %2504 = vmatprep.subr.mxu0 0.0
    %2505 = vmatpush1.msra.mxu0 %v1376
    %2506 = vmatprep.subr.mxu0 0.0
    %2507 = vmatpush1.msra.mxu0 %v1377
    %2508 = vmatprep.subr.mxu0 0.0
    %2509 = vmatpush1.msra.mxu0 0.0
    %2510 = vmatprep.subr.mxu0 0.0
    %2511 = vmatpush1.msra.mxu0 0.0
    %2512 = vmatprep.subr.mxu0 0.0
    %2513 = vmatpush1.msra.mxu0 0.0
    %2514 = vmatprep.subr.mxu0 0.0
    %2515 = vmatpush1.msra.mxu0 0.0
    %2516 = vmatprep.subr.mxu0 0.0
    %2517 = vmatpush1.msra.mxu0 0.0
    %2518 = vmatprep.subr.mxu0 0.0
    %2519 = vmatpush1.msra.mxu0 0.0
    %2520 = vmatprep.subr.mxu0 0.0
    %2521 = vmatpush1.msra.mxu0 0.0
    %2522 = vmatprep.subr.mxu0 0.0
    %2523 = vmatpush1.msra.mxu0 0.0
    %2524 = vmatprep.subr.mxu0 0.0
    %2525 = vmatpush1.msra.mxu0 0.0
    %2526 = vmatprep.subr.mxu0 0.0
    %2527 = vmatpush1.msra.mxu0 0.0
    %2528 = vmatprep.subr.mxu0 0.0
    %2529 = vmatpush1.msra.mxu0 0.0
    %2530 = vmatprep.subr.mxu0 0.0
    %2531 = vmatpush1.msra.mxu0 0.0
    %2532 = vmatprep.subr.mxu0 0.0
    %2533 = vmatpush1.msra.mxu0 0.0
    %2534 = vmatprep.subr.mxu0 0.0
    %2535 = vmatpush1.msra.mxu0 0.0
    %2536 = vmatprep.subr.mxu0 0.0
    %2537 = vmatpush1.msra.mxu0 0.0
    %2538 = vmatprep.subr.mxu0 0.0
    %2539 = vmatpush1.msra.mxu0 0.0
    %2540 = vmatprep.subr.mxu0 0.0
    %2541 = vmatpush1.msra.mxu0 0.0
    %2542 = vmatprep.subr.mxu0 0.0
    %2543 = vmatpush1.msra.mxu0 0.0
    %2544 = vmatprep.subr.mxu0 0.0
    %2545 = vmatpush1.msra.mxu0 0.0
    %2546 = vmatprep.subr.mxu0 0.0
    %2547 = vmatpush1.msra.mxu0 0.0
    %2548 = vmatprep.subr.mxu0 0.0
    %2549 = vmatpush1.msra.mxu0 0.0
    %2550 = vmatprep.subr.mxu0 0.0
    %2551 = vmatpush1.msra.mxu0 0.0
    %2552 = vmatprep.subr.mxu0 0.0
    %2553 = vmatpush1.msra.mxu0 0.0
    %2554 = vmatprep.subr.mxu0 0.0
    %2555 = vmatpush1.msra.mxu0 0.0
    %2556 = vmatprep.subr.mxu0 0.0
    %2557 = vmatpush1.msra.mxu0 0.0
    %2558 = vmatprep.subr.mxu0 0.0
    %2559 = vmatpush1.msra.mxu0 0.0
    %2560 = vmatprep.subr.mxu0 0.0
    %2561 = vmatpush1.msra.mxu0 0.0
    %2562 = vmatprep.subr.mxu0 0.0
    %2563 = vmatpush1.msra.mxu0 0.0
    %2564 = vmatprep.mubr.f32.mxu0 0.0
    %2565 = vmatmul.mubr.f32.gmra.mrb[0].mxu0 %v2075
    %v2566 = vpop.f32.mrb[0].mxu0
    %v2567 = vadd.f32 %v2497, %v2566
    %v2568 = vpop.f32.mrb[0].mxu0
    %2569 = vdwg.mxu0
    %v2570 = vadd.f32 %v2567, %v1403
    %v2571 = vxor.u32 %v2147, 2147483648
    %v2572 = vmul.f32 %v2571, 1.442695
    %v2573 = vpow.pop %v2572
    %v2574 = vadd.f32 %v2573, 1.0
    %v2575 = vrcp.pop %v2574
    %v2576 = vmul.f32 1.0, %v2575
    %v2577 = vxor.u32 %v2288, 2147483648
    %v2578 = vmul.f32 %v2577, 1.442695
    %v2579 = vpow.pop %v2578
    %v2580 = vadd.f32 %v2579, 1.0
    %v2581 = vrcp.pop %v2580
    %v2582 = vmul.f32 1.0, %v2581
    %v2583 = vtanh.pop %v2429
    %v2584 = vxor.u32 %v2570, 2147483648
    %v2585 = vmul.f32 %v2584, 1.442695
    %v2586 = vpow.pop %v2585
    %v2587 = vadd.f32 %v2586, 1.0
    %v2588 = vrcp.pop %v2587
    %v2589 = vmul.f32 1.0, %v2588
    %v2590 = vmul.f32 %v2582, %v1998
    %v2591 = vmul.f32 %v2576, %v2583
    %v2592 = vadd.f32 %v2590, %v2591
    %v2593 = vtanh.pop %v2592
    %v2594 = vmul.f32 %v2589, %v2593
    %v2596 = vsel %vm1406, %v2594, 0
    %2598 = vmatprep.subr.mxu0 0.0
    %2599 = vmatpush1.msra.mxu0 %v1378
    %2600 = vmatprep.subr.mxu0 0.0
    %2601 = vmatpush1.msra.mxu0 %v1379
    %2602 = vmatprep.subr.mxu0 0.0
    %2603 = vmatpush1.msra.mxu0 %v1380
    %2604 = vmatprep.subr.mxu0 0.0
    %2605 = vmatpush1.msra.mxu0 %v1381
    %2606 = vmatprep.subr.mxu0 0.0
    %2607 = vmatpush1.msra.mxu0 0.0
    %2608 = vmatprep.subr.mxu0 0.0
    %2609 = vmatpush1.msra.mxu0 0.0
    %2610 = vmatprep.subr.mxu0 0.0
    %2611 = vmatpush1.msra.mxu0 0.0
    %2612 = vmatprep.subr.mxu0 0.0
    %2613 = vmatpush1.msra.mxu0 0.0
    %2614 = vmatprep.subr.mxu0 0.0
    %2615 = vmatpush1.msra.mxu0 0.0
    %2616 = vmatprep.subr.mxu0 0.0
    %2617 = vmatpush1.msra.mxu0 0.0
    %2618 = vmatprep.subr.mxu0 0.0
    %2619 = vmatpush1.msra.mxu0 0.0
    %2620 = vmatprep.subr.mxu0 0.0
    %2621 = vmatpush1.msra.mxu0 0.0
    %2622 = vmatprep.subr.mxu0 0.0
    %2623 = vmatpush1.msra.mxu0 0.0
    %2624 = vmatprep.subr.mxu0 0.0
    %2625 = vmatpush1.msra.mxu0 0.0
    %2626 = vmatprep.subr.mxu0 0.0
    %2627 = vmatpush1.msra.mxu0 0.0
    %2628 = vmatprep.subr.mxu0 0.0
    %2629 = vmatpush1.msra.mxu0 0.0
    %2630 = vmatprep.subr.mxu0 0.0
    %2631 = vmatpush1.msra.mxu0 0.0
    %2632 = vmatprep.subr.mxu0 0.0
    %2633 = vmatpush1.msra.mxu0 0.0
    %2634 = vmatprep.subr.mxu0 0.0
    %2635 = vmatpush1.msra.mxu0 0.0
    %2636 = vmatprep.subr.mxu0 0.0
    %2637 = vmatpush1.msra.mxu0 0.0
    %2638 = vmatprep.subr.mxu0 0.0
    %2639 = vmatpush1.msra.mxu0 0.0
    %2640 = vmatprep.subr.mxu0 0.0
    %2641 = vmatpush1.msra.mxu0 0.0
    %2642 = vmatprep.subr.mxu0 0.0
    %2643 = vmatpush1.msra.mxu0 0.0
    %2644 = vmatprep.subr.mxu0 0.0
    %2645 = vmatpush1.msra.mxu0 0.0
    %2646 = vmatprep.subr.mxu0 0.0
    %2647 = vmatpush1.msra.mxu0 0.0
    %2648 = vmatprep.subr.mxu0 0.0
    %2649 = vmatpush1.msra.mxu0 0.0
    %2650 = vmatprep.subr.mxu0 0.0
    %2651 = vmatpush1.msra.mxu0 0.0
    %2652 = vmatprep.subr.mxu0 0.0
    %2653 = vmatpush1.msra.mxu0 0.0
    %2654 = vmatprep.subr.mxu0 0.0
    %2655 = vmatpush1.msra.mxu0 0.0
    %2656 = vmatprep.subr.mxu0 0.0
    %2657 = vmatpush1.msra.mxu0 0.0
    %2658 = vmatprep.subr.mxu0 0.0
    %2659 = vmatpush1.msra.mxu0 0.0
    %2660 = vmatprep.subr.mxu0 0.0
    %2661 = vmatpush1.msra.mxu0 0.0
    %2662 = vmatprep.mubr.f32.mxu0 0.0
    %2663 = vmatmul.mubr.f32.gmra.mrb[0].mxu0 %v2596
    %v2664 = vpop.f32.mrb[0].mxu0
    %v2665 = vadd.f32 0.0, %v2664
    %v2666 = vpop.f32.mrb[0].mxu0
    %2667 = vdwg.mxu0
    %v2668 = vrot.slane %v1356, 2
    %v2669 = vsel %vm1406, %v2668, 0
    %2671 = vmatprep.subr.mxu0 0.0
    %2672 = vmatpush1.msra.mxu0 %v1359
    %2673 = vmatprep.subr.mxu0 0.0
    %2674 = vmatpush1.msra.mxu0 %v1360
    %2675 = vmatprep.subr.mxu0 0.0
    %2676 = vmatpush1.msra.mxu0 %v1361
    %2677 = vmatprep.subr.mxu0 0.0
    %2678 = vmatpush1.msra.mxu0 %v1362
    %2679 = vmatprep.subr.mxu0 0.0
    %2680 = vmatpush1.msra.mxu0 0.0
    %2681 = vmatprep.subr.mxu0 0.0
    %2682 = vmatpush1.msra.mxu0 0.0
    %2683 = vmatprep.subr.mxu0 0.0
    %2684 = vmatpush1.msra.mxu0 0.0
    %2685 = vmatprep.subr.mxu0 0.0
    %2686 = vmatpush1.msra.mxu0 0.0
    %2687 = vmatprep.subr.mxu0 0.0
    %2688 = vmatpush1.msra.mxu0 0.0
    %2689 = vmatprep.subr.mxu0 0.0
    %2690 = vmatpush1.msra.mxu0 0.0
    %2691 = vmatprep.subr.mxu0 0.0
    %2692 = vmatpush1.msra.mxu0 0.0
    %2693 = vmatprep.subr.mxu0 0.0
    %2694 = vmatpush1.msra.mxu0 0.0
    %2695 = vmatprep.subr.mxu0 0.0
    %2696 = vmatpush1.msra.mxu0 0.0
    %2697 = vmatprep.subr.mxu0 0.0
    %2698 = vmatpush1.msra.mxu0 0.0
    %2699 = vmatprep.subr.mxu0 0.0
    %2700 = vmatpush1.msra.mxu0 0.0
    %2701 = vmatprep.subr.mxu0 0.0
    %2702 = vmatpush1.msra.mxu0 0.0
    %2703 = vmatprep.subr.mxu0 0.0
    %2704 = vmatpush1.msra.mxu0 0.0
    %2705 = vmatprep.subr.mxu0 0.0
    %2706 = vmatpush1.msra.mxu0 0.0
    %2707 = vmatprep.subr.mxu0 0.0
    %2708 = vmatpush1.msra.mxu0 0.0
    %2709 = vmatprep.subr.mxu0 0.0
    %2710 = vmatpush1.msra.mxu0 0.0
    %2711 = vmatprep.subr.mxu0 0.0
    %2712 = vmatpush1.msra.mxu0 0.0
    %2713 = vmatprep.subr.mxu0 0.0
    %2714 = vmatpush1.msra.mxu0 0.0
    %2715 = vmatprep.subr.mxu0 0.0
    %2716 = vmatpush1.msra.mxu0 0.0
    %2717 = vmatprep.subr.mxu0 0.0
    %2718 = vmatpush1.msra.mxu0 0.0
    %2719 = vmatprep.subr.mxu0 0.0
    %2720 = vmatpush1.msra.mxu0 0.0
    %2721 = vmatprep.subr.mxu0 0.0
    %2722 = vmatpush1.msra.mxu0 0.0
    %2723 = vmatprep.subr.mxu0 0.0
    %2724 = vmatpush1.msra.mxu0 0.0
    %2725 = vmatprep.subr.mxu0 0.0
    %2726 = vmatpush1.msra.mxu0 0.0
    %2727 = vmatprep.subr.mxu0 0.0
    %2728 = vmatpush1.msra.mxu0 0.0
    %2729 = vmatprep.subr.mxu0 0.0
    %2730 = vmatpush1.msra.mxu0 0.0
    %2731 = vmatprep.subr.mxu0 0.0
    %2732 = vmatpush1.msra.mxu0 0.0
    %2733 = vmatprep.subr.mxu0 0.0
    %2734 = vmatpush1.msra.mxu0 0.0
    %2735 = vmatprep.mubr.f32.mxu0 0.0
    %2736 = vmatmul.mubr.f32.gmra.mrb[0].mxu0 %v2669
    %v2737 = vpop.f32.mrb[0].mxu0
    %v2738 = vadd.f32 %v2665, %v2737
    %v2739 = vpop.f32.mrb[0].mxu0
    %2740 = vdwg.mxu0
    %v2741 = vadd.f32 %v2738, %v1397
    %2742 = vmatprep.subr.mxu0 0.0
    %2743 = vmatpush1.msra.mxu0 %v1383
    %2744 = vmatprep.subr.mxu0 0.0
    %2745 = vmatpush1.msra.mxu0 %v1384
    %2746 = vmatprep.subr.mxu0 0.0
    %2747 = vmatpush1.msra.mxu0 %v1385
    %2748 = vmatprep.subr.mxu0 0.0
    %2749 = vmatpush1.msra.mxu0 %v1386
    %2750 = vmatprep.subr.mxu0 0.0
    %2751 = vmatpush1.msra.mxu0 0.0
    %2752 = vmatprep.subr.mxu0 0.0
    %2753 = vmatpush1.msra.mxu0 0.0
    %2754 = vmatprep.subr.mxu0 0.0
    %2755 = vmatpush1.msra.mxu0 0.0
    %2756 = vmatprep.subr.mxu0 0.0
    %2757 = vmatpush1.msra.mxu0 0.0
    %2758 = vmatprep.subr.mxu0 0.0
    %2759 = vmatpush1.msra.mxu0 0.0
    %2760 = vmatprep.subr.mxu0 0.0
    %2761 = vmatpush1.msra.mxu0 0.0
    %2762 = vmatprep.subr.mxu0 0.0
    %2763 = vmatpush1.msra.mxu0 0.0
    %2764 = vmatprep.subr.mxu0 0.0
    %2765 = vmatpush1.msra.mxu0 0.0
    %2766 = vmatprep.subr.mxu0 0.0
    %2767 = vmatpush1.msra.mxu0 0.0
    %2768 = vmatprep.subr.mxu0 0.0
    %2769 = vmatpush1.msra.mxu0 0.0
    %2770 = vmatprep.subr.mxu0 0.0
    %2771 = vmatpush1.msra.mxu0 0.0
    %2772 = vmatprep.subr.mxu0 0.0
    %2773 = vmatpush1.msra.mxu0 0.0
    %2774 = vmatprep.subr.mxu0 0.0
    %2775 = vmatpush1.msra.mxu0 0.0
    %2776 = vmatprep.subr.mxu0 0.0
    %2777 = vmatpush1.msra.mxu0 0.0
    %2778 = vmatprep.subr.mxu0 0.0
    %2779 = vmatpush1.msra.mxu0 0.0
    %2780 = vmatprep.subr.mxu0 0.0
    %2781 = vmatpush1.msra.mxu0 0.0
    %2782 = vmatprep.subr.mxu0 0.0
    %2783 = vmatpush1.msra.mxu0 0.0
    %2784 = vmatprep.subr.mxu0 0.0
    %2785 = vmatpush1.msra.mxu0 0.0
    %2786 = vmatprep.subr.mxu0 0.0
    %2787 = vmatpush1.msra.mxu0 0.0
    %2788 = vmatprep.subr.mxu0 0.0
    %2789 = vmatpush1.msra.mxu0 0.0
    %2790 = vmatprep.subr.mxu0 0.0
    %2791 = vmatpush1.msra.mxu0 0.0
    %2792 = vmatprep.subr.mxu0 0.0
    %2793 = vmatpush1.msra.mxu0 0.0
    %2794 = vmatprep.subr.mxu0 0.0
    %2795 = vmatpush1.msra.mxu0 0.0
    %2796 = vmatprep.subr.mxu0 0.0
    %2797 = vmatpush1.msra.mxu0 0.0
    %2798 = vmatprep.subr.mxu0 0.0
    %2799 = vmatpush1.msra.mxu0 0.0
    %2800 = vmatprep.subr.mxu0 0.0
    %2801 = vmatpush1.msra.mxu0 0.0
    %2802 = vmatprep.subr.mxu0 0.0
    %2803 = vmatpush1.msra.mxu0 0.0
    %2804 = vmatprep.subr.mxu0 0.0
    %2805 = vmatpush1.msra.mxu0 0.0
    %2806 = vmatprep.mubr.f32.mxu0 0.0
    %2807 = vmatmul.mubr.f32.gmra.mrb[0].mxu0 %v2596
    %v2808 = vpop.f32.mrb[0].mxu0
    %v2809 = vadd.f32 0.0, %v2808
    %v2810 = vpop.f32.mrb[0].mxu0
    %2811 = vdwg.mxu0
    %2812 = vmatprep.subr.mxu0 0.0
    %2813 = vmatpush1.msra.mxu0 %v1364
    %2814 = vmatprep.subr.mxu0 0.0
    %2815 = vmatpush1.msra.mxu0 %v1365
    %2816 = vmatprep.subr.mxu0 0.0
    %2817 = vmatpush1.msra.mxu0 %v1366
    %2818 = vmatprep.subr.mxu0 0.0
    %2819 = vmatpush1.msra.mxu0 %v1367
    %2820 = vmatprep.subr.mxu0 0.0
    %2821 = vmatpush1.msra.mxu0 0.0
    %2822 = vmatprep.subr.mxu0 0.0
    %2823 = vmatpush1.msra.mxu0 0.0
    %2824 = vmatprep.subr.mxu0 0.0
    %2825 = vmatpush1.msra.mxu0 0.0
    %2826 = vmatprep.subr.mxu0 0.0
    %2827 = vmatpush1.msra.mxu0 0.0
    %2828 = vmatprep.subr.mxu0 0.0
    %2829 = vmatpush1.msra.mxu0 0.0
    %2830 = vmatprep.subr.mxu0 0.0
    %2831 = vmatpush1.msra.mxu0 0.0
    %2832 = vmatprep.subr.mxu0 0.0
    %2833 = vmatpush1.msra.mxu0 0.0
    %2834 = vmatprep.subr.mxu0 0.0
    %2835 = vmatpush1.msra.mxu0 0.0
    %2836 = vmatprep.subr.mxu0 0.0
    %2837 = vmatpush1.msra.mxu0 0.0
    %2838 = vmatprep.subr.mxu0 0.0
    %2839 = vmatpush1.msra.mxu0 0.0
    %2840 = vmatprep.subr.mxu0 0.0
    %2841 = vmatpush1.msra.mxu0 0.0
    %2842 = vmatprep.subr.mxu0 0.0
    %2843 = vmatpush1.msra.mxu0 0.0
    %2844 = vmatprep.subr.mxu0 0.0
    %2845 = vmatpush1.msra.mxu0 0.0
    %2846 = vmatprep.subr.mxu0 0.0
    %2847 = vmatpush1.msra.mxu0 0.0
    %2848 = vmatprep.subr.mxu0 0.0
    %2849 = vmatpush1.msra.mxu0 0.0
    %2850 = vmatprep.subr.mxu0 0.0
    %2851 = vmatpush1.msra.mxu0 0.0
    %2852 = vmatprep.subr.mxu0 0.0
    %2853 = vmatpush1.msra.mxu0 0.0
    %2854 = vmatprep.subr.mxu0 0.0
    %2855 = vmatpush1.msra.mxu0 0.0
    %2856 = vmatprep.subr.mxu0 0.0
    %2857 = vmatpush1.msra.mxu0 0.0
    %2858 = vmatprep.subr.mxu0 0.0
    %2859 = vmatpush1.msra.mxu0 0.0
    %2860 = vmatprep.subr.mxu0 0.0
    %2861 = vmatpush1.msra.mxu0 0.0
    %2862 = vmatprep.subr.mxu0 0.0
    %2863 = vmatpush1.msra.mxu0 0.0
    %2864 = vmatprep.subr.mxu0 0.0
    %2865 = vmatpush1.msra.mxu0 0.0
    %2866 = vmatprep.subr.mxu0 0.0
    %2867 = vmatpush1.msra.mxu0 0.0
    %2868 = vmatprep.subr.mxu0 0.0
    %2869 = vmatpush1.msra.mxu0 0.0
    %2870 = vmatprep.subr.mxu0 0.0
    %2871 = vmatpush1.msra.mxu0 0.0
    %2872 = vmatprep.subr.mxu0 0.0
    %2873 = vmatpush1.msra.mxu0 0.0
    %2874 = vmatprep.subr.mxu0 0.0
    %2875 = vmatpush1.msra.mxu0 0.0
    %2876 = vmatprep.mubr.f32.mxu0 0.0
    %2877 = vmatmul.mubr.f32.gmra.mrb[0].mxu0 %v2669
    %v2878 = vpop.f32.mrb[0].mxu0
    %v2879 = vadd.f32 %v2809, %v2878
    %v2880 = vpop.f32.mrb[0].mxu0
    %2881 = vdwg.mxu0
    %v2882 = vadd.f32 %v2879, %v1399
    %2883 = vmatprep.subr.mxu0 0.0
    %2884 = vmatpush1.msra.mxu0 %v1388
    %2885 = vmatprep.subr.mxu0 0.0
    %2886 = vmatpush1.msra.mxu0 %v1389
    %2887 = vmatprep.subr.mxu0 0.0
    %2888 = vmatpush1.msra.mxu0 %v1390
    %2889 = vmatprep.subr.mxu0 0.0
    %2890 = vmatpush1.msra.mxu0 %v1391
    %2891 = vmatprep.subr.mxu0 0.0
    %2892 = vmatpush1.msra.mxu0 0.0
    %2893 = vmatprep.subr.mxu0 0.0
    %2894 = vmatpush1.msra.mxu0 0.0
    %2895 = vmatprep.subr.mxu0 0.0
    %2896 = vmatpush1.msra.mxu0 0.0
    %2897 = vmatprep.subr.mxu0 0.0
    %2898 = vmatpush1.msra.mxu0 0.0
    %2899 = vmatprep.subr.mxu0 0.0
    %2900 = vmatpush1.msra.mxu0 0.0
    %2901 = vmatprep.subr.mxu0 0.0
    %2902 = vmatpush1.msra.mxu0 0.0
    %2903 = vmatprep.subr.mxu0 0.0
    %2904 = vmatpush1.msra.mxu0 0.0
    %2905 = vmatprep.subr.mxu0 0.0
    %2906 = vmatpush1.msra.mxu0 0.0
    %2907 = vmatprep.subr.mxu0 0.0
    %2908 = vmatpush1.msra.mxu0 0.0
    %2909 = vmatprep.subr.mxu0 0.0
    %2910 = vmatpush1.msra.mxu0 0.0
    %2911 = vmatprep.subr.mxu0 0.0
    %2912 = vmatpush1.msra.mxu0 0.0
    %2913 = vmatprep.subr.mxu0 0.0
    %2914 = vmatpush1.msra.mxu0 0.0
    %2915 = vmatprep.subr.mxu0 0.0
    %2916 = vmatpush1.msra.mxu0 0.0
    %2917 = vmatprep.subr.mxu0 0.0
    %2918 = vmatpush1.msra.mxu0 0.0
    %2919 = vmatprep.subr.mxu0 0.0
    %2920 = vmatpush1.msra.mxu0 0.0
    %2921 = vmatprep.subr.mxu0 0.0
    %2922 = vmatpush1.msra.mxu0 0.0
    %2923 = vmatprep.subr.mxu0 0.0
    %2924 = vmatpush1.msra.mxu0 0.0
    %2925 = vmatprep.subr.mxu0 0.0
    %2926 = vmatpush1.msra.mxu0 0.0
    %2927 = vmatprep.subr.mxu0 0.0
    %2928 = vmatpush1.msra.mxu0 0.0
    %2929 = vmatprep.subr.mxu0 0.0
    %2930 = vmatpush1.msra.mxu0 0.0
    %2931 = vmatprep.subr.mxu0 0.0
    %2932 = vmatpush1.msra.mxu0 0.0
    %2933 = vmatprep.subr.mxu0 0.0
    %2934 = vmatpush1.msra.mxu0 0.0
    %2935 = vmatprep.subr.mxu0 0.0
    %2936 = vmatpush1.msra.mxu0 0.0
    %2937 = vmatprep.subr.mxu0 0.0
    %2938 = vmatpush1.msra.mxu0 0.0
    %2939 = vmatprep.subr.mxu0 0.0
    %2940 = vmatpush1.msra.mxu0 0.0
    %2941 = vmatprep.subr.mxu0 0.0
    %2942 = vmatpush1.msra.mxu0 0.0
    %2943 = vmatprep.subr.mxu0 0.0
    %2944 = vmatpush1.msra.mxu0 0.0
    %2945 = vmatprep.subr.mxu0 0.0
    %2946 = vmatpush1.msra.mxu0 0.0
    %2947 = vmatprep.mubr.f32.mxu0 0.0
    %2948 = vmatmul.mubr.f32.gmra.mrb[0].mxu0 %v2596
    %v2949 = vpop.f32.mrb[0].mxu0
    %v2950 = vadd.f32 0.0, %v2949
    %v2951 = vpop.f32.mrb[0].mxu0
    %2952 = vdwg.mxu0
    %2953 = vmatprep.subr.mxu0 0.0
    %2954 = vmatpush1.msra.mxu0 %v1369
    %2955 = vmatprep.subr.mxu0 0.0
    %2956 = vmatpush1.msra.mxu0 %v1370
    %2957 = vmatprep.subr.mxu0 0.0
    %2958 = vmatpush1.msra.mxu0 %v1371
    %2959 = vmatprep.subr.mxu0 0.0
    %2960 = vmatpush1.msra.mxu0 %v1372
    %2961 = vmatprep.subr.mxu0 0.0
    %2962 = vmatpush1.msra.mxu0 0.0
    %2963 = vmatprep.subr.mxu0 0.0
    %2964 = vmatpush1.msra.mxu0 0.0
    %2965 = vmatprep.subr.mxu0 0.0
    %2966 = vmatpush1.msra.mxu0 0.0
    %2967 = vmatprep.subr.mxu0 0.0
    %2968 = vmatpush1.msra.mxu0 0.0
    %2969 = vmatprep.subr.mxu0 0.0
    %2970 = vmatpush1.msra.mxu0 0.0
    %2971 = vmatprep.subr.mxu0 0.0
    %2972 = vmatpush1.msra.mxu0 0.0
    %2973 = vmatprep.subr.mxu0 0.0
    %2974 = vmatpush1.msra.mxu0 0.0
    %2975 = vmatprep.subr.mxu0 0.0
    %2976 = vmatpush1.msra.mxu0 0.0
    %2977 = vmatprep.subr.mxu0 0.0
    %2978 = vmatpush1.msra.mxu0 0.0
    %2979 = vmatprep.subr.mxu0 0.0
    %2980 = vmatpush1.msra.mxu0 0.0
    %2981 = vmatprep.subr.mxu0 0.0
    %2982 = vmatpush1.msra.mxu0 0.0
    %2983 = vmatprep.subr.mxu0 0.0
    %2984 = vmatpush1.msra.mxu0 0.0
    %2985 = vmatprep.subr.mxu0 0.0
    %2986 = vmatpush1.msra.mxu0 0.0
    %2987 = vmatprep.subr.mxu0 0.0
    %2988 = vmatpush1.msra.mxu0 0.0
    %2989 = vmatprep.subr.mxu0 0.0
    %2990 = vmatpush1.msra.mxu0 0.0
    %2991 = vmatprep.subr.mxu0 0.0
    %2992 = vmatpush1.msra.mxu0 0.0
    %2993 = vmatprep.subr.mxu0 0.0
    %2994 = vmatpush1.msra.mxu0 0.0
    %2995 = vmatprep.subr.mxu0 0.0
    %2996 = vmatpush1.msra.mxu0 0.0
    %2997 = vmatprep.subr.mxu0 0.0
    %2998 = vmatpush1.msra.mxu0 0.0
    %2999 = vmatprep.subr.mxu0 0.0
    %3000 = vmatpush1.msra.mxu0 0.0
    %3001 = vmatprep.subr.mxu0 0.0
    %3002 = vmatpush1.msra.mxu0 0.0
    %3003 = vmatprep.subr.mxu0 0.0
    %3004 = vmatpush1.msra.mxu0 0.0
    %3005 = vmatprep.subr.mxu0 0.0
    %3006 = vmatpush1.msra.mxu0 0.0
    %3007 = vmatprep.subr.mxu0 0.0
    %3008 = vmatpush1.msra.mxu0 0.0
    %3009 = vmatprep.subr.mxu0 0.0
    %3010 = vmatpush1.msra.mxu0 0.0
    %3011 = vmatprep.subr.mxu0 0.0
    %3012 = vmatpush1.msra.mxu0 0.0
    %3013 = vmatprep.subr.mxu0 0.0
    %3014 = vmatpush1.msra.mxu0 0.0
    %3015 = vmatprep.subr.mxu0 0.0
    %3016 = vmatpush1.msra.mxu0 0.0
    %3017 = vmatprep.mubr.f32.mxu0 0.0
    %3018 = vmatmul.mubr.f32.gmra.mrb[0].mxu0 %v2669
    %v3019 = vpop.f32.mrb[0].mxu0
    %v3020 = vadd.f32 %v2950, %v3019
    %v3021 = vpop.f32.mrb[0].mxu0
    %3022 = vdwg.mxu0
    %v3023 = vadd.f32 %v3020, %v1401
    %3024 = vmatprep.subr.mxu0 0.0
    %3025 = vmatpush1.msra.mxu0 %v1393
    %3026 = vmatprep.subr.mxu0 0.0
    %3027 = vmatpush1.msra.mxu0 %v1394
    %3028 = vmatprep.subr.mxu0 0.0
    %3029 = vmatpush1.msra.mxu0 %v1395
    %3030 = vmatprep.subr.mxu0 0.0
    %3031 = vmatpush1.msra.mxu0 %v1396
    %3032 = vmatprep.subr.mxu0 0.0
    %3033 = vmatpush1.msra.mxu0 0.0
    %3034 = vmatprep.subr.mxu0 0.0
    %3035 = vmatpush1.msra.mxu0 0.0
    %3036 = vmatprep.subr.mxu0 0.0
    %3037 = vmatpush1.msra.mxu0 0.0
    %3038 = vmatprep.subr.mxu0 0.0
    %3039 = vmatpush1.msra.mxu0 0.0
    %3040 = vmatprep.subr.mxu0 0.0
    %3041 = vmatpush1.msra.mxu0 0.0
    %3042 = vmatprep.subr.mxu0 0.0
    %3043 = vmatpush1.msra.mxu0 0.0
    %3044 = vmatprep.subr.mxu0 0.0
    %3045 = vmatpush1.msra.mxu0 0.0
    %3046 = vmatprep.subr.mxu0 0.0
    %3047 = vmatpush1.msra.mxu0 0.0
    %3048 = vmatprep.subr.mxu0 0.0
    %3049 = vmatpush1.msra.mxu0 0.0
    %3050 = vmatprep.subr.mxu0 0.0
    %3051 = vmatpush1.msra.mxu0 0.0
    %3052 = vmatprep.subr.mxu0 0.0
    %3053 = vmatpush1.msra.mxu0 0.0
    %3054 = vmatprep.subr.mxu0 0.0
    %3055 = vmatpush1.msra.mxu0 0.0
    %3056 = vmatprep.subr.mxu0 0.0
    %3057 = vmatpush1.msra.mxu0 0.0
    %3058 = vmatprep.subr.mxu0 0.0
    %3059 = vmatpush1.msra.mxu0 0.0
    %3060 = vmatprep.subr.mxu0 0.0
    %3061 = vmatpush1.msra.mxu0 0.0
    %3062 = vmatprep.subr.mxu0 0.0
    %3063 = vmatpush1.msra.mxu0 0.0
    %3064 = vmatprep.subr.mxu0 0.0
    %3065 = vmatpush1.msra.mxu0 0.0
    %3066 = vmatprep.subr.mxu0 0.0
    %3067 = vmatpush1.msra.mxu0 0.0
    %3068 = vmatprep.subr.mxu0 0.0
    %3069 = vmatpush1.msra.mxu0 0.0
    %3070 = vmatprep.subr.mxu0 0.0
    %3071 = vmatpush1.msra.mxu0 0.0
    %3072 = vmatprep.subr.mxu0 0.0
    %3073 = vmatpush1.msra.mxu0 0.0
    %3074 = vmatprep.subr.mxu0 0.0
    %3075 = vmatpush1.msra.mxu0 0.0
    %3076 = vmatprep.subr.mxu0 0.0
    %3077 = vmatpush1.msra.mxu0 0.0
    %3078 = vmatprep.subr.mxu0 0.0
    %3079 = vmatpush1.msra.mxu0 0.0
    %3080 = vmatprep.subr.mxu0 0.0
    %3081 = vmatpush1.msra.mxu0 0.0
    %3082 = vmatprep.subr.mxu0 0.0
    %3083 = vmatpush1.msra.mxu0 0.0
    %3084 = vmatprep.subr.mxu0 0.0
    %3085 = vmatpush1.msra.mxu0 0.0
    %3086 = vmatprep.subr.mxu0 0.0
    %3087 = vmatpush1.msra.mxu0 0.0
    %3088 = vmatprep.mubr.f32.mxu0 0.0
    %3089 = vmatmul.mubr.f32.gmra.mrb[0].mxu0 %v2596
    %v3090 = vpop.f32.mrb[0].mxu0
    %v3091 = vadd.f32 0.0, %v3090
    %v3092 = vpop.f32.mrb[0].mxu0
    %3093 = vdwg.mxu0
    %3094 = vmatprep.subr.mxu0 0.0
    %3095 = vmatpush1.msra.mxu0 %v1374
    %3096 = vmatprep.subr.mxu0 0.0
    %3097 = vmatpush1.msra.mxu0 %v1375
    %3098 = vmatprep.subr.mxu0 0.0
    %3099 = vmatpush1.msra.mxu0 %v1376
    %3100 = vmatprep.subr.mxu0 0.0
    %3101 = vmatpush1.msra.mxu0 %v1377
    %3102 = vmatprep.subr.mxu0 0.0
    %3103 = vmatpush1.msra.mxu0 0.0
    %3104 = vmatprep.subr.mxu0 0.0
    %3105 = vmatpush1.msra.mxu0 0.0
    %3106 = vmatprep.subr.mxu0 0.0
    %3107 = vmatpush1.msra.mxu0 0.0
    %3108 = vmatprep.subr.mxu0 0.0
    %3109 = vmatpush1.msra.mxu0 0.0
    %3110 = vmatprep.subr.mxu0 0.0
    %3111 = vmatpush1.msra.mxu0 0.0
    %3112 = vmatprep.subr.mxu0 0.0
    %3113 = vmatpush1.msra.mxu0 0.0
    %3114 = vmatprep.subr.mxu0 0.0
    %3115 = vmatpush1.msra.mxu0 0.0
    %3116 = vmatprep.subr.mxu0 0.0
    %3117 = vmatpush1.msra.mxu0 0.0
    %3118 = vmatprep.subr.mxu0 0.0
    %3119 = vmatpush1.msra.mxu0 0.0
    %3120 = vmatprep.subr.mxu0 0.0
    %3121 = vmatpush1.msra.mxu0 0.0
    %3122 = vmatprep.subr.mxu0 0.0
    %3123 = vmatpush1.msra.mxu0 0.0
    %3124 = vmatprep.subr.mxu0 0.0
    %3125 = vmatpush1.msra.mxu0 0.0
    %3126 = vmatprep.subr.mxu0 0.0
    %3127 = vmatpush1.msra.mxu0 0.0
    %3128 = vmatprep.subr.mxu0 0.0
    %3129 = vmatpush1.msra.mxu0 0.0
    %3130 = vmatprep.subr.mxu0 0.0
    %3131 = vmatpush1.msra.mxu0 0.0
    %3132 = vmatprep.subr.mxu0 0.0
    %3133 = vmatpush1.msra.mxu0 0.0
    %3134 = vmatprep.subr.mxu0 0.0
    %3135 = vmatpush1.msra.mxu0 0.0
    %3136 = vmatprep.subr.mxu0 0.0
    %3137 = vmatpush1.msra.mxu0 0.0
    %3138 = vmatprep.subr.mxu0 0.0
    %3139 = vmatpush1.msra.mxu0 0.0
    %3140 = vmatprep.subr.mxu0 0.0
    %3141 = vmatpush1.msra.mxu0 0.0
    %3142 = vmatprep.subr.mxu0 0.0
    %3143 = vmatpush1.msra.mxu0 0.0
    %3144 = vmatprep.subr.mxu0 0.0
    %3145 = vmatpush1.msra.mxu0 0.0
    %3146 = vmatprep.subr.mxu0 0.0
    %3147 = vmatpush1.msra.mxu0 0.0
    %3148 = vmatprep.subr.mxu0 0.0
    %3149 = vmatpush1.msra.mxu0 0.0
    %3150 = vmatprep.subr.mxu0 0.0
    %3151 = vmatpush1.msra.mxu0 0.0
    %3152 = vmatprep.subr.mxu0 0.0
    %3153 = vmatpush1.msra.mxu0 0.0
    %3154 = vmatprep.subr.mxu0 0.0
    %3155 = vmatpush1.msra.mxu0 0.0
    %3156 = vmatprep.subr.mxu0 0.0
    %3157 = vmatpush1.msra.mxu0 0.0
    %3158 = vmatprep.mubr.f32.mxu0 0.0
    %3159 = vmatmul.mubr.f32.gmra.mrb[0].mxu0 %v2669
    %v3160 = vpop.f32.mrb[0].mxu0
    %v3161 = vadd.f32 %v3091, %v3160
    %v3162 = vpop.f32.mrb[0].mxu0
    %3163 = vdwg.mxu0
    %v3164 = vadd.f32 %v3161, %v1403
    %v3165 = vxor.u32 %v2741, 2147483648
    %v3166 = vmul.f32 %v3165, 1.442695
    %v3167 = vpow.pop %v3166
    %v3168 = vadd.f32 %v3167, 1.0
    %v3169 = vrcp.pop %v3168
    %v3170 = vmul.f32 1.0, %v3169
    %v3171 = vxor.u32 %v2882, 2147483648
    %v3172 = vmul.f32 %v3171, 1.442695
    %v3173 = vpow.pop %v3172
    %v3174 = vadd.f32 %v3173, 1.0
    %v3175 = vrcp.pop %v3174
    %v3176 = vmul.f32 1.0, %v3175
    %v3177 = vtanh.pop %v3023
    %v3178 = vxor.u32 %v3164, 2147483648
    %v3179 = vmul.f32 %v3178, 1.442695
    %v3180 = vpow.pop %v3179
    %v3181 = vadd.f32 %v3180, 1.0
    %v3182 = vrcp.pop %v3181
    %v3183 = vmul.f32 1.0, %v3182
    %v3184 = vmul.f32 %v3176, %v2592
    %v3185 = vmul.f32 %v3170, %v3177
    %v3186 = vadd.f32 %v3184, %v3185
    %v3187 = vtanh.pop %v3186
    %v3188 = vmul.f32 %v3183, %v3187
    %v3190 = vsel %vm1406, %v3188, 0
    %3192 = vmatprep.subr.mxu0 0.0
    %3193 = vmatpush1.msra.mxu0 %v1378
    %3194 = vmatprep.subr.mxu0 0.0
    %3195 = vmatpush1.msra.mxu0 %v1379
    %3196 = vmatprep.subr.mxu0 0.0
    %3197 = vmatpush1.msra.mxu0 %v1380
    %3198 = vmatprep.subr.mxu0 0.0
    %3199 = vmatpush1.msra.mxu0 %v1381
    %3200 = vmatprep.subr.mxu0 0.0
    %3201 = vmatpush1.msra.mxu0 0.0
    %3202 = vmatprep.subr.mxu0 0.0
    %3203 = vmatpush1.msra.mxu0 0.0
    %3204 = vmatprep.subr.mxu0 0.0
    %3205 = vmatpush1.msra.mxu0 0.0
    %3206 = vmatprep.subr.mxu0 0.0
    %3207 = vmatpush1.msra.mxu0 0.0
    %3208 = vmatprep.subr.mxu0 0.0
    %3209 = vmatpush1.msra.mxu0 0.0
    %3210 = vmatprep.subr.mxu0 0.0
    %3211 = vmatpush1.msra.mxu0 0.0
    %3212 = vmatprep.subr.mxu0 0.0
    %3213 = vmatpush1.msra.mxu0 0.0
    %3214 = vmatprep.subr.mxu0 0.0
    %3215 = vmatpush1.msra.mxu0 0.0
    %3216 = vmatprep.subr.mxu0 0.0
    %3217 = vmatpush1.msra.mxu0 0.0
    %3218 = vmatprep.subr.mxu0 0.0
    %3219 = vmatpush1.msra.mxu0 0.0
    %3220 = vmatprep.subr.mxu0 0.0
    %3221 = vmatpush1.msra.mxu0 0.0
    %3222 = vmatprep.subr.mxu0 0.0
    %3223 = vmatpush1.msra.mxu0 0.0
    %3224 = vmatprep.subr.mxu0 0.0
    %3225 = vmatpush1.msra.mxu0 0.0
    %3226 = vmatprep.subr.mxu0 0.0
    %3227 = vmatpush1.msra.mxu0 0.0
    %3228 = vmatprep.subr.mxu0 0.0
    %3229 = vmatpush1.msra.mxu0 0.0
    %3230 = vmatprep.subr.mxu0 0.0
    %3231 = vmatpush1.msra.mxu0 0.0
    %3232 = vmatprep.subr.mxu0 0.0
    %3233 = vmatpush1.msra.mxu0 0.0
    %3234 = vmatprep.subr.mxu0 0.0
    %3235 = vmatpush1.msra.mxu0 0.0
    %3236 = vmatprep.subr.mxu0 0.0
    %3237 = vmatpush1.msra.mxu0 0.0
    %3238 = vmatprep.subr.mxu0 0.0
    %3239 = vmatpush1.msra.mxu0 0.0
    %3240 = vmatprep.subr.mxu0 0.0
    %3241 = vmatpush1.msra.mxu0 0.0
    %3242 = vmatprep.subr.mxu0 0.0
    %3243 = vmatpush1.msra.mxu0 0.0
    %3244 = vmatprep.subr.mxu0 0.0
    %3245 = vmatpush1.msra.mxu0 0.0
    %3246 = vmatprep.subr.mxu0 0.0
    %3247 = vmatpush1.msra.mxu0 0.0
    %3248 = vmatprep.subr.mxu0 0.0
    %3249 = vmatpush1.msra.mxu0 0.0
    %3250 = vmatprep.subr.mxu0 0.0
    %3251 = vmatpush1.msra.mxu0 0.0
    %3252 = vmatprep.subr.mxu0 0.0
    %3253 = vmatpush1.msra.mxu0 0.0
    %3254 = vmatprep.subr.mxu0 0.0
    %3255 = vmatpush1.msra.mxu0 0.0
    %3256 = vmatprep.mubr.f32.mxu0 0.0
    %3257 = vmatmul.mubr.f32.gmra.mrb[0].mxu0 %v3190
    %v3258 = vpop.f32.mrb[0].mxu0
    %v3259 = vadd.f32 0.0, %v3258
    %v3260 = vpop.f32.mrb[0].mxu0
    %3261 = vdwg.mxu0
    %v3262 = vrot.slane %v1356, 3
    %v3263 = vsel %vm1406, %v3262, 0
    %3265 = vmatprep.subr.mxu0 0.0
    %3266 = vmatpush1.msra.mxu0 %v1359
    %3267 = vmatprep.subr.mxu0 0.0
    %3268 = vmatpush1.msra.mxu0 %v1360
    %3269 = vmatprep.subr.mxu0 0.0
    %3270 = vmatpush1.msra.mxu0 %v1361
    %3271 = vmatprep.subr.mxu0 0.0
    %3272 = vmatpush1.msra.mxu0 %v1362
    %3273 = vmatprep.subr.mxu0 0.0
    %3274 = vmatpush1.msra.mxu0 0.0
    %3275 = vmatprep.subr.mxu0 0.0
    %3276 = vmatpush1.msra.mxu0 0.0
    %3277 = vmatprep.subr.mxu0 0.0
    %3278 = vmatpush1.msra.mxu0 0.0
    %3279 = vmatprep.subr.mxu0 0.0
    %3280 = vmatpush1.msra.mxu0 0.0
    %3281 = vmatprep.subr.mxu0 0.0
    %3282 = vmatpush1.msra.mxu0 0.0
    %3283 = vmatprep.subr.mxu0 0.0
    %3284 = vmatpush1.msra.mxu0 0.0
    %3285 = vmatprep.subr.mxu0 0.0
    %3286 = vmatpush1.msra.mxu0 0.0
    %3287 = vmatprep.subr.mxu0 0.0
    %3288 = vmatpush1.msra.mxu0 0.0
    %3289 = vmatprep.subr.mxu0 0.0
    %3290 = vmatpush1.msra.mxu0 0.0
    %3291 = vmatprep.subr.mxu0 0.0
    %3292 = vmatpush1.msra.mxu0 0.0
    %3293 = vmatprep.subr.mxu0 0.0
    %3294 = vmatpush1.msra.mxu0 0.0
    %3295 = vmatprep.subr.mxu0 0.0
    %3296 = vmatpush1.msra.mxu0 0.0
    %3297 = vmatprep.subr.mxu0 0.0
    %3298 = vmatpush1.msra.mxu0 0.0
    %3299 = vmatprep.subr.mxu0 0.0
    %3300 = vmatpush1.msra.mxu0 0.0
    %3301 = vmatprep.subr.mxu0 0.0
    %3302 = vmatpush1.msra.mxu0 0.0
    %3303 = vmatprep.subr.mxu0 0.0
    %3304 = vmatpush1.msra.mxu0 0.0
    %3305 = vmatprep.subr.mxu0 0.0
    %3306 = vmatpush1.msra.mxu0 0.0
    %3307 = vmatprep.subr.mxu0 0.0
    %3308 = vmatpush1.msra.mxu0 0.0
    %3309 = vmatprep.subr.mxu0 0.0
    %3310 = vmatpush1.msra.mxu0 0.0
    %3311 = vmatprep.subr.mxu0 0.0
    %3312 = vmatpush1.msra.mxu0 0.0
    %3313 = vmatprep.subr.mxu0 0.0
    %3314 = vmatpush1.msra.mxu0 0.0
    %3315 = vmatprep.subr.mxu0 0.0
    %3316 = vmatpush1.msra.mxu0 0.0
    %3317 = vmatprep.subr.mxu0 0.0
    %3318 = vmatpush1.msra.mxu0 0.0
    %3319 = vmatprep.subr.mxu0 0.0
    %3320 = vmatpush1.msra.mxu0 0.0
    %3321 = vmatprep.subr.mxu0 0.0
    %3322 = vmatpush1.msra.mxu0 0.0
    %3323 = vmatprep.subr.mxu0 0.0
    %3324 = vmatpush1.msra.mxu0 0.0
    %3325 = vmatprep.subr.mxu0 0.0
    %3326 = vmatpush1.msra.mxu0 0.0
    %3327 = vmatprep.subr.mxu0 0.0
    %3328 = vmatpush1.msra.mxu0 0.0
    %3329 = vmatprep.mubr.f32.mxu0 0.0
    %3330 = vmatmul.mubr.f32.gmra.mrb[0].mxu0 %v3263
    %v3331 = vpop.f32.mrb[0].mxu0
    %v3332 = vadd.f32 %v3259, %v3331
    %v3333 = vpop.f32.mrb[0].mxu0
    %3334 = vdwg.mxu0
    %v3335 = vadd.f32 %v3332, %v1397
    %3336 = vmatprep.subr.mxu0 0.0
    %3337 = vmatpush1.msra.mxu0 %v1383
    %3338 = vmatprep.subr.mxu0 0.0
    %3339 = vmatpush1.msra.mxu0 %v1384
    %3340 = vmatprep.subr.mxu0 0.0
    %3341 = vmatpush1.msra.mxu0 %v1385
    %3342 = vmatprep.subr.mxu0 0.0
    %3343 = vmatpush1.msra.mxu0 %v1386
    %3344 = vmatprep.subr.mxu0 0.0
    %3345 = vmatpush1.msra.mxu0 0.0
    %3346 = vmatprep.subr.mxu0 0.0
    %3347 = vmatpush1.msra.mxu0 0.0
    %3348 = vmatprep.subr.mxu0 0.0
    %3349 = vmatpush1.msra.mxu0 0.0
    %3350 = vmatprep.subr.mxu0 0.0
    %3351 = vmatpush1.msra.mxu0 0.0
    %3352 = vmatprep.subr.mxu0 0.0
    %3353 = vmatpush1.msra.mxu0 0.0
    %3354 = vmatprep.subr.mxu0 0.0
    %3355 = vmatpush1.msra.mxu0 0.0
    %3356 = vmatprep.subr.mxu0 0.0
    %3357 = vmatpush1.msra.mxu0 0.0
    %3358 = vmatprep.subr.mxu0 0.0
    %3359 = vmatpush1.msra.mxu0 0.0
    %3360 = vmatprep.subr.mxu0 0.0
    %3361 = vmatpush1.msra.mxu0 0.0
    %3362 = vmatprep.subr.mxu0 0.0
    %3363 = vmatpush1.msra.mxu0 0.0
    %3364 = vmatprep.subr.mxu0 0.0
    %3365 = vmatpush1.msra.mxu0 0.0
    %3366 = vmatprep.subr.mxu0 0.0
    %3367 = vmatpush1.msra.mxu0 0.0
    %3368 = vmatprep.subr.mxu0 0.0
    %3369 = vmatpush1.msra.mxu0 0.0
    %3370 = vmatprep.subr.mxu0 0.0
    %3371 = vmatpush1.msra.mxu0 0.0
    %3372 = vmatprep.subr.mxu0 0.0
    %3373 = vmatpush1.msra.mxu0 0.0
    %3374 = vmatprep.subr.mxu0 0.0
    %3375 = vmatpush1.msra.mxu0 0.0
    %3376 = vmatprep.subr.mxu0 0.0
    %3377 = vmatpush1.msra.mxu0 0.0
    %3378 = vmatprep.subr.mxu0 0.0
    %3379 = vmatpush1.msra.mxu0 0.0
    %3380 = vmatprep.subr.mxu0 0.0
    %3381 = vmatpush1.msra.mxu0 0.0
    %3382 = vmatprep.subr.mxu0 0.0
    %3383 = vmatpush1.msra.mxu0 0.0
    %3384 = vmatprep.subr.mxu0 0.0
    %3385 = vmatpush1.msra.mxu0 0.0
    %3386 = vmatprep.subr.mxu0 0.0
    %3387 = vmatpush1.msra.mxu0 0.0
    %3388 = vmatprep.subr.mxu0 0.0
    %3389 = vmatpush1.msra.mxu0 0.0
    %3390 = vmatprep.subr.mxu0 0.0
    %3391 = vmatpush1.msra.mxu0 0.0
    %3392 = vmatprep.subr.mxu0 0.0
    %3393 = vmatpush1.msra.mxu0 0.0
    %3394 = vmatprep.subr.mxu0 0.0
    %3395 = vmatpush1.msra.mxu0 0.0
    %3396 = vmatprep.subr.mxu0 0.0
    %3397 = vmatpush1.msra.mxu0 0.0
    %3398 = vmatprep.subr.mxu0 0.0
    %3399 = vmatpush1.msra.mxu0 0.0
    %3400 = vmatprep.mubr.f32.mxu0 0.0
    %3401 = vmatmul.mubr.f32.gmra.mrb[0].mxu0 %v3190
    %v3402 = vpop.f32.mrb[0].mxu0
    %v3403 = vadd.f32 0.0, %v3402
    %v3404 = vpop.f32.mrb[0].mxu0
    %3405 = vdwg.mxu0
    %3406 = vmatprep.subr.mxu0 0.0
    %3407 = vmatpush1.msra.mxu0 %v1364
    %3408 = vmatprep.subr.mxu0 0.0
    %3409 = vmatpush1.msra.mxu0 %v1365
    %3410 = vmatprep.subr.mxu0 0.0
    %3411 = vmatpush1.msra.mxu0 %v1366
    %3412 = vmatprep.subr.mxu0 0.0
    %3413 = vmatpush1.msra.mxu0 %v1367
    %3414 = vmatprep.subr.mxu0 0.0
    %3415 = vmatpush1.msra.mxu0 0.0
    %3416 = vmatprep.subr.mxu0 0.0
    %3417 = vmatpush1.msra.mxu0 0.0
    %3418 = vmatprep.subr.mxu0 0.0
    %3419 = vmatpush1.msra.mxu0 0.0
    %3420 = vmatprep.subr.mxu0 0.0
    %3421 = vmatpush1.msra.mxu0 0.0
    %3422 = vmatprep.subr.mxu0 0.0
    %3423 = vmatpush1.msra.mxu0 0.0
    %3424 = vmatprep.subr.mxu0 0.0
    %3425 = vmatpush1.msra.mxu0 0.0
    %3426 = vmatprep.subr.mxu0 0.0
    %3427 = vmatpush1.msra.mxu0 0.0
    %3428 = vmatprep.subr.mxu0 0.0
    %3429 = vmatpush1.msra.mxu0 0.0
    %3430 = vmatprep.subr.mxu0 0.0
    %3431 = vmatpush1.msra.mxu0 0.0
    %3432 = vmatprep.subr.mxu0 0.0
    %3433 = vmatpush1.msra.mxu0 0.0
    %3434 = vmatprep.subr.mxu0 0.0
    %3435 = vmatpush1.msra.mxu0 0.0
    %3436 = vmatprep.subr.mxu0 0.0
    %3437 = vmatpush1.msra.mxu0 0.0
    %3438 = vmatprep.subr.mxu0 0.0
    %3439 = vmatpush1.msra.mxu0 0.0
    %3440 = vmatprep.subr.mxu0 0.0
    %3441 = vmatpush1.msra.mxu0 0.0
    %3442 = vmatprep.subr.mxu0 0.0
    %3443 = vmatpush1.msra.mxu0 0.0
    %3444 = vmatprep.subr.mxu0 0.0
    %3445 = vmatpush1.msra.mxu0 0.0
    %3446 = vmatprep.subr.mxu0 0.0
    %3447 = vmatpush1.msra.mxu0 0.0
    %3448 = vmatprep.subr.mxu0 0.0
    %3449 = vmatpush1.msra.mxu0 0.0
    %3450 = vmatprep.subr.mxu0 0.0
    %3451 = vmatpush1.msra.mxu0 0.0
    %3452 = vmatprep.subr.mxu0 0.0
    %3453 = vmatpush1.msra.mxu0 0.0
    %3454 = vmatprep.subr.mxu0 0.0
    %3455 = vmatpush1.msra.mxu0 0.0
    %3456 = vmatprep.subr.mxu0 0.0
    %3457 = vmatpush1.msra.mxu0 0.0
    %3458 = vmatprep.subr.mxu0 0.0
    %3459 = vmatpush1.msra.mxu0 0.0
    %3460 = vmatprep.subr.mxu0 0.0
    %3461 = vmatpush1.msra.mxu0 0.0
    %3462 = vmatprep.subr.mxu0 0.0
    %3463 = vmatpush1.msra.mxu0 0.0
    %3464 = vmatprep.subr.mxu0 0.0
    %3465 = vmatpush1.msra.mxu0 0.0
    %3466 = vmatprep.subr.mxu0 0.0
    %3467 = vmatpush1.msra.mxu0 0.0
    %3468 = vmatprep.subr.mxu0 0.0
    %3469 = vmatpush1.msra.mxu0 0.0
    %3470 = vmatprep.mubr.f32.mxu0 0.0
    %3471 = vmatmul.mubr.f32.gmra.mrb[0].mxu0 %v3263
    %v3472 = vpop.f32.mrb[0].mxu0
    %v3473 = vadd.f32 %v3403, %v3472
    %v3474 = vpop.f32.mrb[0].mxu0
    %3475 = vdwg.mxu0
    %v3476 = vadd.f32 %v3473, %v1399
    %3477 = vmatprep.subr.mxu0 0.0
    %3478 = vmatpush1.msra.mxu0 %v1388
    %3479 = vmatprep.subr.mxu0 0.0
    %3480 = vmatpush1.msra.mxu0 %v1389
    %3481 = vmatprep.subr.mxu0 0.0
    %3482 = vmatpush1.msra.mxu0 %v1390
    %3483 = vmatprep.subr.mxu0 0.0
    %3484 = vmatpush1.msra.mxu0 %v1391
    %3485 = vmatprep.subr.mxu0 0.0
    %3486 = vmatpush1.msra.mxu0 0.0
    %3487 = vmatprep.subr.mxu0 0.0
    %3488 = vmatpush1.msra.mxu0 0.0
    %3489 = vmatprep.subr.mxu0 0.0
    %3490 = vmatpush1.msra.mxu0 0.0
    %3491 = vmatprep.subr.mxu0 0.0
    %3492 = vmatpush1.msra.mxu0 0.0
    %3493 = vmatprep.subr.mxu0 0.0
    %3494 = vmatpush1.msra.mxu0 0.0
    %3495 = vmatprep.subr.mxu0 0.0
    %3496 = vmatpush1.msra.mxu0 0.0
    %3497 = vmatprep.subr.mxu0 0.0
    %3498 = vmatpush1.msra.mxu0 0.0
    %3499 = vmatprep.subr.mxu0 0.0
    %3500 = vmatpush1.msra.mxu0 0.0
    %3501 = vmatprep.subr.mxu0 0.0
    %3502 = vmatpush1.msra.mxu0 0.0
    %3503 = vmatprep.subr.mxu0 0.0
    %3504 = vmatpush1.msra.mxu0 0.0
    %3505 = vmatprep.subr.mxu0 0.0
    %3506 = vmatpush1.msra.mxu0 0.0
    %3507 = vmatprep.subr.mxu0 0.0
    %3508 = vmatpush1.msra.mxu0 0.0
    %3509 = vmatprep.subr.mxu0 0.0
    %3510 = vmatpush1.msra.mxu0 0.0
    %3511 = vmatprep.subr.mxu0 0.0
    %3512 = vmatpush1.msra.mxu0 0.0
    %3513 = vmatprep.subr.mxu0 0.0
    %3514 = vmatpush1.msra.mxu0 0.0
    %3515 = vmatprep.subr.mxu0 0.0
    %3516 = vmatpush1.msra.mxu0 0.0
    %3517 = vmatprep.subr.mxu0 0.0
    %3518 = vmatpush1.msra.mxu0 0.0
    %3519 = vmatprep.subr.mxu0 0.0
    %3520 = vmatpush1.msra.mxu0 0.0
    %3521 = vmatprep.subr.mxu0 0.0
    %3522 = vmatpush1.msra.mxu0 0.0
    %3523 = vmatprep.subr.mxu0 0.0
    %3524 = vmatpush1.msra.mxu0 0.0
    %3525 = vmatprep.subr.mxu0 0.0
    %3526 = vmatpush1.msra.mxu0 0.0
    %3527 = vmatprep.subr.mxu0 0.0
    %3528 = vmatpush1.msra.mxu0 0.0
    %3529 = vmatprep.subr.mxu0 0.0
    %3530 = vmatpush1.msra.mxu0 0.0
    %3531 = vmatprep.subr.mxu0 0.0
    %3532 = vmatpush1.msra.mxu0 0.0
    %3533 = vmatprep.subr.mxu0 0.0
    %3534 = vmatpush1.msra.mxu0 0.0
    %3535 = vmatprep.subr.mxu0 0.0
    %3536 = vmatpush1.msra.mxu0 0.0
    %3537 = vmatprep.subr.mxu0 0.0
    %3538 = vmatpush1.msra.mxu0 0.0
    %3539 = vmatprep.subr.mxu0 0.0
    %3540 = vmatpush1.msra.mxu0 0.0
    %3541 = vmatprep.mubr.f32.mxu0 0.0
    %3542 = vmatmul.mubr.f32.gmra.mrb[0].mxu0 %v3190
    %v3543 = vpop.f32.mrb[0].mxu0
    %v3544 = vadd.f32 0.0, %v3543
    %v3545 = vpop.f32.mrb[0].mxu0
    %3546 = vdwg.mxu0
    %3547 = vmatprep.subr.mxu0 0.0
    %3548 = vmatpush1.msra.mxu0 %v1369
    %3549 = vmatprep.subr.mxu0 0.0
    %3550 = vmatpush1.msra.mxu0 %v1370
    %3551 = vmatprep.subr.mxu0 0.0
    %3552 = vmatpush1.msra.mxu0 %v1371
    %3553 = vmatprep.subr.mxu0 0.0
    %3554 = vmatpush1.msra.mxu0 %v1372
    %3555 = vmatprep.subr.mxu0 0.0
    %3556 = vmatpush1.msra.mxu0 0.0
    %3557 = vmatprep.subr.mxu0 0.0
    %3558 = vmatpush1.msra.mxu0 0.0
    %3559 = vmatprep.subr.mxu0 0.0
    %3560 = vmatpush1.msra.mxu0 0.0
    %3561 = vmatprep.subr.mxu0 0.0
    %3562 = vmatpush1.msra.mxu0 0.0
    %3563 = vmatprep.subr.mxu0 0.0
    %3564 = vmatpush1.msra.mxu0 0.0
    %3565 = vmatprep.subr.mxu0 0.0
    %3566 = vmatpush1.msra.mxu0 0.0
    %3567 = vmatprep.subr.mxu0 0.0
    %3568 = vmatpush1.msra.mxu0 0.0
    %3569 = vmatprep.subr.mxu0 0.0
    %3570 = vmatpush1.msra.mxu0 0.0
    %3571 = vmatprep.subr.mxu0 0.0
    %3572 = vmatpush1.msra.mxu0 0.0
    %3573 = vmatprep.subr.mxu0 0.0
    %3574 = vmatpush1.msra.mxu0 0.0
    %3575 = vmatprep.subr.mxu0 0.0
    %3576 = vmatpush1.msra.mxu0 0.0
    %3577 = vmatprep.subr.mxu0 0.0
    %3578 = vmatpush1.msra.mxu0 0.0
    %3579 = vmatprep.subr.mxu0 0.0
    %3580 = vmatpush1.msra.mxu0 0.0
    %3581 = vmatprep.subr.mxu0 0.0
    %3582 = vmatpush1.msra.mxu0 0.0
    %3583 = vmatprep.subr.mxu0 0.0
    %3584 = vmatpush1.msra.mxu0 0.0
    %3585 = vmatprep.subr.mxu0 0.0
    %3586 = vmatpush1.msra.mxu0 0.0
    %3587 = vmatprep.subr.mxu0 0.0
    %3588 = vmatpush1.msra.mxu0 0.0
    %3589 = vmatprep.subr.mxu0 0.0
    %3590 = vmatpush1.msra.mxu0 0.0
    %3591 = vmatprep.subr.mxu0 0.0
    %3592 = vmatpush1.msra.mxu0 0.0
    %3593 = vmatprep.subr.mxu0 0.0
    %3594 = vmatpush1.msra.mxu0 0.0
    %3595 = vmatprep.subr.mxu0 0.0
    %3596 = vmatpush1.msra.mxu0 0.0
    %3597 = vmatprep.subr.mxu0 0.0
    %3598 = vmatpush1.msra.mxu0 0.0
    %3599 = vmatprep.subr.mxu0 0.0
    %3600 = vmatpush1.msra.mxu0 0.0
    %3601 = vmatprep.subr.mxu0 0.0
    %3602 = vmatpush1.msra.mxu0 0.0
    %3603 = vmatprep.subr.mxu0 0.0
    %3604 = vmatpush1.msra.mxu0 0.0
    %3605 = vmatprep.subr.mxu0 0.0
    %3606 = vmatpush1.msra.mxu0 0.0
    %3607 = vmatprep.subr.mxu0 0.0
    %3608 = vmatpush1.msra.mxu0 0.0
    %3609 = vmatprep.subr.mxu0 0.0
    %3610 = vmatpush1.msra.mxu0 0.0
    %3611 = vmatprep.mubr.f32.mxu0 0.0
    %3612 = vmatmul.mubr.f32.gmra.mrb[0].mxu0 %v3263
    %v3613 = vpop.f32.mrb[0].mxu0
    %v3614 = vadd.f32 %v3544, %v3613
    %v3615 = vpop.f32.mrb[0].mxu0
    %3616 = vdwg.mxu0
    %v3617 = vadd.f32 %v3614, %v1401
    %3618 = vmatprep.subr.mxu0 0.0
    %3619 = vmatpush1.msra.mxu0 %v1393
    %3620 = vmatprep.subr.mxu0 0.0
    %3621 = vmatpush1.msra.mxu0 %v1394
    %3622 = vmatprep.subr.mxu0 0.0
    %3623 = vmatpush1.msra.mxu0 %v1395
    %3624 = vmatprep.subr.mxu0 0.0
    %3625 = vmatpush1.msra.mxu0 %v1396
    %3626 = vmatprep.subr.mxu0 0.0
    %3627 = vmatpush1.msra.mxu0 0.0
    %3628 = vmatprep.subr.mxu0 0.0
    %3629 = vmatpush1.msra.mxu0 0.0
    %3630 = vmatprep.subr.mxu0 0.0
    %3631 = vmatpush1.msra.mxu0 0.0
    %3632 = vmatprep.subr.mxu0 0.0
    %3633 = vmatpush1.msra.mxu0 0.0
    %3634 = vmatprep.subr.mxu0 0.0
    %3635 = vmatpush1.msra.mxu0 0.0
    %3636 = vmatprep.subr.mxu0 0.0
    %3637 = vmatpush1.msra.mxu0 0.0
    %3638 = vmatprep.subr.mxu0 0.0
    %3639 = vmatpush1.msra.mxu0 0.0
    %3640 = vmatprep.subr.mxu0 0.0
    %3641 = vmatpush1.msra.mxu0 0.0
    %3642 = vmatprep.subr.mxu0 0.0
    %3643 = vmatpush1.msra.mxu0 0.0
    %3644 = vmatprep.subr.mxu0 0.0
    %3645 = vmatpush1.msra.mxu0 0.0
    %3646 = vmatprep.subr.mxu0 0.0
    %3647 = vmatpush1.msra.mxu0 0.0
    %3648 = vmatprep.subr.mxu0 0.0
    %3649 = vmatpush1.msra.mxu0 0.0
    %3650 = vmatprep.subr.mxu0 0.0
    %3651 = vmatpush1.msra.mxu0 0.0
    %3652 = vmatprep.subr.mxu0 0.0
    %3653 = vmatpush1.msra.mxu0 0.0
    %3654 = vmatprep.subr.mxu0 0.0
    %3655 = vmatpush1.msra.mxu0 0.0
    %3656 = vmatprep.subr.mxu0 0.0
    %3657 = vmatpush1.msra.mxu0 0.0
    %3658 = vmatprep.subr.mxu0 0.0
    %3659 = vmatpush1.msra.mxu0 0.0
    %3660 = vmatprep.subr.mxu0 0.0
    %3661 = vmatpush1.msra.mxu0 0.0
    %3662 = vmatprep.subr.mxu0 0.0
    %3663 = vmatpush1.msra.mxu0 0.0
    %3664 = vmatprep.subr.mxu0 0.0
    %3665 = vmatpush1.msra.mxu0 0.0
    %3666 = vmatprep.subr.mxu0 0.0
    %3667 = vmatpush1.msra.mxu0 0.0
    %3668 = vmatprep.subr.mxu0 0.0
    %3669 = vmatpush1.msra.mxu0 0.0
    %3670 = vmatprep.subr.mxu0 0.0
    %3671 = vmatpush1.msra.mxu0 0.0
    %3672 = vmatprep.subr.mxu0 0.0
    %3673 = vmatpush1.msra.mxu0 0.0
    %3674 = vmatprep.subr.mxu0 0.0
    %3675 = vmatpush1.msra.mxu0 0.0
    %3676 = vmatprep.subr.mxu0 0.0
    %3677 = vmatpush1.msra.mxu0 0.0
    %3678 = vmatprep.subr.mxu0 0.0
    %3679 = vmatpush1.msra.mxu0 0.0
    %3680 = vmatprep.subr.mxu0 0.0
    %3681 = vmatpush1.msra.mxu0 0.0
    %3682 = vmatprep.mubr.f32.mxu0 0.0
    %3683 = vmatmul.mubr.f32.gmra.mrb[0].mxu0 %v3190
    %v3684 = vpop.f32.mrb[0].mxu0
    %v3685 = vadd.f32 0.0, %v3684
    %v3686 = vpop.f32.mrb[0].mxu0
    %3687 = vdwg.mxu0
    %3688 = vmatprep.subr.mxu0 0.0
    %3689 = vmatpush1.msra.mxu0 %v1374
    %3690 = vmatprep.subr.mxu0 0.0
    %3691 = vmatpush1.msra.mxu0 %v1375
    %3692 = vmatprep.subr.mxu0 0.0
    %3693 = vmatpush1.msra.mxu0 %v1376
    %3694 = vmatprep.subr.mxu0 0.0
    %3695 = vmatpush1.msra.mxu0 %v1377
    %3696 = vmatprep.subr.mxu0 0.0
    %3697 = vmatpush1.msra.mxu0 0.0
    %3698 = vmatprep.subr.mxu0 0.0
    %3699 = vmatpush1.msra.mxu0 0.0
    %3700 = vmatprep.subr.mxu0 0.0
    %3701 = vmatpush1.msra.mxu0 0.0
    %3702 = vmatprep.subr.mxu0 0.0
    %3703 = vmatpush1.msra.mxu0 0.0
    %3704 = vmatprep.subr.mxu0 0.0
    %3705 = vmatpush1.msra.mxu0 0.0
    %3706 = vmatprep.subr.mxu0 0.0
    %3707 = vmatpush1.msra.mxu0 0.0
    %3708 = vmatprep.subr.mxu0 0.0
    %3709 = vmatpush1.msra.mxu0 0.0
    %3710 = vmatprep.subr.mxu0 0.0
    %3711 = vmatpush1.msra.mxu0 0.0
    %3712 = vmatprep.subr.mxu0 0.0
    %3713 = vmatpush1.msra.mxu0 0.0
    %3714 = vmatprep.subr.mxu0 0.0
    %3715 = vmatpush1.msra.mxu0 0.0
    %3716 = vmatprep.subr.mxu0 0.0
    %3717 = vmatpush1.msra.mxu0 0.0
    %3718 = vmatprep.subr.mxu0 0.0
    %3719 = vmatpush1.msra.mxu0 0.0
    %3720 = vmatprep.subr.mxu0 0.0
    %3721 = vmatpush1.msra.mxu0 0.0
    %3722 = vmatprep.subr.mxu0 0.0
    %3723 = vmatpush1.msra.mxu0 0.0
    %3724 = vmatprep.subr.mxu0 0.0
    %3725 = vmatpush1.msra.mxu0 0.0
    %3726 = vmatprep.subr.mxu0 0.0
    %3727 = vmatpush1.msra.mxu0 0.0
    %3728 = vmatprep.subr.mxu0 0.0
    %3729 = vmatpush1.msra.mxu0 0.0
    %3730 = vmatprep.subr.mxu0 0.0
    %3731 = vmatpush1.msra.mxu0 0.0
    %3732 = vmatprep.subr.mxu0 0.0
    %3733 = vmatpush1.msra.mxu0 0.0
    %3734 = vmatprep.subr.mxu0 0.0
    %3735 = vmatpush1.msra.mxu0 0.0
    %3736 = vmatprep.subr.mxu0 0.0
    %3737 = vmatpush1.msra.mxu0 0.0
    %3738 = vmatprep.subr.mxu0 0.0
    %3739 = vmatpush1.msra.mxu0 0.0
    %3740 = vmatprep.subr.mxu0 0.0
    %3741 = vmatpush1.msra.mxu0 0.0
    %3742 = vmatprep.subr.mxu0 0.0
    %3743 = vmatpush1.msra.mxu0 0.0
    %3744 = vmatprep.subr.mxu0 0.0
    %3745 = vmatpush1.msra.mxu0 0.0
    %3746 = vmatprep.subr.mxu0 0.0
    %3747 = vmatpush1.msra.mxu0 0.0
    %3748 = vmatprep.subr.mxu0 0.0
    %3749 = vmatpush1.msra.mxu0 0.0
    %3750 = vmatprep.subr.mxu0 0.0
    %3751 = vmatpush1.msra.mxu0 0.0
    %3752 = vmatprep.mubr.f32.mxu0 0.0
    %3753 = vmatmul.mubr.f32.gmra.mrb[0].mxu0 %v3263
    %v3754 = vpop.f32.mrb[0].mxu0
    %v3755 = vadd.f32 %v3685, %v3754
    %v3756 = vpop.f32.mrb[0].mxu0
    %3757 = vdwg.mxu0
    %v3758 = vadd.f32 %v3755, %v1403
    %v3759 = vxor.u32 %v3335, 2147483648
    %v3760 = vmul.f32 %v3759, 1.442695
    %v3761 = vpow.pop %v3760
    %v3762 = vadd.f32 %v3761, 1.0
    %v3763 = vrcp.pop %v3762
    %v3764 = vmul.f32 1.0, %v3763
    %v3765 = vxor.u32 %v3476, 2147483648
    %v3766 = vmul.f32 %v3765, 1.442695
    %v3767 = vpow.pop %v3766
    %v3768 = vadd.f32 %v3767, 1.0
    %v3769 = vrcp.pop %v3768
    %v3770 = vmul.f32 1.0, %v3769
    %v3771 = vtanh.pop %v3617
    %v3772 = vxor.u32 %v3758, 2147483648
    %v3773 = vmul.f32 %v3772, 1.442695
    %v3774 = vpow.pop %v3773
    %v3775 = vadd.f32 %v3774, 1.0
    %v3776 = vrcp.pop %v3775
    %v3777 = vmul.f32 1.0, %v3776
    %v3778 = vmul.f32 %v3770, %v3186
    %v3779 = vmul.f32 %v3764, %v3771
    %v3780 = vadd.f32 %v3778, %v3779
    %v3781 = vtanh.pop %v3780
    %v3782 = vmul.f32 %v3777, %v3781
    %v3783 = vld [vmem:[%s15] sm:$0xff]
    %v3784 = vld [vmem:[%s15 + $0x8] sm:$0xff]
    %v3785 = vld [vmem:[%s15 + $0x10] sm:$0xff]
    %v3786 = vld [vmem:[%s15 + $0x18] sm:$0xff]
    %v3787 = vld [vmem:[%s16] sm:$0x1]
    %v3789 = vsel %vm1406, %v3782, 0
    %3791 = vmatprep.subr.mxu0 0.0
    %3792 = vmatpush1.msra.mxu0 %v3783
    %3793 = vmatprep.subr.mxu0 0.0
    %3794 = vmatpush1.msra.mxu0 %v3784
    %3795 = vmatprep.subr.mxu0 0.0
    %3796 = vmatpush1.msra.mxu0 %v3785
    %3797 = vmatprep.subr.mxu0 0.0
    %3798 = vmatpush1.msra.mxu0 %v3786
    %3799 = vmatprep.subr.mxu0 0.0
    %3800 = vmatpush1.msra.mxu0 0.0
    %3801 = vmatprep.subr.mxu0 0.0
    %3802 = vmatpush1.msra.mxu0 0.0
    %3803 = vmatprep.subr.mxu0 0.0
    %3804 = vmatpush1.msra.mxu0 0.0
    %3805 = vmatprep.subr.mxu0 0.0
    %3806 = vmatpush1.msra.mxu0 0.0
    %3807 = vmatprep.subr.mxu0 0.0
    %3808 = vmatpush1.msra.mxu0 0.0
    %3809 = vmatprep.subr.mxu0 0.0
    %3810 = vmatpush1.msra.mxu0 0.0
    %3811 = vmatprep.subr.mxu0 0.0
    %3812 = vmatpush1.msra.mxu0 0.0
    %3813 = vmatprep.subr.mxu0 0.0
    %3814 = vmatpush1.msra.mxu0 0.0
    %3815 = vmatprep.subr.mxu0 0.0
    %3816 = vmatpush1.msra.mxu0 0.0
    %3817 = vmatprep.subr.mxu0 0.0
    %3818 = vmatpush1.msra.mxu0 0.0
    %3819 = vmatprep.subr.mxu0 0.0
    %3820 = vmatpush1.msra.mxu0 0.0
    %3821 = vmatprep.subr.mxu0 0.0
    %3822 = vmatpush1.msra.mxu0 0.0
    %3823 = vmatprep.subr.mxu0 0.0
    %3824 = vmatpush1.msra.mxu0 0.0
    %3825 = vmatprep.subr.mxu0 0.0
    %3826 = vmatpush1.msra.mxu0 0.0
    %3827 = vmatprep.subr.mxu0 0.0
    %3828 = vmatpush1.msra.mxu0 0.0
    %3829 = vmatprep.subr.mxu0 0.0
    %3830 = vmatpush1.msra.mxu0 0.0
    %3831 = vmatprep.subr.mxu0 0.0
    %3832 = vmatpush1.msra.mxu0 0.0
    %3833 = vmatprep.subr.mxu0 0.0
    %3834 = vmatpush1.msra.mxu0 0.0
    %3835 = vmatprep.subr.mxu0 0.0
    %3836 = vmatpush1.msra.mxu0 0.0
    %3837 = vmatprep.subr.mxu0 0.0
    %3838 = vmatpush1.msra.mxu0 0.0
    %3839 = vmatprep.subr.mxu0 0.0
    %3840 = vmatpush1.msra.mxu0 0.0
    %3841 = vmatprep.subr.mxu0 0.0
    %3842 = vmatpush1.msra.mxu0 0.0
    %3843 = vmatprep.subr.mxu0 0.0
    %3844 = vmatpush1.msra.mxu0 0.0
    %3845 = vmatprep.subr.mxu0 0.0
    %3846 = vmatpush1.msra.mxu0 0.0
    %3847 = vmatprep.subr.mxu0 0.0
    %3848 = vmatpush1.msra.mxu0 0.0
    %3849 = vmatprep.subr.mxu0 0.0
    %3850 = vmatpush1.msra.mxu0 0.0
    %3851 = vmatprep.subr.mxu0 0.0
    %3852 = vmatpush1.msra.mxu0 0.0
    %3853 = vmatprep.subr.mxu0 0.0
    %3854 = vmatpush1.msra.mxu0 0.0
    %3855 = vmatprep.mubr.f32.mxu0 0.0
    %3856 = vmatmul.mubr.f32.gmra.mrb[0].mxu0 %v3789
    %v3857 = vpop.f32.mrb[0].mxu0
    %v3858 = vadd.f32 %v3787, %v3857
    %v3859 = vpop.f32.mrb[0].mxu0
    %3860 = vdwg.mxu0
    %vm3861 = vcmask 0
    %3862 = vst.msk [vmem:[#allocation2] sm:$0x1] %vm3861, %v3858
    %3864 = vrot.lane.b32.xlu0 %v3858, 127
    %v3865 = vpop.permute.xlu0 %3864
    %vm3867 = vcmask 40960
    %3868 = vst.msk [vmem:[#allocation4] sm:$0x1] %vm3867, %v3865
    %vm3869 = vcmask 253952
    %3870 = vst.msk [vmem:[#allocation6] sm:$0x1] %vm3869, %v3782
    %3871 = vst.msk [vmem:[#allocation7] sm:$0x1] %vm3869, %v3780
    // Predicated region
    $region78: #{forward.9} parent=1 // pred_check
      _
    $region79: #{forward.9} parent=1 // pred_check_branch
      %3873 = sbr.rel (0) target = $region81
    $region80: #{forward.9} parent=1 // pred_region
      %s3875 = ssub.s32 16, 16
      %3876 = vsyncadd [#allocation3], %s3875
      %s3878 = sshll.u32 [#allocation2], 4
      %s3879 = int_to_ptr.vmem [resolvable:$true] %s3878
      %3881 = dma.vmem_to_hbm [thread:$0]  %s3879, 16, %s19, [#allocation3]
    $region81: #{forward.9} parent=1 // pred_fallthru
      _
    // Predicated region
    $region82: #{forward.9} parent=1 // pred_check
      _
    $region83: #{forward.9} parent=1 // pred_check_branch
      %3883 = sbr.rel (0) target = $region85
    $region84: #{forward.9} parent=1 // pred_region
      %s3885 = ssub.s32 16, 16
      %3886 = vsyncadd [#allocation5], %s3885
      %s3888 = sshll.u32 [#allocation4], 4
      %s3889 = int_to_ptr.vmem [resolvable:$true] %s3888
      %3891 = dma.vmem_to_hbm [thread:$0]  %s3889, 16, %s20, [#allocation5]
    $region85: #{forward.9} parent=1 // pred_fallthru
      _
    // Predicated region
    $region86: #{forward.9} parent=1 // pred_check
      _
    $region87: #{forward.9} parent=1 // pred_check_branch
      %3893 = sbr.rel (0) target = $region89
    $region88: #{forward.9} parent=1 // pred_region
      %s3895 = ssub.s32 16, 16
      %3896 = vsyncadd [#allocation5], %s3895
      %s3898 = sshll.u32 [#allocation6], 4
      %s3899 = int_to_ptr.vmem [resolvable:$true] %s3898
      %3901 = dma.vmem_to_hbm [thread:$0]  %s3899, 16, %s21, [#allocation5]
    $region89: #{forward.9} parent=1 // pred_fallthru
      _
    // Predicated region
    $region90: #{forward.9} parent=1 // pred_check
      _
    $region91: #{forward.9} parent=1 // pred_check_branch
      %3903 = sbr.rel (0) target = $region93
    $region92: #{forward.9} parent=1 // pred_region
      %s3905 = ssub.s32 16, 16
      %3906 = vsyncadd [#allocation8], %s3905
      %s3908 = sshll.u32 [#allocation7], 4
      %s3909 = int_to_ptr.vmem [resolvable:$true] %s3908
      %3911 = dma.vmem_to_hbm [thread:$0]  %s3909, 16, %s22, [#allocation8]
    $region93: #{forward.9} parent=1 // pred_fallthru
      _
    // Predicated region
    $region94: #{forward.9} parent=1 // pred_check
      _
    $region95: #{forward.9} parent=1 // pred_check_branch
      %3913 = sbr.rel (0) target = $region97
    $region96: #{forward.9} parent=1 // pred_region
      %3914 = dma.done [#allocation3], 16
    $region97: #{forward.9} parent=1 // pred_fallthru
      _
    // Predicated region
    $region98: #{forward.9} parent=1 // pred_check
      _
    $region99: #{forward.9} parent=1 // pred_check_branch
      %3916 = sbr.rel (0) target = $region101
    $region100: #{forward.9} parent=1 // pred_region
      %3917 = dma.done [#allocation5], 16
    $region101: #{forward.9} parent=1 // pred_fallthru
      _
    // Predicated region
    $region102: #{forward.9} parent=1 // pred_check
      _
    $region103: #{forward.9} parent=1 // pred_check_branch
      %3919 = sbr.rel (0) target = $region105
    $region104: #{forward.9} parent=1 // pred_region
      %3920 = dma.done [#allocation5], 16
    $region105: #{forward.9} parent=1 // pred_fallthru
      _
    // Predicated region
    $region106: #{forward.9} parent=1 // pred_check
      _
    $region107: #{forward.9} parent=1 // pred_check_branch
      %3922 = sbr.rel (0) target = $region109
    $region108: #{forward.9} parent=1 // pred_region
      %3923 = dma.done [#allocation8], 16
    $region109: #{forward.9} parent=1 // pred_fallthru
      _
    %3924 = vsyncpa [#allocation3], 1
    %3925 = vsyncpa [#allocation5], 1
    %3926 = vsyncpa [#allocation8], 1

</llo_original>
